<compile_context>
chip_gen: v7x
topology: tpu7x:2x2x1
jax: 0.10.0
libtpu: 0.0.40
codegen_flags: <defaults>
</compile_context>

<pallas_src>
import functools

import jax
import jax.numpy as jnp
import numpy as np
from jax.experimental import pallas as pl
from jax.experimental.pallas import tpu as pltpu

_LANE = 128


def _round_up(n, m):
    return ((n + m - 1) // m) * m


# ----------------------------- Pallas kernel ------------------------------ #

def _vrnn_kernel(x_ref, eps_ref, wx_ref, wh_ref, wz_ref, bx_ref, bh_ref,
                 out_ref, ax_scr, *, T, Zp, Hp):
    """One batch tile: hoisted x-side matmul + T-step GRU/VRNN recurrence in VMEM."""
    Bt = out_ref.shape[0]
    Din = x_ref.shape[-1]
    Nf = 2 * Zp + 3 * Hp          # fused columns: [z_mu | z_lv | r | z | n]
    o_g = 2 * Zp                  # start of the gate (r) segment

    wx = wx_ref[...]              # (Din, Nf)
    wh = wh_ref[...]              # (Hp,  Nf)
    wz = wz_ref[...]              # (Zp,  3*Hp)  columns: [r | z | n]
    bx = bx_ref[...]              # (1, Nf)  [bem | bes | b_ih_r | b_ih_z | b_ih_n]
    bh = bh_ref[...]              # (1, Nf)  [ 0  |  0  | b_hh_r | b_hh_z | b_hh_n]

    # --- hoisted x-side contribution for ALL timesteps: one wide matmul ------
    # (leading-dim collapse/split only; lane dim untouched -> layout preserving)
    x_all = x_ref[...].reshape(T * Bt, Din)
    ax_scr[...] = (jnp.dot(x_all, wx, preferred_element_type=jnp.float32)
                   + bx).reshape(T, Bt, Nf)

    h0 = jnp.zeros((Bt, Hp), jnp.float32)     # padding lanes stay exactly 0 forever

    def step(t, h):
        a_x = ax_scr[t]                                            # (Bt, Nf)
        eps_t = eps_ref[t]                                         # (Bt, Zp)
        a_h = jnp.dot(h, wh, preferred_element_type=jnp.float32) + bh

        # encoder heads + reparameterization (segments 0,1 — whole-vreg slices)
        s01 = a_x[:, :o_g] + a_h[:, :o_g]
        z_mu = s01[:, :Zp]
        z_lv = s01[:, Zp:]
        z_t = z_mu + eps_t * jnp.exp(0.5 * z_lv)                   # (Bt, Zp), pad lanes = 0

        a_z = jnp.dot(z_t, wz, preferred_element_type=jnp.float32)  # (Bt, 3*Hp)

        # r/z gates: full-width adds + one sigmoid over the contiguous [r|z] span
        ru = jax.nn.sigmoid(a_x[:, o_g:o_g + 2 * Hp]
                            + a_h[:, o_g:o_g + 2 * Hp]
                            + a_z[:, :2 * Hp])
        r = ru[:, :Hp]
        u = ru[:, Hp:]

        # n gate: PyTorch GRU semantics, gh_n kept on the h side
        gi_n = a_x[:, o_g + 2 * Hp:] + a_z[:, 2 * Hp:]
        gh_n = a_h[:, o_g + 2 * Hp:]
        n = jnp.tanh(gi_n + r * gh_n)

        return (1.0 - u) * n + u * h

    if T <= 16:
        h = h0
        for t in range(T):                    # short static trip count -> keep the unroll
            h = step(t, h)
    else:
        h = jax.lax.fori_loop(0, T, step, h0, unroll=2)

    out_ref[...] = h.astype(out_ref.dtype)    # lane-dense (Bt, Hp) store


# ------------------------- weight fusion / wrapper ------------------------- #

def _fuse_params(params, Z, H):
    """Fused weights with every logical segment padded to a 128-lane boundary."""
    Zp = _round_up(Z, _LANE)
    Hp = _round_up(H, _LANE)
    f32 = lambda k: params[k].astype(jnp.float32)

    def pad_cols(a, w):
        return jnp.pad(a, ((0, 0), (0, w - a.shape[1])))

    def pad_rows(a, r):
        return jnp.pad(a, ((0, r - a.shape[0]), (0, 0)))

    wx = jnp.concatenate([pad_cols(f32("wem_x"), Zp), pad_cols(f32("wes_x"), Zp),
                          pad_cols(f32("wir_x"), Hp), pad_cols(f32("wiz_x"), Hp),
                          pad_cols(f32("win_x"), Hp)], axis=1)                       # (Din, Nf)
    wh = pad_rows(jnp.concatenate([pad_cols(f32("wem_h"), Zp), pad_cols(f32("wes_h"), Zp),
                                   pad_cols(f32("whr"), Hp), pad_cols(f32("whz"), Hp),
                                   pad_cols(f32("whn"), Hp)], axis=1), Hp)           # (Hp, Nf)
    wz = pad_rows(jnp.concatenate([pad_cols(f32("wir_z"), Hp), pad_cols(f32("wiz_z"), Hp),
                                   pad_cols(f32("win_z"), Hp)], axis=1), Zp)         # (Zp, 3Hp)
    bx = jnp.concatenate([pad_cols(f32("bem"), Zp), pad_cols(f32("bes"), Zp),
                          pad_cols(f32("bir"), Hp), pad_cols(f32("biz"), Hp),
                          pad_cols(f32("bin"), Hp)], axis=1)                         # (1, Nf)
    bh = jnp.concatenate([jnp.zeros((1, 2 * Zp), jnp.float32),
                          pad_cols(f32("bhr"), Hp), pad_cols(f32("bhz"), Hp),
                          pad_cols(f32("bhn"), Hp)], axis=1)                         # (1, Nf)
    # NOTE: for large H on v6e/v7x, cast wx/wh/wz (and the dot LHS) to bf16 here;
    # accumulation stays f32 via preferred_element_type, gate math stays f32 (esp. on v5e).
    return wx, wh, wz, bx, bh


def vrnn_forward(x_btd, eps_tbz, params, *, batch_tile=None):
    """x_btd: [B, T, Din] (batch_first, like torch); eps_tbz: [T, B, Z]. Returns h[-1]: [B, H]."""
    B, T, Din = x_btd.shape
    Z = eps_tbz.shape[-1]
    H = params["whr"].shape[0]
    Zp = _round_up(Z, _LANE)
    Hp = _round_up(H, _LANE)
    Nf = 2 * Zp + 3 * Hp

    # Batch tiling: recurrence is independent across batch rows -> "parallel" grid axis
    # (uses both TensorCores on v7x; harmless no-op on v5e/v6e with a single tile).
    if batch_tile is None:
        batch_tile = min(_round_up(max(B, 8), 8), 256)
    Bt = _round_up(batch_tile, 8)
    Bp = _round_up(max(B, Bt), Bt)
    n_btiles = Bp // Bt

    # Time-major inputs (no per-step sublane-strided slicing in the kernel).
    x = jnp.transpose(x_btd.astype(jnp.float32), (1, 0, 2))          # (T, B, Din)
    x = jnp.pad(x, ((0, 0), (0, Bp - B), (0, 0)))                    # (T, Bp, Din)
    eps = jnp.pad(eps_tbz.astype(jnp.float32),
                  ((0, 0), (0, Bp - B), (0, Zp - Z)))                # (T, Bp, Zp), pad lanes 0

    wx, wh, wz, bx, bh = _fuse_params(params, Z, H)

    kernel = functools.partial(_vrnn_kernel, T=T, Zp=Zp, Hp=Hp)

    # Explicit scoped-VMEM budget with headroom (v5e default 16 MiB / v7x physical 64 MiB).
    est = 4 * (T * Bt * (Din + Zp + Nf)            # x + eps + ax_scr tiles
               + Din * Nf + Hp * Nf + Zp * 3 * Hp  # fused weights
               + 2 * Nf + Bt * Hp)                 # biases + output tile
    vmem_limit = int(min(max(4 * est, 16 << 20), 48 << 20))

    out = pl.pallas_call(
        kernel,
        out_shape=jax.ShapeDtypeStruct((Bp, Hp), jnp.float32),
        grid_spec=pltpu.PrefetchScalarGridSpec(
            num_scalar_prefetch=0,
            grid=(n_btiles,),
            in_specs=[
                pl.BlockSpec((T, Bt, Din), lambda i: (0, i, 0)),     # x (time-major)
                pl.BlockSpec((T, Bt, Zp), lambda i: (0, i, 0)),      # eps (time-major)
                pl.BlockSpec((Din, Nf), lambda i: (0, 0)),           # wx
                pl.BlockSpec((Hp, Nf), lambda i: (0, 0)),            # wh
                pl.BlockSpec((Zp, 3 * Hp), lambda i: (0, 0)),        # wz
                pl.BlockSpec((1, Nf), lambda i: (0, 0)),             # bx
                pl.BlockSpec((1, Nf), lambda i: (0, 0)),             # bh
            ],
            out_specs=pl.BlockSpec((Bt, Hp), lambda i: (i, 0)),
            scratch_shapes=[pltpu.VMEM((T, Bt, Nf), jnp.float32)],   # hoisted x-side acts
        ),
        compiler_params=pltpu.CompilerParams(
            dimension_semantics=("parallel",),
            vmem_limit_bytes=vmem_limit,
        ),
    )(x, eps, wx, wh, wz, bx, bh)

    return out[:B, :H]


# ------------------------- parameter construction ------------------------- #

def init_params(key, input_size, hidden_size, z_size):
    """Synthetic parameters with the torch shapes, Linear weights stored as (in, out).

    prior_mu / prior_sigma are dead in the torch forward and therefore not created.
    """
    ks = iter(jax.random.split(key, 32))

    def w(shape, fan_in):
        return (jax.random.normal(next(ks), shape, jnp.float32) / np.sqrt(fan_in)).astype(jnp.float32)

    def b(n, fan_in):
        return (jax.random.normal(next(ks), (1, n), jnp.float32) / np.sqrt(fan_in)).astype(jnp.float32)

    Din, H, Z = input_size, hidden_size, z_size
    p = {}
    # encoder heads: Linear(H + Din, Z); input is cat([x_t, h]) -> split rows into x / h parts
    fe = H + Din
    p["wem_x"], p["wem_h"], p["bem"] = w((Din, Z), fe), w((H, Z), fe), b(Z, fe)
    p["wes_x"], p["wes_h"], p["bes"] = w((Din, Z), fe), w((H, Z), fe), b(Z, fe)
    # GRU: input size Din + Z, hidden H; gates r, z, n (PyTorch ordering)
    fg = Din + Z
    for g in ("r", "z", "n"):
        p[f"wi{g}_x"] = w((Din, H), fg)
        p[f"wi{g}_z"] = w((Z, H), fg)
        p[f"wh{g}"] = w((H, H), H)
        p[f"bi{g}"] = b(H, fg)
        p[f"bh{g}"] = b(H, H)
    return p


# ----------------------------- pure-JAX reference -------------------------- #

def vrnn_reference(x_btd, eps_tbz, params):
    x = jnp.transpose(x_btd, (1, 0, 2)).astype(jnp.float32)
    T, B, Din = x.shape
    H = params["whr"].shape[0]
    h = jnp.zeros((B, H), jnp.float32)
    for t in range(T):
        x_t, e = x[t], eps_tbz[t]
        z_mu = x_t @ params["wem_x"] + h @ params["wem_h"] + params["bem"]
        z_lv = x_t @ params["wes_x"] + h @ params["wes_h"] + params["bes"]
        z_t = z_mu + e * jnp.exp(0.5 * z_lv)
        gi_r = x_t @ params["wir_x"] + z_t @ params["wir_z"] + params["bir"]
        gh_r = h @ params["whr"] + params["bhr"]
        gi_z = x_t @ params["wiz_x"] + z_t @ params["wiz_z"] + params["biz"]
        gh_z = h @ params["whz"] + params["bhz"]
        gi_n = x_t @ params["win_x"] + z_t @ params["win_z"] + params["bin"]
        gh_n = h @ params["whn"] + params["bhn"]
        r = jax.nn.sigmoid(gi_r + gh_r)
        u = jax.nn.sigmoid(gi_z + gh_z)
        n = jnp.tanh(gi_n + r * gh_n)
        h = (1.0 - u) * n + u * h
    return h


# ----------------------------------- main ---------------------------------- #

if __name__ == "__main__":
    batch, seq, input_size, hidden_size, z_size = 2, 8, 16, 32, 8

    root = jax.random.PRNGKey(0)
    k_x, k_eps, k_p = jax.random.split(root, 3)

    x = jax.random.normal(k_x, (batch, seq, input_size), jnp.float32)
    # torch.randn_like noise of reparameterize, pre-sampled deterministically (time-major)
    eps = jax.random.normal(k_eps, (seq, batch, z_size), jnp.float32)
    params = init_params(k_p, input_size, hidden_size, z_size)

    out = vrnn_forward(x, eps, params)
    out = jax.block_until_ready(out)

    ref = vrnn_reference(x, eps, params)
    np.testing.assert_allclose(np.asarray(out), np.asarray(ref), rtol=1e-5, atol=1e-5)
    assert out.shape == (batch, hidden_size)

    print("KERNEL_OK")
</pallas_src>

<mosaic_0001>
module attributes {stable_mosaic.version = 11 : i64} {
  func.func @_vrnn_kernel(%arg0: i32, %arg1: memref<8x8x16xf32, #tpu.memory_space<vmem>>, %arg2: memref<8x8x128xf32, #tpu.memory_space<vmem>>, %arg3: memref<16x640xf32, #tpu.memory_space<vmem>>, %arg4: memref<128x640xf32, #tpu.memory_space<vmem>>, %arg5: memref<128x384xf32, #tpu.memory_space<vmem>>, %arg6: memref<1x640xf32, #tpu.memory_space<vmem>>, %arg7: memref<1x640xf32, #tpu.memory_space<vmem>>, %arg8: memref<8x128xf32, #tpu.memory_space<vmem>>, %arg9: memref<8x8x640xf32, #tpu.memory_space<vmem>>) attributes {dimension_semantics = [#tpu.dimension_semantics<parallel>], iteration_bounds = array<i64: 1>, scalar_prefetch = 0 : i64, scratch_operands = 1 : i64, tpu.core_type = #tpu.core_type<tc>, window_params = [{transform_indices = @transform_0, window_bounds = array<i64: 8, 8, 16>}, {transform_indices = @transform_1, window_bounds = array<i64: 8, 8, 128>}, {pipeline_mode = #tpu.pipeline_mode<synchronous>, transform_indices = @transform_2, window_bounds = array<i64: 16, 640>}, {pipeline_mode = #tpu.pipeline_mode<synchronous>, transform_indices = @transform_3, window_bounds = array<i64: 128, 640>}, {pipeline_mode = #tpu.pipeline_mode<synchronous>, transform_indices = @transform_4, window_bounds = array<i64: 128, 384>}, {pipeline_mode = #tpu.pipeline_mode<synchronous>, transform_indices = @transform_5, window_bounds = array<i64: 1, 640>}, {pipeline_mode = #tpu.pipeline_mode<synchronous>, transform_indices = @transform_6, window_bounds = array<i64: 1, 640>}, {transform_indices = @transform_7, window_bounds = array<i64: 8, 128>}]} {
    %c0 = arith.constant 0 : index
    %c0_0 = arith.constant 0 : index
    %0 = vector.load %arg3[%c0, %c0_0] : memref<16x640xf32, #tpu.memory_space<vmem>>, vector<16x640xf32>
    %c0_1 = arith.constant 0 : index
    %c0_2 = arith.constant 0 : index
    %1 = vector.load %arg4[%c0_1, %c0_2] : memref<128x640xf32, #tpu.memory_space<vmem>>, vector<128x640xf32>
    %c0_3 = arith.constant 0 : index
    %c0_4 = arith.constant 0 : index
    %2 = vector.load %arg5[%c0_3, %c0_4] : memref<128x384xf32, #tpu.memory_space<vmem>>, vector<128x384xf32>
    %c0_5 = arith.constant 0 : index
    %c0_6 = arith.constant 0 : index
    %3 = vector.load %arg6[%c0_5, %c0_6] : memref<1x640xf32, #tpu.memory_space<vmem>>, vector<1x640xf32>
    %c0_7 = arith.constant 0 : index
    %c0_8 = arith.constant 0 : index
    %4 = vector.load %arg7[%c0_7, %c0_8] : memref<1x640xf32, #tpu.memory_space<vmem>>, vector<1x640xf32>
    %c0_9 = arith.constant 0 : index
    %c0_10 = arith.constant 0 : index
    %c0_11 = arith.constant 0 : index
    %5 = vector.load %arg1[%c0_9, %c0_10, %c0_11] : memref<8x8x16xf32, #tpu.memory_space<vmem>>, vector<8x8x16xf32>
    %6 = vector.shape_cast %5 : vector<8x8x16xf32> to vector<64x16xf32>
    %cst = arith.constant dense<0.000000e+00> : vector<64x640xf32>
    %7 = tpu.matmul %6, %0, %cst {dimension_numbers = #tpu.dot_dimension_numbers<[1], [0], [0], [1], [0, 0, 1, 1], [], []>} : vector<64x16xf32>, vector<16x640xf32>, vector<64x640xf32> -> vector<64x640xf32>
    %8 = vector.broadcast %3 : vector<1x640xf32> to vector<64x640xf32>
    %9 = arith.addf %7, %8 : vector<64x640xf32>
    %10 = vector.shape_cast %9 : vector<64x640xf32> to vector<8x8x640xf32>
    %c0_12 = arith.constant 0 : index
    %c0_13 = arith.constant 0 : index
    %c0_14 = arith.constant 0 : index
    %11 = vector.load %arg9[%c0_12, %c0_13, %c0_14] : memref<8x8x640xf32, #tpu.memory_space<vmem>>, vector<8x8x640xf32>
    tpu.vector_store %arg9[%c0_12, %c0_13, %c0_14], %10 {strides = array<i32>} : memref<8x8x640xf32, #tpu.memory_space<vmem>>, vector<8x8x640xf32>,
    %cst_15 = arith.constant 0.000000e+00 : f32
    %12 = vector.broadcast %cst_15 : f32 to vector<8x128xf32>
    %c0_16 = arith.constant 0 : index
    %c0_17 = arith.constant 0 : index
    %c0_18 = arith.constant 0 : index
    %13 = vector.load %arg9[%c0_16, %c0_17, %c0_18] : memref<8x8x640xf32, #tpu.memory_space<vmem>>, vector<1x8x640xf32>
    %14 = vector.shape_cast %13 : vector<1x8x640xf32> to vector<8x640xf32>
    %c0_19 = arith.constant 0 : index
    %c0_20 = arith.constant 0 : index
    %c0_21 = arith.constant 0 : index
    %15 = vector.load %arg2[%c0_19, %c0_20, %c0_21] : memref<8x8x128xf32, #tpu.memory_space<vmem>>, vector<1x8x128xf32>
    %16 = vector.shape_cast %15 : vector<1x8x128xf32> to vector<8x128xf32>
    %cst_22 = arith.constant dense<0.000000e+00> : vector<8x640xf32>
    %17 = tpu.matmul %12, %1, %cst_22 {dimension_numbers = #tpu.dot_dimension_numbers<[1], [0], [0], [1], [0, 0, 1, 1], [], []>} : vector<8x128xf32>, vector<128x640xf32>, vector<8x640xf32> -> vector<8x640xf32>
    %18 = vector.broadcast %4 : vector<1x640xf32> to vector<8x640xf32>
    %19 = arith.addf %17, %18 : vector<8x640xf32>
    %20 = vector.extract_strided_slice %14 {offsets = [0, 0], sizes = [8, 256], strides = [1, 1]} : vector<8x640xf32> to vector<8x256xf32>
    %21 = vector.extract_strided_slice %19 {offsets = [0, 0], sizes = [8, 256], strides = [1, 1]} : vector<8x640xf32> to vector<8x256xf32>
    %22 = arith.addf %20, %21 : vector<8x256xf32>
    %23 = vector.extract_strided_slice %22 {offsets = [0, 0], sizes = [8, 128], strides = [1, 1]} : vector<8x256xf32> to vector<8x128xf32>
    %24 = vector.extract_strided_slice %22 {offsets = [0, 128], sizes = [8, 128], strides = [1, 1]} : vector<8x256xf32> to vector<8x128xf32>
    %cst_23 = arith.constant 5.000000e-01 : f32
    %25 = vector.broadcast %cst_23 : f32 to vector<8x128xf32>
    %26 = arith.mulf %25, %24 : vector<8x128xf32>
    %27 = math.exp %26 : vector<8x128xf32>
    %28 = arith.mulf %16, %27 : vector<8x128xf32>
    %29 = arith.addf %23, %28 : vector<8x128xf32>
    %cst_24 = arith.constant dense<0.000000e+00> : vector<8x384xf32>
    %30 = tpu.matmul %29, %2, %cst_24 {dimension_numbers = #tpu.dot_dimension_numbers<[1], [0], [0], [1], [0, 0, 1, 1], [], []>} : vector<8x128xf32>, vector<128x384xf32>, vector<8x384xf32> -> vector<8x384xf32>
    %31 = vector.extract_strided_slice %14 {offsets = [0, 256], sizes = [8, 256], strides = [1, 1]} : vector<8x640xf32> to vector<8x256xf32>
    %32 = vector.extract_strided_slice %19 {offsets = [0, 256], sizes = [8, 256], strides = [1, 1]} : vector<8x640xf32> to vector<8x256xf32>
    %33 = arith.addf %31, %32 : vector<8x256xf32>
    %34 = vector.extract_strided_slice %30 {offsets = [0, 0], sizes = [8, 256], strides = [1, 1]} : vector<8x384xf32> to vector<8x256xf32>
    %35 = arith.addf %33, %34 : vector<8x256xf32>
    %36 = arith.negf %35 : vector<8x256xf32>
    %37 = math.exp %36 : vector<8x256xf32>
    %cst_25 = arith.constant 1.000000e+00 : f32
    %38 = vector.broadcast %cst_25 : f32 to vector<8x256xf32>
    %39 = arith.addf %38, %37 : vector<8x256xf32>
    %40 = arith.divf %38, %39 : vector<8x256xf32>
    %41 = vector.extract_strided_slice %40 {offsets = [0, 0], sizes = [8, 128], strides = [1, 1]} : vector<8x256xf32> to vector<8x128xf32>
    %42 = vector.extract_strided_slice %40 {offsets = [0, 128], sizes = [8, 128], strides = [1, 1]} : vector<8x256xf32> to vector<8x128xf32>
    %43 = vector.extract_strided_slice %14 {offsets = [0, 512], sizes = [8, 128], strides = [1, 1]} : vector<8x640xf32> to vector<8x128xf32>
    %44 = vector.extract_strided_slice %30 {offsets = [0, 256], sizes = [8, 128], strides = [1, 1]} : vector<8x384xf32> to vector<8x128xf32>
    %45 = arith.addf %43, %44 : vector<8x128xf32>
    %46 = vector.extract_strided_slice %19 {offsets = [0, 512], sizes = [8, 128], strides = [1, 1]} : vector<8x640xf32> to vector<8x128xf32>
    %47 = arith.mulf %41, %46 : vector<8x128xf32>
    %48 = arith.addf %45, %47 : vector<8x128xf32>
    %49 = math.tanh %48 : vector<8x128xf32>
    %cst_26 = arith.constant 1.000000e+00 : f32
    %50 = vector.broadcast %cst_26 : f32 to vector<8x128xf32>
    %51 = arith.subf %50, %42 : vector<8x128xf32>
    %52 = arith.mulf %51, %49 : vector<8x128xf32>
    %53 = arith.mulf %42, %12 : vector<8x128xf32>
    %54 = arith.addf %52, %53 : vector<8x128xf32>
    %c1 = arith.constant 1 : index
    %c0_27 = arith.constant 0 : index
    %c0_28 = arith.constant 0 : index
    %55 = vector.load %arg9[%c1, %c0_27, %c0_28] : memref<8x8x640xf32, #tpu.memory_space<vmem>>, vector<1x8x640xf32>
    %56 = vector.shape_cast %55 : vector<1x8x640xf32> to vector<8x640xf32>
    %c1_29 = arith.constant 1 : index
    %c0_30 = arith.constant 0 : index
    %c0_31 = arith.constant 0 : index
    %57 = vector.load %arg2[%c1_29, %c0_30, %c0_31] : memref<8x8x128xf32, #tpu.memory_space<vmem>>, vector<1x8x128xf32>
    %58 = vector.shape_cast %57 : vector<1x8x128xf32> to vector<8x128xf32>
    %cst_32 = arith.constant dense<0.000000e+00> : vector<8x640xf32>
    %59 = tpu.matmul %54, %1, %cst_32 {dimension_numbers = #tpu.dot_dimension_numbers<[1], [0], [0], [1], [0, 0, 1, 1], [], []>} : vector<8x128xf32>, vector<128x640xf32>, vector<8x640xf32> -> vector<8x640xf32>
    %60 = vector.broadcast %4 : vector<1x640xf32> to vector<8x640xf32>
    %61 = arith.addf %59, %60 : vector<8x640xf32>
    %62 = vector.extract_strided_slice %56 {offsets = [0, 0], sizes = [8, 256], strides = [1, 1]} : vector<8x640xf32> to vector<8x256xf32>
    %63 = vector.extract_strided_slice %61 {offsets = [0, 0], sizes = [8, 256], strides = [1, 1]} : vector<8x640xf32> to vector<8x256xf32>
    %64 = arith.addf %62, %63 : vector<8x256xf32>
    %65 = vector.extract_strided_slice %64 {offsets = [0, 0], sizes = [8, 128], strides = [1, 1]} : vector<8x256xf32> to vector<8x128xf32>
    %66 = vector.extract_strided_slice %64 {offsets = [0, 128], sizes = [8, 128], strides = [1, 1]} : vector<8x256xf32> to vector<8x128xf32>
    %cst_33 = arith.constant 5.000000e-01 : f32
    %67 = vector.broadcast %cst_33 : f32 to vector<8x128xf32>
    %68 = arith.mulf %67, %66 : vector<8x128xf32>
    %69 = math.exp %68 : vector<8x128xf32>
    %70 = arith.mulf %58, %69 : vector<8x128xf32>
    %71 = arith.addf %65, %70 : vector<8x128xf32>
    %cst_34 = arith.constant dense<0.000000e+00> : vector<8x384xf32>
    %72 = tpu.matmul %71, %2, %cst_34 {dimension_numbers = #tpu.dot_dimension_numbers<[1], [0], [0], [1], [0, 0, 1, 1], [], []>} : vector<8x128xf32>, vector<128x384xf32>, vector<8x384xf32> -> vector<8x384xf32>
    %73 = vector.extract_strided_slice %56 {offsets = [0, 256], sizes = [8, 256], strides = [1, 1]} : vector<8x640xf32> to vector<8x256xf32>
    %74 = vector.extract_strided_slice %61 {offsets = [0, 256], sizes = [8, 256], strides = [1, 1]} : vector<8x640xf32> to vector<8x256xf32>
    %75 = arith.addf %73, %74 : vector<8x256xf32>
    %76 = vector.extract_strided_slice %72 {offsets = [0, 0], sizes = [8, 256], strides = [1, 1]} : vector<8x384xf32> to vector<8x256xf32>
    %77 = arith.addf %75, %76 : vector<8x256xf32>
    %78 = arith.negf %77 : vector<8x256xf32>
    %79 = math.exp %78 : vector<8x256xf32>
    %cst_35 = arith.constant 1.000000e+00 : f32
    %80 = vector.broadcast %cst_35 : f32 to vector<8x256xf32>
    %81 = arith.addf %80, %79 : vector<8x256xf32>
    %82 = arith.divf %80, %81 : vector<8x256xf32>
    %83 = vector.extract_strided_slice %82 {offsets = [0, 0], sizes = [8, 128], strides = [1, 1]} : vector<8x256xf32> to vector<8x128xf32>
    %84 = vector.extract_strided_slice %82 {offsets = [0, 128], sizes = [8, 128], strides = [1, 1]} : vector<8x256xf32> to vector<8x128xf32>
    %85 = vector.extract_strided_slice %56 {offsets = [0, 512], sizes = [8, 128], strides = [1, 1]} : vector<8x640xf32> to vector<8x128xf32>
    %86 = vector.extract_strided_slice %72 {offsets = [0, 256], sizes = [8, 128], strides = [1, 1]} : vector<8x384xf32> to vector<8x128xf32>
    %87 = arith.addf %85, %86 : vector<8x128xf32>
    %88 = vector.extract_strided_slice %61 {offsets = [0, 512], sizes = [8, 128], strides = [1, 1]} : vector<8x640xf32> to vector<8x128xf32>
    %89 = arith.mulf %83, %88 : vector<8x128xf32>
    %90 = arith.addf %87, %89 : vector<8x128xf32>
    %91 = math.tanh %90 : vector<8x128xf32>
    %cst_36 = arith.constant 1.000000e+00 : f32
    %92 = vector.broadcast %cst_36 : f32 to vector<8x128xf32>
    %93 = arith.subf %92, %84 : vector<8x128xf32>
    %94 = arith.mulf %93, %91 : vector<8x128xf32>
    %95 = arith.mulf %84, %54 : vector<8x128xf32>
    %96 = arith.addf %94, %95 : vector<8x128xf32>
    %c2 = arith.constant 2 : index
    %c0_37 = arith.constant 0 : index
    %c0_38 = arith.constant 0 : index
    %97 = vector.load %arg9[%c2, %c0_37, %c0_38] : memref<8x8x640xf32, #tpu.memory_space<vmem>>, vector<1x8x640xf32>
    %98 = vector.shape_cast %97 : vector<1x8x640xf32> to vector<8x640xf32>
    %c2_39 = arith.constant 2 : index
    %c0_40 = arith.constant 0 : index
    %c0_41 = arith.constant 0 : index
    %99 = vector.load %arg2[%c2_39, %c0_40, %c0_41] : memref<8x8x128xf32, #tpu.memory_space<vmem>>, vector<1x8x128xf32>
    %100 = vector.shape_cast %99 : vector<1x8x128xf32> to vector<8x128xf32>
    %cst_42 = arith.constant dense<0.000000e+00> : vector<8x640xf32>
    %101 = tpu.matmul %96, %1, %cst_42 {dimension_numbers = #tpu.dot_dimension_numbers<[1], [0], [0], [1], [0, 0, 1, 1], [], []>} : vector<8x128xf32>, vector<128x640xf32>, vector<8x640xf32> -> vector<8x640xf32>
    %102 = vector.broadcast %4 : vector<1x640xf32> to vector<8x640xf32>
    %103 = arith.addf %101, %102 : vector<8x640xf32>
    %104 = vector.extract_strided_slice %98 {offsets = [0, 0], sizes = [8, 256], strides = [1, 1]} : vector<8x640xf32> to vector<8x256xf32>
    %105 = vector.extract_strided_slice %103 {offsets = [0, 0], sizes = [8, 256], strides = [1, 1]} : vector<8x640xf32> to vector<8x256xf32>
    %106 = arith.addf %104, %105 : vector<8x256xf32>
    %107 = vector.extract_strided_slice %106 {offsets = [0, 0], sizes = [8, 128], strides = [1, 1]} : vector<8x256xf32> to vector<8x128xf32>
    %108 = vector.extract_strided_slice %106 {offsets = [0, 128], sizes = [8, 128], strides = [1, 1]} : vector<8x256xf32> to vector<8x128xf32>
    %cst_43 = arith.constant 5.000000e-01 : f32
    %109 = vector.broadcast %cst_43 : f32 to vector<8x128xf32>
    %110 = arith.mulf %109, %108 : vector<8x128xf32>
    %111 = math.exp %110 : vector<8x128xf32>
    %112 = arith.mulf %100, %111 : vector<8x128xf32>
    %113 = arith.addf %107, %112 : vector<8x128xf32>
    %cst_44 = arith.constant dense<0.000000e+00> : vector<8x384xf32>
    %114 = tpu.matmul %113, %2, %cst_44 {dimension_numbers = #tpu.dot_dimension_numbers<[1], [0], [0], [1], [0, 0, 1, 1], [], []>} : vector<8x128xf32>, vector<128x384xf32>, vector<8x384xf32> -> vector<8x384xf32>
    %115 = vector.extract_strided_slice %98 {offsets = [0, 256], sizes = [8, 256], strides = [1, 1]} : vector<8x640xf32> to vector<8x256xf32>
    %116 = vector.extract_strided_slice %103 {offsets = [0, 256], sizes = [8, 256], strides = [1, 1]} : vector<8x640xf32> to vector<8x256xf32>
    %117 = arith.addf %115, %116 : vector<8x256xf32>
    %118 = vector.extract_strided_slice %114 {offsets = [0, 0], sizes = [8, 256], strides = [1, 1]} : vector<8x384xf32> to vector<8x256xf32>
    %119 = arith.addf %117, %118 : vector<8x256xf32>
    %120 = arith.negf %119 : vector<8x256xf32>
    %121 = math.exp %120 : vector<8x256xf32>
    %cst_45 = arith.constant 1.000000e+00 : f32
    %122 = vector.broadcast %cst_45 : f32 to vector<8x256xf32>
    %123 = arith.addf %122, %121 : vector<8x256xf32>
    %124 = arith.divf %122, %123 : vector<8x256xf32>
    %125 = vector.extract_strided_slice %124 {offsets = [0, 0], sizes = [8, 128], strides = [1, 1]} : vector<8x256xf32> to vector<8x128xf32>
    %126 = vector.extract_strided_slice %124 {offsets = [0, 128], sizes = [8, 128], strides = [1, 1]} : vector<8x256xf32> to vector<8x128xf32>
    %127 = vector.extract_strided_slice %98 {offsets = [0, 512], sizes = [8, 128], strides = [1, 1]} : vector<8x640xf32> to vector<8x128xf32>
    %128 = vector.extract_strided_slice %114 {offsets = [0, 256], sizes = [8, 128], strides = [1, 1]} : vector<8x384xf32> to vector<8x128xf32>
    %129 = arith.addf %127, %128 : vector<8x128xf32>
    %130 = vector.extract_strided_slice %103 {offsets = [0, 512], sizes = [8, 128], strides = [1, 1]} : vector<8x640xf32> to vector<8x128xf32>
    %131 = arith.mulf %125, %130 : vector<8x128xf32>
    %132 = arith.addf %129, %131 : vector<8x128xf32>
    %133 = math.tanh %132 : vector<8x128xf32>
    %cst_46 = arith.constant 1.000000e+00 : f32
    %134 = vector.broadcast %cst_46 : f32 to vector<8x128xf32>
    %135 = arith.subf %134, %126 : vector<8x128xf32>
    %136 = arith.mulf %135, %133 : vector<8x128xf32>
    %137 = arith.mulf %126, %96 : vector<8x128xf32>
    %138 = arith.addf %136, %137 : vector<8x128xf32>
    %c3 = arith.constant 3 : index
    %c0_47 = arith.constant 0 : index
    %c0_48 = arith.constant 0 : index
    %139 = vector.load %arg9[%c3, %c0_47, %c0_48] : memref<8x8x640xf32, #tpu.memory_space<vmem>>, vector<1x8x640xf32>
    %140 = vector.shape_cast %139 : vector<1x8x640xf32> to vector<8x640xf32>
    %c3_49 = arith.constant 3 : index
    %c0_50 = arith.constant 0 : index
    %c0_51 = arith.constant 0 : index
    %141 = vector.load %arg2[%c3_49, %c0_50, %c0_51] : memref<8x8x128xf32, #tpu.memory_space<vmem>>, vector<1x8x128xf32>
    %142 = vector.shape_cast %141 : vector<1x8x128xf32> to vector<8x128xf32>
    %cst_52 = arith.constant dense<0.000000e+00> : vector<8x640xf32>
    %143 = tpu.matmul %138, %1, %cst_52 {dimension_numbers = #tpu.dot_dimension_numbers<[1], [0], [0], [1], [0, 0, 1, 1], [], []>} : vector<8x128xf32>, vector<128x640xf32>, vector<8x640xf32> -> vector<8x640xf32>
    %144 = vector.broadcast %4 : vector<1x640xf32> to vector<8x640xf32>
    %145 = arith.addf %143, %144 : vector<8x640xf32>
    %146 = vector.extract_strided_slice %140 {offsets = [0, 0], sizes = [8, 256], strides = [1, 1]} : vector<8x640xf32> to vector<8x256xf32>
    %147 = vector.extract_strided_slice %145 {offsets = [0, 0], sizes = [8, 256], strides = [1, 1]} : vector<8x640xf32> to vector<8x256xf32>
    %148 = arith.addf %146, %147 : vector<8x256xf32>
    %149 = vector.extract_strided_slice %148 {offsets = [0, 0], sizes = [8, 128], strides = [1, 1]} : vector<8x256xf32> to vector<8x128xf32>
    %150 = vector.extract_strided_slice %148 {offsets = [0, 128], sizes = [8, 128], strides = [1, 1]} : vector<8x256xf32> to vector<8x128xf32>
    %cst_53 = arith.constant 5.000000e-01 : f32
    %151 = vector.broadcast %cst_53 : f32 to vector<8x128xf32>
    %152 = arith.mulf %151, %150 : vector<8x128xf32>
    %153 = math.exp %152 : vector<8x128xf32>
    %154 = arith.mulf %142, %153 : vector<8x128xf32>
    %155 = arith.addf %149, %154 : vector<8x128xf32>
    %cst_54 = arith.constant dense<0.000000e+00> : vector<8x384xf32>
    %156 = tpu.matmul %155, %2, %cst_54 {dimension_numbers = #tpu.dot_dimension_numbers<[1], [0], [0], [1], [0, 0, 1, 1], [], []>} : vector<8x128xf32>, vector<128x384xf32>, vector<8x384xf32> -> vector<8x384xf32>
    %157 = vector.extract_strided_slice %140 {offsets = [0, 256], sizes = [8, 256], strides = [1, 1]} : vector<8x640xf32> to vector<8x256xf32>
    %158 = vector.extract_strided_slice %145 {offsets = [0, 256], sizes = [8, 256], strides = [1, 1]} : vector<8x640xf32> to vector<8x256xf32>
    %159 = arith.addf %157, %158 : vector<8x256xf32>
    %160 = vector.extract_strided_slice %156 {offsets = [0, 0], sizes = [8, 256], strides = [1, 1]} : vector<8x384xf32> to vector<8x256xf32>
    %161 = arith.addf %159, %160 : vector<8x256xf32>
    %162 = arith.negf %161 : vector<8x256xf32>
    %163 = math.exp %162 : vector<8x256xf32>
    %cst_55 = arith.constant 1.000000e+00 : f32
    %164 = vector.broadcast %cst_55 : f32 to vector<8x256xf32>
    %165 = arith.addf %164, %163 : vector<8x256xf32>
    %166 = arith.divf %164, %165 : vector<8x256xf32>
    %167 = vector.extract_strided_slice %166 {offsets = [0, 0], sizes = [8, 128], strides = [1, 1]} : vector<8x256xf32> to vector<8x128xf32>
    %168 = vector.extract_strided_slice %166 {offsets = [0, 128], sizes = [8, 128], strides = [1, 1]} : vector<8x256xf32> to vector<8x128xf32>
    %169 = vector.extract_strided_slice %140 {offsets = [0, 512], sizes = [8, 128], strides = [1, 1]} : vector<8x640xf32> to vector<8x128xf32>
    %170 = vector.extract_strided_slice %156 {offsets = [0, 256], sizes = [8, 128], strides = [1, 1]} : vector<8x384xf32> to vector<8x128xf32>
    %171 = arith.addf %169, %170 : vector<8x128xf32>
    %172 = vector.extract_strided_slice %145 {offsets = [0, 512], sizes = [8, 128], strides = [1, 1]} : vector<8x640xf32> to vector<8x128xf32>
    %173 = arith.mulf %167, %172 : vector<8x128xf32>
    %174 = arith.addf %171, %173 : vector<8x128xf32>
    %175 = math.tanh %174 : vector<8x128xf32>
    %cst_56 = arith.constant 1.000000e+00 : f32
    %176 = vector.broadcast %cst_56 : f32 to vector<8x128xf32>
    %177 = arith.subf %176, %168 : vector<8x128xf32>
    %178 = arith.mulf %177, %175 : vector<8x128xf32>
    %179 = arith.mulf %168, %138 : vector<8x128xf32>
    %180 = arith.addf %178, %179 : vector<8x128xf32>
    %c4 = arith.constant 4 : index
    %c0_57 = arith.constant 0 : index
    %c0_58 = arith.constant 0 : index
    %181 = vector.load %arg9[%c4, %c0_57, %c0_58] : memref<8x8x640xf32, #tpu.memory_space<vmem>>, vector<1x8x640xf32>
    %182 = vector.shape_cast %181 : vector<1x8x640xf32> to vector<8x640xf32>
    %c4_59 = arith.constant 4 : index
    %c0_60 = arith.constant 0 : index
    %c0_61 = arith.constant 0 : index
    %183 = vector.load %arg2[%c4_59, %c0_60, %c0_61] : memref<8x8x128xf32, #tpu.memory_space<vmem>>, vector<1x8x128xf32>
    %184 = vector.shape_cast %183 : vector<1x8x128xf32> to vector<8x128xf32>
    %cst_62 = arith.constant dense<0.000000e+00> : vector<8x640xf32>
    %185 = tpu.matmul %180, %1, %cst_62 {dimension_numbers = #tpu.dot_dimension_numbers<[1], [0], [0], [1], [0, 0, 1, 1], [], []>} : vector<8x128xf32>, vector<128x640xf32>, vector<8x640xf32> -> vector<8x640xf32>
    %186 = vector.broadcast %4 : vector<1x640xf32> to vector<8x640xf32>
    %187 = arith.addf %185, %186 : vector<8x640xf32>
    %188 = vector.extract_strided_slice %182 {offsets = [0, 0], sizes = [8, 256], strides = [1, 1]} : vector<8x640xf32> to vector<8x256xf32>
    %189 = vector.extract_strided_slice %187 {offsets = [0, 0], sizes = [8, 256], strides = [1, 1]} : vector<8x640xf32> to vector<8x256xf32>
    %190 = arith.addf %188, %189 : vector<8x256xf32>
    %191 = vector.extract_strided_slice %190 {offsets = [0, 0], sizes = [8, 128], strides = [1, 1]} : vector<8x256xf32> to vector<8x128xf32>
    %192 = vector.extract_strided_slice %190 {offsets = [0, 128], sizes = [8, 128], strides = [1, 1]} : vector<8x256xf32> to vector<8x128xf32>
    %cst_63 = arith.constant 5.000000e-01 : f32
    %193 = vector.broadcast %cst_63 : f32 to vector<8x128xf32>
    %194 = arith.mulf %193, %192 : vector<8x128xf32>
    %195 = math.exp %194 : vector<8x128xf32>
    %196 = arith.mulf %184, %195 : vector<8x128xf32>
    %197 = arith.addf %191, %196 : vector<8x128xf32>
    %cst_64 = arith.constant dense<0.000000e+00> : vector<8x384xf32>
    %198 = tpu.matmul %197, %2, %cst_64 {dimension_numbers = #tpu.dot_dimension_numbers<[1], [0], [0], [1], [0, 0, 1, 1], [], []>} : vector<8x128xf32>, vector<128x384xf32>, vector<8x384xf32> -> vector<8x384xf32>
    %199 = vector.extract_strided_slice %182 {offsets = [0, 256], sizes = [8, 256], strides = [1, 1]} : vector<8x640xf32> to vector<8x256xf32>
    %200 = vector.extract_strided_slice %187 {offsets = [0, 256], sizes = [8, 256], strides = [1, 1]} : vector<8x640xf32> to vector<8x256xf32>
    %201 = arith.addf %199, %200 : vector<8x256xf32>
    %202 = vector.extract_strided_slice %198 {offsets = [0, 0], sizes = [8, 256], strides = [1, 1]} : vector<8x384xf32> to vector<8x256xf32>
    %203 = arith.addf %201, %202 : vector<8x256xf32>
    %204 = arith.negf %203 : vector<8x256xf32>
    %205 = math.exp %204 : vector<8x256xf32>
    %cst_65 = arith.constant 1.000000e+00 : f32
    %206 = vector.broadcast %cst_65 : f32 to vector<8x256xf32>
    %207 = arith.addf %206, %205 : vector<8x256xf32>
    %208 = arith.divf %206, %207 : vector<8x256xf32>
    %209 = vector.extract_strided_slice %208 {offsets = [0, 0], sizes = [8, 128], strides = [1, 1]} : vector<8x256xf32> to vector<8x128xf32>
    %210 = vector.extract_strided_slice %208 {offsets = [0, 128], sizes = [8, 128], strides = [1, 1]} : vector<8x256xf32> to vector<8x128xf32>
    %211 = vector.extract_strided_slice %182 {offsets = [0, 512], sizes = [8, 128], strides = [1, 1]} : vector<8x640xf32> to vector<8x128xf32>
    %212 = vector.extract_strided_slice %198 {offsets = [0, 256], sizes = [8, 128], strides = [1, 1]} : vector<8x384xf32> to vector<8x128xf32>
    %213 = arith.addf %211, %212 : vector<8x128xf32>
    %214 = vector.extract_strided_slice %187 {offsets = [0, 512], sizes = [8, 128], strides = [1, 1]} : vector<8x640xf32> to vector<8x128xf32>
    %215 = arith.mulf %209, %214 : vector<8x128xf32>
    %216 = arith.addf %213, %215 : vector<8x128xf32>
    %217 = math.tanh %216 : vector<8x128xf32>
    %cst_66 = arith.constant 1.000000e+00 : f32
    %218 = vector.broadcast %cst_66 : f32 to vector<8x128xf32>
    %219 = arith.subf %218, %210 : vector<8x128xf32>
    %220 = arith.mulf %219, %217 : vector<8x128xf32>
    %221 = arith.mulf %210, %180 : vector<8x128xf32>
    %222 = arith.addf %220, %221 : vector<8x128xf32>
    %c5 = arith.constant 5 : index
    %c0_67 = arith.constant 0 : index
    %c0_68 = arith.constant 0 : index
    %223 = vector.load %arg9[%c5, %c0_67, %c0_68] : memref<8x8x640xf32, #tpu.memory_space<vmem>>, vector<1x8x640xf32>
    %224 = vector.shape_cast %223 : vector<1x8x640xf32> to vector<8x640xf32>
    %c5_69 = arith.constant 5 : index
    %c0_70 = arith.constant 0 : index
    %c0_71 = arith.constant 0 : index
    %225 = vector.load %arg2[%c5_69, %c0_70, %c0_71] : memref<8x8x128xf32, #tpu.memory_space<vmem>>, vector<1x8x128xf32>
    %226 = vector.shape_cast %225 : vector<1x8x128xf32> to vector<8x128xf32>
    %cst_72 = arith.constant dense<0.000000e+00> : vector<8x640xf32>
    %227 = tpu.matmul %222, %1, %cst_72 {dimension_numbers = #tpu.dot_dimension_numbers<[1], [0], [0], [1], [0, 0, 1, 1], [], []>} : vector<8x128xf32>, vector<128x640xf32>, vector<8x640xf32> -> vector<8x640xf32>
    %228 = vector.broadcast %4 : vector<1x640xf32> to vector<8x640xf32>
    %229 = arith.addf %227, %228 : vector<8x640xf32>
    %230 = vector.extract_strided_slice %224 {offsets = [0, 0], sizes = [8, 256], strides = [1, 1]} : vector<8x640xf32> to vector<8x256xf32>
    %231 = vector.extract_strided_slice %229 {offsets = [0, 0], sizes = [8, 256], strides = [1, 1]} : vector<8x640xf32> to vector<8x256xf32>
    %232 = arith.addf %230, %231 : vector<8x256xf32>
    %233 = vector.extract_strided_slice %232 {offsets = [0, 0], sizes = [8, 128], strides = [1, 1]} : vector<8x256xf32> to vector<8x128xf32>
    %234 = vector.extract_strided_slice %232 {offsets = [0, 128], sizes = [8, 128], strides = [1, 1]} : vector<8x256xf32> to vector<8x128xf32>
    %cst_73 = arith.constant 5.000000e-01 : f32
    %235 = vector.broadcast %cst_73 : f32 to vector<8x128xf32>
    %236 = arith.mulf %235, %234 : vector<8x128xf32>
    %237 = math.exp %236 : vector<8x128xf32>
    %238 = arith.mulf %226, %237 : vector<8x128xf32>
    %239 = arith.addf %233, %238 : vector<8x128xf32>
    %cst_74 = arith.constant dense<0.000000e+00> : vector<8x384xf32>
    %240 = tpu.matmul %239, %2, %cst_74 {dimension_numbers = #tpu.dot_dimension_numbers<[1], [0], [0], [1], [0, 0, 1, 1], [], []>} : vector<8x128xf32>, vector<128x384xf32>, vector<8x384xf32> -> vector<8x384xf32>
    %241 = vector.extract_strided_slice %224 {offsets = [0, 256], sizes = [8, 256], strides = [1, 1]} : vector<8x640xf32> to vector<8x256xf32>
    %242 = vector.extract_strided_slice %229 {offsets = [0, 256], sizes = [8, 256], strides = [1, 1]} : vector<8x640xf32> to vector<8x256xf32>
    %243 = arith.addf %241, %242 : vector<8x256xf32>
    %244 = vector.extract_strided_slice %240 {offsets = [0, 0], sizes = [8, 256], strides = [1, 1]} : vector<8x384xf32> to vector<8x256xf32>
    %245 = arith.addf %243, %244 : vector<8x256xf32>
    %246 = arith.negf %245 : vector<8x256xf32>
    %247 = math.exp %246 : vector<8x256xf32>
    %cst_75 = arith.constant 1.000000e+00 : f32
    %248 = vector.broadcast %cst_75 : f32 to vector<8x256xf32>
    %249 = arith.addf %248, %247 : vector<8x256xf32>
    %250 = arith.divf %248, %249 : vector<8x256xf32>
    %251 = vector.extract_strided_slice %250 {offsets = [0, 0], sizes = [8, 128], strides = [1, 1]} : vector<8x256xf32> to vector<8x128xf32>
    %252 = vector.extract_strided_slice %250 {offsets = [0, 128], sizes = [8, 128], strides = [1, 1]} : vector<8x256xf32> to vector<8x128xf32>
    %253 = vector.extract_strided_slice %224 {offsets = [0, 512], sizes = [8, 128], strides = [1, 1]} : vector<8x640xf32> to vector<8x128xf32>
    %254 = vector.extract_strided_slice %240 {offsets = [0, 256], sizes = [8, 128], strides = [1, 1]} : vector<8x384xf32> to vector<8x128xf32>
    %255 = arith.addf %253, %254 : vector<8x128xf32>
    %256 = vector.extract_strided_slice %229 {offsets = [0, 512], sizes = [8, 128], strides = [1, 1]} : vector<8x640xf32> to vector<8x128xf32>
    %257 = arith.mulf %251, %256 : vector<8x128xf32>
    %258 = arith.addf %255, %257 : vector<8x128xf32>
    %259 = math.tanh %258 : vector<8x128xf32>
    %cst_76 = arith.constant 1.000000e+00 : f32
    %260 = vector.broadcast %cst_76 : f32 to vector<8x128xf32>
    %261 = arith.subf %260, %252 : vector<8x128xf32>
    %262 = arith.mulf %261, %259 : vector<8x128xf32>
    %263 = arith.mulf %252, %222 : vector<8x128xf32>
    %264 = arith.addf %262, %263 : vector<8x128xf32>
    %c6 = arith.constant 6 : index
    %c0_77 = arith.constant 0 : index
    %c0_78 = arith.constant 0 : index
    %265 = vector.load %arg9[%c6, %c0_77, %c0_78] : memref<8x8x640xf32, #tpu.memory_space<vmem>>, vector<1x8x640xf32>
    %266 = vector.shape_cast %265 : vector<1x8x640xf32> to vector<8x640xf32>
    %c6_79 = arith.constant 6 : index
    %c0_80 = arith.constant 0 : index
    %c0_81 = arith.constant 0 : index
    %267 = vector.load %arg2[%c6_79, %c0_80, %c0_81] : memref<8x8x128xf32, #tpu.memory_space<vmem>>, vector<1x8x128xf32>
    %268 = vector.shape_cast %267 : vector<1x8x128xf32> to vector<8x128xf32>
    %cst_82 = arith.constant dense<0.000000e+00> : vector<8x640xf32>
    %269 = tpu.matmul %264, %1, %cst_82 {dimension_numbers = #tpu.dot_dimension_numbers<[1], [0], [0], [1], [0, 0, 1, 1], [], []>} : vector<8x128xf32>, vector<128x640xf32>, vector<8x640xf32> -> vector<8x640xf32>
    %270 = vector.broadcast %4 : vector<1x640xf32> to vector<8x640xf32>
    %271 = arith.addf %269, %270 : vector<8x640xf32>
    %272 = vector.extract_strided_slice %266 {offsets = [0, 0], sizes = [8, 256], strides = [1, 1]} : vector<8x640xf32> to vector<8x256xf32>
    %273 = vector.extract_strided_slice %271 {offsets = [0, 0], sizes = [8, 256], strides = [1, 1]} : vector<8x640xf32> to vector<8x256xf32>
    %274 = arith.addf %272, %273 : vector<8x256xf32>
    %275 = vector.extract_strided_slice %274 {offsets = [0, 0], sizes = [8, 128], strides = [1, 1]} : vector<8x256xf32> to vector<8x128xf32>
    %276 = vector.extract_strided_slice %274 {offsets = [0, 128], sizes = [8, 128], strides = [1, 1]} : vector<8x256xf32> to vector<8x128xf32>
    %cst_83 = arith.constant 5.000000e-01 : f32
    %277 = vector.broadcast %cst_83 : f32 to vector<8x128xf32>
    %278 = arith.mulf %277, %276 : vector<8x128xf32>
    %279 = math.exp %278 : vector<8x128xf32>
    %280 = arith.mulf %268, %279 : vector<8x128xf32>
    %281 = arith.addf %275, %280 : vector<8x128xf32>
    %cst_84 = arith.constant dense<0.000000e+00> : vector<8x384xf32>
    %282 = tpu.matmul %281, %2, %cst_84 {dimension_numbers = #tpu.dot_dimension_numbers<[1], [0], [0], [1], [0, 0, 1, 1], [], []>} : vector<8x128xf32>, vector<128x384xf32>, vector<8x384xf32> -> vector<8x384xf32>
    %283 = vector.extract_strided_slice %266 {offsets = [0, 256], sizes = [8, 256], strides = [1, 1]} : vector<8x640xf32> to vector<8x256xf32>
    %284 = vector.extract_strided_slice %271 {offsets = [0, 256], sizes = [8, 256], strides = [1, 1]} : vector<8x640xf32> to vector<8x256xf32>
    %285 = arith.addf %283, %284 : vector<8x256xf32>
    %286 = vector.extract_strided_slice %282 {offsets = [0, 0], sizes = [8, 256], strides = [1, 1]} : vector<8x384xf32> to vector<8x256xf32>
    %287 = arith.addf %285, %286 : vector<8x256xf32>
    %288 = arith.negf %287 : vector<8x256xf32>
    %289 = math.exp %288 : vector<8x256xf32>
    %cst_85 = arith.constant 1.000000e+00 : f32
    %290 = vector.broadcast %cst_85 : f32 to vector<8x256xf32>
    %291 = arith.addf %290, %289 : vector<8x256xf32>
    %292 = arith.divf %290, %291 : vector<8x256xf32>
    %293 = vector.extract_strided_slice %292 {offsets = [0, 0], sizes = [8, 128], strides = [1, 1]} : vector<8x256xf32> to vector<8x128xf32>
    %294 = vector.extract_strided_slice %292 {offsets = [0, 128], sizes = [8, 128], strides = [1, 1]} : vector<8x256xf32> to vector<8x128xf32>
    %295 = vector.extract_strided_slice %266 {offsets = [0, 512], sizes = [8, 128], strides = [1, 1]} : vector<8x640xf32> to vector<8x128xf32>
    %296 = vector.extract_strided_slice %282 {offsets = [0, 256], sizes = [8, 128], strides = [1, 1]} : vector<8x384xf32> to vector<8x128xf32>
    %297 = arith.addf %295, %296 : vector<8x128xf32>
    %298 = vector.extract_strided_slice %271 {offsets = [0, 512], sizes = [8, 128], strides = [1, 1]} : vector<8x640xf32> to vector<8x128xf32>
    %299 = arith.mulf %293, %298 : vector<8x128xf32>
    %300 = arith.addf %297, %299 : vector<8x128xf32>
    %301 = math.tanh %300 : vector<8x128xf32>
    %cst_86 = arith.constant 1.000000e+00 : f32
    %302 = vector.broadcast %cst_86 : f32 to vector<8x128xf32>
    %303 = arith.subf %302, %294 : vector<8x128xf32>
    %304 = arith.mulf %303, %301 : vector<8x128xf32>
    %305 = arith.mulf %294, %264 : vector<8x128xf32>
    %306 = arith.addf %304, %305 : vector<8x128xf32>
    %c7 = arith.constant 7 : index
    %c0_87 = arith.constant 0 : index
    %c0_88 = arith.constant 0 : index
    %307 = vector.load %arg9[%c7, %c0_87, %c0_88] : memref<8x8x640xf32, #tpu.memory_space<vmem>>, vector<1x8x640xf32>
    %308 = vector.shape_cast %307 : vector<1x8x640xf32> to vector<8x640xf32>
    %c7_89 = arith.constant 7 : index
    %c0_90 = arith.constant 0 : index
    %c0_91 = arith.constant 0 : index
    %309 = vector.load %arg2[%c7_89, %c0_90, %c0_91] : memref<8x8x128xf32, #tpu.memory_space<vmem>>, vector<1x8x128xf32>
    %310 = vector.shape_cast %309 : vector<1x8x128xf32> to vector<8x128xf32>
    %cst_92 = arith.constant dense<0.000000e+00> : vector<8x640xf32>
    %311 = tpu.matmul %306, %1, %cst_92 {dimension_numbers = #tpu.dot_dimension_numbers<[1], [0], [0], [1], [0, 0, 1, 1], [], []>} : vector<8x128xf32>, vector<128x640xf32>, vector<8x640xf32> -> vector<8x640xf32>
    %312 = vector.broadcast %4 : vector<1x640xf32> to vector<8x640xf32>
    %313 = arith.addf %311, %312 : vector<8x640xf32>
    %314 = vector.extract_strided_slice %308 {offsets = [0, 0], sizes = [8, 256], strides = [1, 1]} : vector<8x640xf32> to vector<8x256xf32>
    %315 = vector.extract_strided_slice %313 {offsets = [0, 0], sizes = [8, 256], strides = [1, 1]} : vector<8x640xf32> to vector<8x256xf32>
    %316 = arith.addf %314, %315 : vector<8x256xf32>
    %317 = vector.extract_strided_slice %316 {offsets = [0, 0], sizes = [8, 128], strides = [1, 1]} : vector<8x256xf32> to vector<8x128xf32>
    %318 = vector.extract_strided_slice %316 {offsets = [0, 128], sizes = [8, 128], strides = [1, 1]} : vector<8x256xf32> to vector<8x128xf32>
    %cst_93 = arith.constant 5.000000e-01 : f32
    %319 = vector.broadcast %cst_93 : f32 to vector<8x128xf32>
    %320 = arith.mulf %319, %318 : vector<8x128xf32>
    %321 = math.exp %320 : vector<8x128xf32>
    %322 = arith.mulf %310, %321 : vector<8x128xf32>
    %323 = arith.addf %317, %322 : vector<8x128xf32>
    %cst_94 = arith.constant dense<0.000000e+00> : vector<8x384xf32>
    %324 = tpu.matmul %323, %2, %cst_94 {dimension_numbers = #tpu.dot_dimension_numbers<[1], [0], [0], [1], [0, 0, 1, 1], [], []>} : vector<8x128xf32>, vector<128x384xf32>, vector<8x384xf32> -> vector<8x384xf32>
    %325 = vector.extract_strided_slice %308 {offsets = [0, 256], sizes = [8, 256], strides = [1, 1]} : vector<8x640xf32> to vector<8x256xf32>
    %326 = vector.extract_strided_slice %313 {offsets = [0, 256], sizes = [8, 256], strides = [1, 1]} : vector<8x640xf32> to vector<8x256xf32>
    %327 = arith.addf %325, %326 : vector<8x256xf32>
    %328 = vector.extract_strided_slice %324 {offsets = [0, 0], sizes = [8, 256], strides = [1, 1]} : vector<8x384xf32> to vector<8x256xf32>
    %329 = arith.addf %327, %328 : vector<8x256xf32>
    %330 = arith.negf %329 : vector<8x256xf32>
    %331 = math.exp %330 : vector<8x256xf32>
    %cst_95 = arith.constant 1.000000e+00 : f32
    %332 = vector.broadcast %cst_95 : f32 to vector<8x256xf32>
    %333 = arith.addf %332, %331 : vector<8x256xf32>
    %334 = arith.divf %332, %333 : vector<8x256xf32>
    %335 = vector.extract_strided_slice %334 {offsets = [0, 0], sizes = [8, 128], strides = [1, 1]} : vector<8x256xf32> to vector<8x128xf32>
    %336 = vector.extract_strided_slice %334 {offsets = [0, 128], sizes = [8, 128], strides = [1, 1]} : vector<8x256xf32> to vector<8x128xf32>
    %337 = vector.extract_strided_slice %308 {offsets = [0, 512], sizes = [8, 128], strides = [1, 1]} : vector<8x640xf32> to vector<8x128xf32>
    %338 = vector.extract_strided_slice %324 {offsets = [0, 256], sizes = [8, 128], strides = [1, 1]} : vector<8x384xf32> to vector<8x128xf32>
    %339 = arith.addf %337, %338 : vector<8x128xf32>
    %340 = vector.extract_strided_slice %313 {offsets = [0, 512], sizes = [8, 128], strides = [1, 1]} : vector<8x640xf32> to vector<8x128xf32>
    %341 = arith.mulf %335, %340 : vector<8x128xf32>
    %342 = arith.addf %339, %341 : vector<8x128xf32>
    %343 = math.tanh %342 : vector<8x128xf32>
    %cst_96 = arith.constant 1.000000e+00 : f32
    %344 = vector.broadcast %cst_96 : f32 to vector<8x128xf32>
    %345 = arith.subf %344, %336 : vector<8x128xf32>
    %346 = arith.mulf %345, %343 : vector<8x128xf32>
    %347 = arith.mulf %336, %306 : vector<8x128xf32>
    %348 = arith.addf %346, %347 : vector<8x128xf32>
    %c0_97 = arith.constant 0 : index
    %c0_98 = arith.constant 0 : index
    %349 = vector.load %arg8[%c0_97, %c0_98] : memref<8x128xf32, #tpu.memory_space<vmem>>, vector<8x128xf32>
    tpu.vector_store %arg8[%c0_97, %c0_98], %348 {strides = array<i32>} : memref<8x128xf32, #tpu.memory_space<vmem>>, vector<8x128xf32>,
    return
  }
  func.func @transform_0(%arg0: i32) -> (i32, i32, i32) {
    %c0_i32 = arith.constant 0 : i32
    %c0_i32_0 = arith.constant 0 : i32
    %c0_i32_1 = arith.constant 0 : i32
    return %c0_i32, %arg0, %c0_i32_0 : i32, i32, i32
  }
  func.func @transform_1(%arg0: i32) -> (i32, i32, i32) {
    %c0_i32 = arith.constant 0 : i32
    %c0_i32_0 = arith.constant 0 : i32
    %c0_i32_1 = arith.constant 0 : i32
    return %c0_i32, %arg0, %c0_i32_0 : i32, i32, i32
  }
  func.func @transform_2(%arg0: i32) -> (i32, i32) {
    %c0_i32 = arith.constant 0 : i32
    %c0_i32_0 = arith.constant 0 : i32
    %c0_i32_1 = arith.constant 0 : i32
    return %c0_i32, %c0_i32_0 : i32, i32
  }
  func.func @transform_3(%arg0: i32) -> (i32, i32) {
    %c0_i32 = arith.constant 0 : i32
    %c0_i32_0 = arith.constant 0 : i32
    %c0_i32_1 = arith.constant 0 : i32
    return %c0_i32, %c0_i32_0 : i32, i32
  }
  func.func @transform_4(%arg0: i32) -> (i32, i32) {
    %c0_i32 = arith.constant 0 : i32
    %c0_i32_0 = arith.constant 0 : i32
    %c0_i32_1 = arith.constant 0 : i32
    return %c0_i32, %c0_i32_0 : i32, i32
  }
  func.func @transform_5(%arg0: i32) -> (i32, i32) {
    %c0_i32 = arith.constant 0 : i32
    %c0_i32_0 = arith.constant 0 : i32
    %c0_i32_1 = arith.constant 0 : i32
    return %c0_i32, %c0_i32_0 : i32, i32
  }
  func.func @transform_6(%arg0: i32) -> (i32, i32) {
    %c0_i32 = arith.constant 0 : i32
    %c0_i32_0 = arith.constant 0 : i32
    %c0_i32_1 = arith.constant 0 : i32
    return %c0_i32, %c0_i32_0 : i32, i32
  }
  func.func @transform_7(%arg0: i32) -> (i32, i32) {
    %c0_i32 = arith.constant 0 : i32
    %c0_i32_0 = arith.constant 0 : i32
    return %arg0, %c0_i32 : i32, i32
  }
}

</mosaic_0001>

<llo_original>
// kernel: tpu_custom_call.1
$region0: #{tpu_custom_call.1}
  #allocation0 [shape = 'u32[]', space=smem, size = 0x4, offset = 0x4, fixed_abs, tag = 'smem constant byte address 0x4 - core index']
  #allocation1 [shape = 'u32[144,128]{1,0:T(1,128)}', space=vmem, size = 0x12000, scoped, tag = 'internal scratch']
  #allocation2 [shape = 'f32[8,8,640]{2,1,0:T(8,128)}', space=vmem, size = 0x28000, scoped, tag = 'scratch operand']
  %s0 = inlined_call_operand.hbm [shape: f32[8,8,16], index: 0, kind: input, shape index: {}]
  %s1 = inlined_call_operand.hbm [shape: f32[8,8,128], index: 1, kind: input, shape index: {}]
  %s2 = inlined_call_operand.hbm [shape: f32[16,640], index: 2, kind: input, shape index: {}]
  %s3 = inlined_call_operand.hbm [shape: f32[128,640], index: 3, kind: input, shape index: {}]
  %s4 = inlined_call_operand.hbm [shape: f32[128,384], index: 4, kind: input, shape index: {}]
  %s5 = inlined_call_operand.vmem [shape: f32[1,640], index: 5, kind: input, shape index: {}]
  %s6 = inlined_call_operand.vmem [shape: f32[1,640], index: 6, kind: input, shape index: {}]
  %s7 = inlined_call_operand.hbm [shape: f32[8,128], index: 7, kind: output, shape index: {}]
  %s8 = sld [smem:[#allocation0]]
  $region58: #{tpu_custom_call.1} parent=0
    _
  %s10 = ssub.s32 1, %s8
  %s11 = scalar_select 0, %s10, %s8
  $region1: #{tpu_custom_call.1} parent=0
    #allocation3 [shape = 'u8[32768]{0}', space=vmem, size = 0x8000, scoped, tag = 'input window, operand 0, single buffered']
    #allocation4 [shape = 's32[1]{0}', space=sflag, size = 0x4, scoped, tag = 'scoped memory for tpu_custom_call.1']
    #allocation5 [shape = 's32[1]{0}', space=sflag, size = 0x4, scoped, tag = 'scoped memory for tpu_custom_call.1']
    #allocation6 [shape = 'u8[32768]{0}', space=vmem, size = 0x8000, scoped, tag = 'input window, operand 1, single buffered']
    #allocation7 [shape = 's32[1]{0}', space=sflag, size = 0x4, scoped, tag = 'scoped memory for tpu_custom_call.1']
    #allocation8 [shape = 'u8[40960]{0}', space=vmem, size = 0xa000, scoped, tag = 'input window, operand 2, single buffered']
    #allocation9 [shape = 'u8[327680]{0}', space=vmem, size = 0x50000, scoped, tag = 'input window, operand 3, single buffered']
    #allocation10 [shape = 's32[1]{0}', space=sflag, size = 0x4, scoped, tag = 'scoped memory for tpu_custom_call.1']
    #allocation11 [shape = 'u8[196608]{0}', space=vmem, size = 0x30000, scoped, tag = 'input window, operand 4, single buffered']
    #allocation12 [shape = 'u8[4096]{0}', space=vmem, size = 0x1000, scoped, tag = 'output window, operand 0, single buffered']
    %12 = vsyncpa [#allocation4], 0
    %13 = vsyncpa [#allocation7], 0
    %14 = vsyncpa [#allocation10], 0
    %15 = vsyncpa [#allocation5], 0
    // Predicated region
    $region2: #{tpu_custom_call.1} parent=1 // pred_check
      _
    $region3: #{tpu_custom_call.1} parent=1 // pred_check_branch
      %17 = sbr.rel (0) target = $region5
    $region4: #{tpu_custom_call.1} parent=1 // pred_region
      %s19 = ssub.s32 1024, 1024
      %20 = vsyncadd [#allocation4], %s19
      %s21 = sshll.u32 [#allocation3], 4
      %s22 = int_to_ptr.vmem [resolvable:$true] %s21
      %27 = dma.hbm_to_vmem [thread:$0]  %s0, 1024, %s22, [#allocation4], 128, 128, 8
    $region5: #{tpu_custom_call.1} parent=1 // pred_fallthru
      _
    // Predicated region
    $region6: #{tpu_custom_call.1} parent=1 // pred_check
      _
    $region7: #{tpu_custom_call.1} parent=1 // pred_check_branch
      %29 = sbr.rel (0) target = $region9
    $region8: #{tpu_custom_call.1} parent=1 // pred_region
      %s31 = ssub.s32 1024, 1024
      %32 = vsyncadd [#allocation7], %s31
      %s33 = sshll.u32 [#allocation6], 4
      %s34 = int_to_ptr.vmem [resolvable:$true] %s33
      %39 = dma.hbm_to_vmem [thread:$0]  %s1, 1024, %s34, [#allocation7], 128, 128, 8
    $region9: #{tpu_custom_call.1} parent=1 // pred_fallthru
      _
    // Predicated region
    $region10: #{tpu_custom_call.1} parent=1 // pred_check
      _
    $region11: #{tpu_custom_call.1} parent=1 // pred_check_branch
      %41 = sbr.rel (0) target = $region13
    $region12: #{tpu_custom_call.1} parent=1 // pred_region
      %s43 = ssub.s32 1280, 1280
      %44 = vsyncadd [#allocation7], %s43
      %s45 = sshll.u32 [#allocation8], 4
      %s46 = int_to_ptr.vmem [resolvable:$true] %s45
      %51 = dma.hbm_to_vmem [thread:$0]  %s2, 1280, %s46, [#allocation7], 640, 640, 40
    $region13: #{tpu_custom_call.1} parent=1 // pred_fallthru
      _
    // Predicated region
    $region14: #{tpu_custom_call.1} parent=1 // pred_check
      _
    $region15: #{tpu_custom_call.1} parent=1 // pred_check_branch
      %53 = sbr.rel (0) target = $region17
    $region16: #{tpu_custom_call.1} parent=1 // pred_region
      %s55 = ssub.s32 10240, 10240
      %56 = vsyncadd [#allocation10], %s55
      %s57 = sshll.u32 [#allocation9], 4
      %s58 = int_to_ptr.vmem [resolvable:$true] %s57
      %63 = dma.hbm_to_vmem [thread:$0]  %s3, 10240, %s58, [#allocation10], 640, 640, 40
    $region17: #{tpu_custom_call.1} parent=1 // pred_fallthru
      _
    // Predicated region
    $region18: #{tpu_custom_call.1} parent=1 // pred_check
      _
    $region19: #{tpu_custom_call.1} parent=1 // pred_check_branch
      %65 = sbr.rel (0) target = $region21
    $region20: #{tpu_custom_call.1} parent=1 // pred_region
      %s67 = ssub.s32 6144, 6144
      %68 = vsyncadd [#allocation10], %s67
      %s69 = sshll.u32 [#allocation11], 4
      %s70 = int_to_ptr.vmem [resolvable:$true] %s69
      %75 = dma.hbm_to_vmem [thread:$0]  %s4, 6144, %s70, [#allocation10], 384, 384, 24
    $region21: #{tpu_custom_call.1} parent=1 // pred_fallthru
      _
    // Predicated region
    $region22: #{tpu_custom_call.1} parent=1 // pred_check
      _
    $region23: #{tpu_custom_call.1} parent=1 // pred_check_branch
      %77 = sbr.rel (0) target = $region25
    $region24: #{tpu_custom_call.1} parent=1 // pred_region
      _
    $region25: #{tpu_custom_call.1} parent=1 // pred_fallthru
      _
    // Predicated region
    $region26: #{tpu_custom_call.1} parent=1 // pred_check
      _
    $region27: #{tpu_custom_call.1} parent=1 // pred_check_branch
      %79 = sbr.rel (0) target = $region29
    $region28: #{tpu_custom_call.1} parent=1 // pred_region
      _
    $region29: #{tpu_custom_call.1} parent=1 // pred_fallthru
      _
    // Predicated region
    $region30: #{tpu_custom_call.1} parent=1 // pred_check
      _
    $region31: #{tpu_custom_call.1} parent=1 // pred_check_branch
      %81 = sbr.rel (0) target = $region33
    $region32: #{tpu_custom_call.1} parent=1 // pred_region
      %82 = dma.done [#allocation4], 1024
    $region33: #{tpu_custom_call.1} parent=1 // pred_fallthru
      _
    // Predicated region
    $region34: #{tpu_custom_call.1} parent=1 // pred_check
      _
    $region35: #{tpu_custom_call.1} parent=1 // pred_check_branch
      %84 = sbr.rel (0) target = $region37
    $region36: #{tpu_custom_call.1} parent=1 // pred_region
      %85 = dma.done [#allocation7], 1024
    $region37: #{tpu_custom_call.1} parent=1 // pred_fallthru
      _
    // Predicated region
    $region38: #{tpu_custom_call.1} parent=1 // pred_check
      _
    $region39: #{tpu_custom_call.1} parent=1 // pred_check_branch
      %87 = sbr.rel (0) target = $region41
    $region40: #{tpu_custom_call.1} parent=1 // pred_region
      %88 = dma.done [#allocation7], 1280
    $region41: #{tpu_custom_call.1} parent=1 // pred_fallthru
      _
    // Predicated region
    $region42: #{tpu_custom_call.1} parent=1 // pred_check
      _
    $region43: #{tpu_custom_call.1} parent=1 // pred_check_branch
      %90 = sbr.rel (0) target = $region45
    $region44: #{tpu_custom_call.1} parent=1 // pred_region
      %91 = dma.done [#allocation10], 10240
    $region45: #{tpu_custom_call.1} parent=1 // pred_fallthru
      _
    // Predicated region
    $region46: #{tpu_custom_call.1} parent=1 // pred_check
      _
    $region47: #{tpu_custom_call.1} parent=1 // pred_check_branch
      %93 = sbr.rel (0) target = $region49
    $region48: #{tpu_custom_call.1} parent=1 // pred_region
      %94 = dma.done [#allocation10], 6144
    $region49: #{tpu_custom_call.1} parent=1 // pred_fallthru
      _
    %v95 = vld [vmem:[#allocation8] sm:$0xff]
    %v96 = vld [vmem:[#allocation8 + $0x8] sm:$0xff]
    %v97 = vld [vmem:[#allocation8 + $0x10] sm:$0xff]
    %v98 = vld [vmem:[#allocation8 + $0x18] sm:$0xff]
    %v99 = vld [vmem:[#allocation8 + $0x20] sm:$0xff]
    %v100 = vld [vmem:[#allocation8 + $0x28] sm:$0xff]
    %v101 = vld [vmem:[#allocation8 + $0x30] sm:$0xff]
    %v102 = vld [vmem:[#allocation8 + $0x38] sm:$0xff]
    %v103 = vld [vmem:[#allocation8 + $0x40] sm:$0xff]
    %v104 = vld [vmem:[#allocation8 + $0x48] sm:$0xff]
    %v105 = vld [vmem:[#allocation9] sm:$0xff]
    %v106 = vld [vmem:[#allocation9 + $0x8] sm:$0xff]
    %v107 = vld [vmem:[#allocation9 + $0x10] sm:$0xff]
    %v108 = vld [vmem:[#allocation9 + $0x18] sm:$0xff]
    %v109 = vld [vmem:[#allocation9 + $0x20] sm:$0xff]
    %v110 = vld [vmem:[#allocation9 + $0x28] sm:$0xff]
    %v111 = vld [vmem:[#allocation9 + $0x30] sm:$0xff]
    %v112 = vld [vmem:[#allocation9 + $0x38] sm:$0xff]
    %v113 = vld [vmem:[#allocation9 + $0x40] sm:$0xff]
    %v114 = vld [vmem:[#allocation9 + $0x48] sm:$0xff]
    %v115 = vld [vmem:[#allocation9 + $0x50] sm:$0xff]
    %v116 = vld [vmem:[#allocation9 + $0x58] sm:$0xff]
    %v117 = vld [vmem:[#allocation9 + $0x60] sm:$0xff]
    %v118 = vld [vmem:[#allocation9 + $0x68] sm:$0xff]
    %v119 = vld [vmem:[#allocation9 + $0x70] sm:$0xff]
    %v120 = vld [vmem:[#allocation9 + $0x78] sm:$0xff]
    %v121 = vld [vmem:[#allocation9 + $0x80] sm:$0xff]
    %v122 = vld [vmem:[#allocation9 + $0x88] sm:$0xff]
    %v123 = vld [vmem:[#allocation9 + $0x90] sm:$0xff]
    %v124 = vld [vmem:[#allocation9 + $0x98] sm:$0xff]
    %v125 = vld [vmem:[#allocation9 + $0xa0] sm:$0xff]
    %v126 = vld [vmem:[#allocation9 + $0xa8] sm:$0xff]
    %v127 = vld [vmem:[#allocation9 + $0xb0] sm:$0xff]
    %v128 = vld [vmem:[#allocation9 + $0xb8] sm:$0xff]
    %v129 = vld [vmem:[#allocation9 + $0xc0] sm:$0xff]
    %v130 = vld [vmem:[#allocation9 + $0xc8] sm:$0xff]
    %v131 = vld [vmem:[#allocation9 + $0xd0] sm:$0xff]
    %v132 = vld [vmem:[#allocation9 + $0xd8] sm:$0xff]
    %v133 = vld [vmem:[#allocation9 + $0xe0] sm:$0xff]
    %v134 = vld [vmem:[#allocation9 + $0xe8] sm:$0xff]
    %v135 = vld [vmem:[#allocation9 + $0xf0] sm:$0xff]
    %v136 = vld [vmem:[#allocation9 + $0xf8] sm:$0xff]
    %v137 = vld [vmem:[#allocation9 + $0x100] sm:$0xff]
    %v138 = vld [vmem:[#allocation9 + $0x108] sm:$0xff]
    %v139 = vld [vmem:[#allocation9 + $0x110] sm:$0xff]
    %v140 = vld [vmem:[#allocation9 + $0x118] sm:$0xff]
    %v141 = vld [vmem:[#allocation9 + $0x120] sm:$0xff]
    %v142 = vld [vmem:[#allocation9 + $0x128] sm:$0xff]
    %v143 = vld [vmem:[#allocation9 + $0x130] sm:$0xff]
    %v144 = vld [vmem:[#allocation9 + $0x138] sm:$0xff]
    %v145 = vld [vmem:[#allocation9 + $0x140] sm:$0xff]
    %v146 = vld [vmem:[#allocation9 + $0x148] sm:$0xff]
    %v147 = vld [vmem:[#allocation9 + $0x150] sm:$0xff]
    %v148 = vld [vmem:[#allocation9 + $0x158] sm:$0xff]
    %v149 = vld [vmem:[#allocation9 + $0x160] sm:$0xff]
    %v150 = vld [vmem:[#allocation9 + $0x168] sm:$0xff]
    %v151 = vld [vmem:[#allocation9 + $0x170] sm:$0xff]
    %v152 = vld [vmem:[#allocation9 + $0x178] sm:$0xff]
    %v153 = vld [vmem:[#allocation9 + $0x180] sm:$0xff]
    %v154 = vld [vmem:[#allocation9 + $0x188] sm:$0xff]
    %v155 = vld [vmem:[#allocation9 + $0x190] sm:$0xff]
    %v156 = vld [vmem:[#allocation9 + $0x198] sm:$0xff]
    %v157 = vld [vmem:[#allocation9 + $0x1a0] sm:$0xff]
    %v158 = vld [vmem:[#allocation9 + $0x1a8] sm:$0xff]
    %v159 = vld [vmem:[#allocation9 + $0x1b0] sm:$0xff]
    %v160 = vld [vmem:[#allocation9 + $0x1b8] sm:$0xff]
    %v161 = vld [vmem:[#allocation9 + $0x1c0] sm:$0xff]
    %v162 = vld [vmem:[#allocation9 + $0x1c8] sm:$0xff]
    %v163 = vld [vmem:[#allocation9 + $0x1d0] sm:$0xff]
    %v164 = vld [vmem:[#allocation9 + $0x1d8] sm:$0xff]
    %v165 = vld [vmem:[#allocation9 + $0x1e0] sm:$0xff]
    %v166 = vld [vmem:[#allocation9 + $0x1e8] sm:$0xff]
    %v167 = vld [vmem:[#allocation9 + $0x1f0] sm:$0xff]
    %v168 = vld [vmem:[#allocation9 + $0x1f8] sm:$0xff]
    %v169 = vld [vmem:[#allocation9 + $0x200] sm:$0xff]
    %v170 = vld [vmem:[#allocation9 + $0x208] sm:$0xff]
    %v171 = vld [vmem:[#allocation9 + $0x210] sm:$0xff]
    %v172 = vld [vmem:[#allocation9 + $0x218] sm:$0xff]
    %v173 = vld [vmem:[#allocation9 + $0x220] sm:$0xff]
    %v174 = vld [vmem:[#allocation9 + $0x228] sm:$0xff]
    %v175 = vld [vmem:[#allocation9 + $0x230] sm:$0xff]
    %v176 = vld [vmem:[#allocation9 + $0x238] sm:$0xff]
    %v177 = vld [vmem:[#allocation9 + $0x240] sm:$0xff]
    %v178 = vld [vmem:[#allocation9 + $0x248] sm:$0xff]
    %v179 = vld [vmem:[#allocation9 + $0x250] sm:$0xff]
    %v180 = vld [vmem:[#allocation9 + $0x258] sm:$0xff]
    %v181 = vld [vmem:[#allocation9 + $0x260] sm:$0xff]
    %v182 = vld [vmem:[#allocation9 + $0x268] sm:$0xff]
    %v183 = vld [vmem:[#allocation9 + $0x270] sm:$0xff]
    %v184 = vld [vmem:[#allocation9 + $0x278] sm:$0xff]
    %v185 = vld [vmem:[#allocation11] sm:$0xff]
    %v186 = vld [vmem:[#allocation11 + $0x8] sm:$0xff]
    %v187 = vld [vmem:[#allocation11 + $0x10] sm:$0xff]
    %v188 = vld [vmem:[#allocation11 + $0x18] sm:$0xff]
    %v189 = vld [vmem:[#allocation11 + $0x20] sm:$0xff]
    %v190 = vld [vmem:[#allocation11 + $0x28] sm:$0xff]
    %v191 = vld [vmem:[#allocation11 + $0x30] sm:$0xff]
    %v192 = vld [vmem:[#allocation11 + $0x38] sm:$0xff]
    %v193 = vld [vmem:[#allocation11 + $0x40] sm:$0xff]
    %v194 = vld [vmem:[#allocation11 + $0x48] sm:$0xff]
    %v195 = vld [vmem:[#allocation11 + $0x50] sm:$0xff]
    %v196 = vld [vmem:[#allocation11 + $0x58] sm:$0xff]
    %v197 = vld [vmem:[#allocation11 + $0x60] sm:$0xff]
    %v198 = vld [vmem:[#allocation11 + $0x68] sm:$0xff]
    %v199 = vld [vmem:[#allocation11 + $0x70] sm:$0xff]
    %v200 = vld [vmem:[#allocation11 + $0x78] sm:$0xff]
    %v201 = vld [vmem:[#allocation11 + $0x80] sm:$0xff]
    %v202 = vld [vmem:[#allocation11 + $0x88] sm:$0xff]
    %v203 = vld [vmem:[#allocation11 + $0x90] sm:$0xff]
    %v204 = vld [vmem:[#allocation11 + $0x98] sm:$0xff]
    %v205 = vld [vmem:[#allocation11 + $0xa0] sm:$0xff]
    %v206 = vld [vmem:[#allocation11 + $0xa8] sm:$0xff]
    %v207 = vld [vmem:[#allocation11 + $0xb0] sm:$0xff]
    %v208 = vld [vmem:[#allocation11 + $0xb8] sm:$0xff]
    %v209 = vld [vmem:[#allocation11 + $0xc0] sm:$0xff]
    %v210 = vld [vmem:[#allocation11 + $0xc8] sm:$0xff]
    %v211 = vld [vmem:[#allocation11 + $0xd0] sm:$0xff]
    %v212 = vld [vmem:[#allocation11 + $0xd8] sm:$0xff]
    %v213 = vld [vmem:[#allocation11 + $0xe0] sm:$0xff]
    %v214 = vld [vmem:[#allocation11 + $0xe8] sm:$0xff]
    %v215 = vld [vmem:[#allocation11 + $0xf0] sm:$0xff]
    %v216 = vld [vmem:[#allocation11 + $0xf8] sm:$0xff]
    %v217 = vld [vmem:[#allocation11 + $0x100] sm:$0xff]
    %v218 = vld [vmem:[#allocation11 + $0x108] sm:$0xff]
    %v219 = vld [vmem:[#allocation11 + $0x110] sm:$0xff]
    %v220 = vld [vmem:[#allocation11 + $0x118] sm:$0xff]
    %v221 = vld [vmem:[#allocation11 + $0x120] sm:$0xff]
    %v222 = vld [vmem:[#allocation11 + $0x128] sm:$0xff]
    %v223 = vld [vmem:[#allocation11 + $0x130] sm:$0xff]
    %v224 = vld [vmem:[#allocation11 + $0x138] sm:$0xff]
    %v225 = vld [vmem:[#allocation11 + $0x140] sm:$0xff]
    %v226 = vld [vmem:[#allocation11 + $0x148] sm:$0xff]
    %v227 = vld [vmem:[#allocation11 + $0x150] sm:$0xff]
    %v228 = vld [vmem:[#allocation11 + $0x158] sm:$0xff]
    %v229 = vld [vmem:[#allocation11 + $0x160] sm:$0xff]
    %v230 = vld [vmem:[#allocation11 + $0x168] sm:$0xff]
    %v231 = vld [vmem:[#allocation11 + $0x170] sm:$0xff]
    %v232 = vld [vmem:[#allocation11 + $0x178] sm:$0xff]
    %v233 = vld [vmem:[%s5] sm:$0x1f]
    %v234 = vld [vmem:[%s6] sm:$0x1f]
    %v235 = vld [vmem:[#allocation3] sm:$0xff]
    %v236 = vld [vmem:[#allocation3 + $0x8] sm:$0xff]
    %v237 = vld [vmem:[#allocation3 + $0x10] sm:$0xff]
    %v238 = vld [vmem:[#allocation3 + $0x18] sm:$0xff]
    %v239 = vld [vmem:[#allocation3 + $0x20] sm:$0xff]
    %v240 = vld [vmem:[#allocation3 + $0x28] sm:$0xff]
    %v241 = vld [vmem:[#allocation3 + $0x30] sm:$0xff]
    %v242 = vld [vmem:[#allocation3 + $0x38] sm:$0xff]
    %v244 = vlaneseq
    %v245 = vshrl.u32 %v244, 7
    %v246 = vsub.s32 0, %v245
    %v247 = vrot.slane %v233, %v246
    %v248 = vlaneseq
    %v249 = vshrl.u32 %v248, 7
    %v250 = vsub.s32 1, %v249
    %v251 = vrot.slane %v233, %v250
    %v252 = vlaneseq
    %v253 = vshrl.u32 %v252, 7
    %v254 = vsub.s32 2, %v253
    %v255 = vrot.slane %v233, %v254
    %v256 = vlaneseq
    %v257 = vshrl.u32 %v256, 7
    %v258 = vsub.s32 3, %v257
    %v259 = vrot.slane %v233, %v258
    %v260 = vlaneseq
    %v261 = vshrl.u32 %v260, 7
    %v262 = vsub.s32 4, %v261
    %v263 = vrot.slane %v233, %v262
    %vm269 = vcmask 130048
    %v271 = vsel %vm269, %v235, 0
    %v274 = vsel %vm269, %v236, 0
    %v277 = vsel %vm269, %v237, 0
    %v280 = vsel %vm269, %v238, 0
    %v283 = vsel %vm269, %v239, 0
    %v286 = vsel %vm269, %v240, 0
    %v289 = vsel %vm269, %v241, 0
    %v292 = vsel %vm269, %v242, 0
    %294 = vmatprep.subr.mxu0 %v96
    %295 = vmatpush1.msra.mxu0 %v95
    %296 = vmatprep.subr.mxu0 %v101
    %297 = vmatpush1.msra.mxu0 %v100
    %298 = vmatprep.subr.mxu0 0.0
    %299 = vmatpush1.msra.mxu0 0.0
    %300 = vmatprep.subr.mxu0 0.0
    %301 = vmatpush1.msra.mxu0 0.0
    %302 = vmatprep.subr.mxu0 0.0
    %303 = vmatpush1.msra.mxu0 0.0
    %304 = vmatprep.subr.mxu0 0.0
    %305 = vmatpush1.msra.mxu0 0.0
    %306 = vmatprep.subr.mxu0 0.0
    %307 = vmatpush1.msra.mxu0 0.0
    %308 = vmatprep.subr.mxu0 0.0
    %309 = vmatpush1.msra.mxu0 0.0
    %310 = vmatprep.subr.mxu0 0.0
    %311 = vmatpush1.msra.mxu0 0.0
    %312 = vmatprep.subr.mxu0 0.0
    %313 = vmatpush1.msra.mxu0 0.0
    %314 = vmatprep.subr.mxu0 0.0
    %315 = vmatpush1.msra.mxu0 0.0
    %316 = vmatprep.subr.mxu0 0.0
    %317 = vmatpush1.msra.mxu0 0.0
    %318 = vmatprep.subr.mxu0 0.0
    %319 = vmatpush1.msra.mxu0 0.0
    %320 = vmatprep.subr.mxu0 0.0
    %321 = vmatpush1.msra.mxu0 0.0
    %322 = vmatprep.subr.mxu0 0.0
    %323 = vmatpush1.msra.mxu0 0.0
    %324 = vmatprep.subr.mxu0 0.0
    %325 = vmatpush1.msra.mxu0 0.0
    %326 = vmatprep.subr.mxu0 0.0
    %327 = vmatpush1.msra.mxu0 0.0
    %328 = vmatprep.subr.mxu0 0.0
    %329 = vmatpush1.msra.mxu0 0.0
    %330 = vmatprep.subr.mxu0 0.0
    %331 = vmatpush1.msra.mxu0 0.0
    %332 = vmatprep.subr.mxu0 0.0
    %333 = vmatpush1.msra.mxu0 0.0
    %334 = vmatprep.subr.mxu0 0.0
    %335 = vmatpush1.msra.mxu0 0.0
    %336 = vmatprep.subr.mxu0 0.0
    %337 = vmatpush1.msra.mxu0 0.0
    %338 = vmatprep.subr.mxu0 0.0
    %339 = vmatpush1.msra.mxu0 0.0
    %340 = vmatprep.subr.mxu0 0.0
    %341 = vmatpush1.msra.mxu0 0.0
    %342 = vmatprep.subr.mxu0 0.0
    %343 = vmatpush1.msra.mxu0 0.0
    %344 = vmatprep.subr.mxu0 0.0
    %345 = vmatpush1.msra.mxu0 0.0
    %346 = vmatprep.subr.mxu0 0.0
    %347 = vmatpush1.msra.mxu0 0.0
    %348 = vmatprep.subr.mxu0 0.0
    %349 = vmatpush1.msra.mxu0 0.0
    %350 = vmatprep.subr.mxu0 0.0
    %351 = vmatpush1.msra.mxu0 0.0
    %352 = vmatprep.subr.mxu0 0.0
    %353 = vmatpush1.msra.mxu0 0.0
    %354 = vmatprep.subr.mxu0 0.0
    %355 = vmatpush1.msra.mxu0 0.0
    %356 = vmatprep.subr.mxu0 0.0
    %357 = vmatpush1.msra.mxu0 0.0
    %358 = vmatprep.mubr.f32.mxu0 0.0
    %359 = vmatmul.mubr.f32.gmra.mrb[0].mxu0 %v271
    %v360 = vpop.f32.mrb[0].mxu0
    %v361 = vadd.f32 %v247, %v360
    %v362 = vpop.f32.mrb[0].mxu0
    %v363 = vadd.f32 %v251, %v362
    %364 = vmatprep.mubr.f32.mxu0 0.0
    %365 = vmatmul.mubr.f32.gmra.mrb[0].mxu0 %v274
    %v366 = vpop.f32.mrb[0].mxu0
    %v367 = vadd.f32 %v247, %v366
    %v368 = vpop.f32.mrb[0].mxu0
    %v369 = vadd.f32 %v251, %v368
    %370 = vmatprep.mubr.f32.mxu0 0.0
    %371 = vmatmul.mubr.f32.gmra.mrb[0].mxu0 %v277
    %v372 = vpop.f32.mrb[0].mxu0
    %v373 = vadd.f32 %v247, %v372
    %v374 = vpop.f32.mrb[0].mxu0
    %v375 = vadd.f32 %v251, %v374
    %376 = vmatprep.mubr.f32.mxu0 0.0
    %377 = vmatmul.mubr.f32.gmra.mrb[0].mxu0 %v280
    %v378 = vpop.f32.mrb[0].mxu0
    %v379 = vadd.f32 %v247, %v378
    %v380 = vpop.f32.mrb[0].mxu0
    %v381 = vadd.f32 %v251, %v380
    %382 = vmatprep.mubr.f32.mxu0 0.0
    %383 = vmatmul.mubr.f32.gmra.mrb[0].mxu0 %v283
    %v384 = vpop.f32.mrb[0].mxu0
    %v385 = vadd.f32 %v247, %v384
    %v386 = vpop.f32.mrb[0].mxu0
    %v387 = vadd.f32 %v251, %v386
    %388 = vmatprep.mubr.f32.mxu0 0.0
    %389 = vmatmul.mubr.f32.gmra.mrb[0].mxu0 %v286
    %v390 = vpop.f32.mrb[0].mxu0
    %v391 = vadd.f32 %v247, %v390
    %v392 = vpop.f32.mrb[0].mxu0
    %v393 = vadd.f32 %v251, %v392
    %394 = vmatprep.mubr.f32.mxu0 0.0
    %395 = vmatmul.mubr.f32.gmra.mrb[0].mxu0 %v289
    %v396 = vpop.f32.mrb[0].mxu0
    %v397 = vadd.f32 %v247, %v396
    %v398 = vpop.f32.mrb[0].mxu0
    %v399 = vadd.f32 %v251, %v398
    %400 = vmatprep.mubr.f32.mxu0 0.0
    %401 = vmatmul.mubr.f32.gmra.mrb[0].mxu0 %v292
    %v402 = vpop.f32.mrb[0].mxu0
    %v403 = vadd.f32 %v247, %v402
    %v404 = vpop.f32.mrb[0].mxu0
    %v405 = vadd.f32 %v251, %v404
    %406 = vdwg.mxu0
    %407 = vmatprep.subr.mxu0 %v98
    %408 = vmatpush1.msra.mxu0 %v97
    %409 = vmatprep.subr.mxu0 %v103
    %410 = vmatpush1.msra.mxu0 %v102
    %411 = vmatprep.subr.mxu0 0.0
    %412 = vmatpush1.msra.mxu0 0.0
    %413 = vmatprep.subr.mxu0 0.0
    %414 = vmatpush1.msra.mxu0 0.0
    %415 = vmatprep.subr.mxu0 0.0
    %416 = vmatpush1.msra.mxu0 0.0
    %417 = vmatprep.subr.mxu0 0.0
    %418 = vmatpush1.msra.mxu0 0.0
    %419 = vmatprep.subr.mxu0 0.0
    %420 = vmatpush1.msra.mxu0 0.0
    %421 = vmatprep.subr.mxu0 0.0
    %422 = vmatpush1.msra.mxu0 0.0
    %423 = vmatprep.subr.mxu0 0.0
    %424 = vmatpush1.msra.mxu0 0.0
    %425 = vmatprep.subr.mxu0 0.0
    %426 = vmatpush1.msra.mxu0 0.0
    %427 = vmatprep.subr.mxu0 0.0
    %428 = vmatpush1.msra.mxu0 0.0
    %429 = vmatprep.subr.mxu0 0.0
    %430 = vmatpush1.msra.mxu0 0.0
    %431 = vmatprep.subr.mxu0 0.0
    %432 = vmatpush1.msra.mxu0 0.0
    %433 = vmatprep.subr.mxu0 0.0
    %434 = vmatpush1.msra.mxu0 0.0
    %435 = vmatprep.subr.mxu0 0.0
    %436 = vmatpush1.msra.mxu0 0.0
    %437 = vmatprep.subr.mxu0 0.0
    %438 = vmatpush1.msra.mxu0 0.0
    %439 = vmatprep.subr.mxu0 0.0
    %440 = vmatpush1.msra.mxu0 0.0
    %441 = vmatprep.subr.mxu0 0.0
    %442 = vmatpush1.msra.mxu0 0.0
    %443 = vmatprep.subr.mxu0 0.0
    %444 = vmatpush1.msra.mxu0 0.0
    %445 = vmatprep.subr.mxu0 0.0
    %446 = vmatpush1.msra.mxu0 0.0
    %447 = vmatprep.subr.mxu0 0.0
    %448 = vmatpush1.msra.mxu0 0.0
    %449 = vmatprep.subr.mxu0 0.0
    %450 = vmatpush1.msra.mxu0 0.0
    %451 = vmatprep.subr.mxu0 0.0
    %452 = vmatpush1.msra.mxu0 0.0
    %453 = vmatprep.subr.mxu0 0.0
    %454 = vmatpush1.msra.mxu0 0.0
    %455 = vmatprep.subr.mxu0 0.0
    %456 = vmatpush1.msra.mxu0 0.0
    %457 = vmatprep.subr.mxu0 0.0
    %458 = vmatpush1.msra.mxu0 0.0
    %459 = vmatprep.subr.mxu0 0.0
    %460 = vmatpush1.msra.mxu0 0.0
    %461 = vmatprep.subr.mxu0 0.0
    %462 = vmatpush1.msra.mxu0 0.0
    %463 = vmatprep.subr.mxu0 0.0
    %464 = vmatpush1.msra.mxu0 0.0
    %465 = vmatprep.subr.mxu0 0.0
    %466 = vmatpush1.msra.mxu0 0.0
    %467 = vmatprep.subr.mxu0 0.0
    %468 = vmatpush1.msra.mxu0 0.0
    %469 = vmatprep.subr.mxu0 0.0
    %470 = vmatpush1.msra.mxu0 0.0
    %471 = vmatprep.mubr.f32.mxu0 0.0
    %472 = vmatmul.mubr.f32.gmra.mrb[0].mxu0 %v271
    %v473 = vpop.f32.mrb[0].mxu0
    %v474 = vadd.f32 %v255, %v473
    %v475 = vpop.f32.mrb[0].mxu0
    %v476 = vadd.f32 %v259, %v475
    %477 = vmatprep.mubr.f32.mxu0 0.0
    %478 = vmatmul.mubr.f32.gmra.mrb[0].mxu0 %v274
    %v479 = vpop.f32.mrb[0].mxu0
    %v480 = vadd.f32 %v255, %v479
    %v481 = vpop.f32.mrb[0].mxu0
    %v482 = vadd.f32 %v259, %v481
    %483 = vmatprep.mubr.f32.mxu0 0.0
    %484 = vmatmul.mubr.f32.gmra.mrb[0].mxu0 %v277
    %v485 = vpop.f32.mrb[0].mxu0
    %v486 = vadd.f32 %v255, %v485
    %v487 = vpop.f32.mrb[0].mxu0
    %v488 = vadd.f32 %v259, %v487
    %489 = vmatprep.mubr.f32.mxu0 0.0
    %490 = vmatmul.mubr.f32.gmra.mrb[0].mxu0 %v280
    %v491 = vpop.f32.mrb[0].mxu0
    %v492 = vadd.f32 %v255, %v491
    %v493 = vpop.f32.mrb[0].mxu0
    %v494 = vadd.f32 %v259, %v493
    %495 = vmatprep.mubr.f32.mxu0 0.0
    %496 = vmatmul.mubr.f32.gmra.mrb[0].mxu0 %v283
    %v497 = vpop.f32.mrb[0].mxu0
    %v498 = vadd.f32 %v255, %v497
    %v499 = vpop.f32.mrb[0].mxu0
    %v500 = vadd.f32 %v259, %v499
    %501 = vmatprep.mubr.f32.mxu0 0.0
    %502 = vmatmul.mubr.f32.gmra.mrb[0].mxu0 %v286
    %v503 = vpop.f32.mrb[0].mxu0
    %v504 = vadd.f32 %v255, %v503
    %v505 = vpop.f32.mrb[0].mxu0
    %v506 = vadd.f32 %v259, %v505
    %507 = vmatprep.mubr.f32.mxu0 0.0
    %508 = vmatmul.mubr.f32.gmra.mrb[0].mxu0 %v289
    %v509 = vpop.f32.mrb[0].mxu0
    %v510 = vadd.f32 %v255, %v509
    %v511 = vpop.f32.mrb[0].mxu0
    %v512 = vadd.f32 %v259, %v511
    %513 = vmatprep.mubr.f32.mxu0 0.0
    %514 = vmatmul.mubr.f32.gmra.mrb[0].mxu0 %v292
    %v515 = vpop.f32.mrb[0].mxu0
    %v516 = vadd.f32 %v255, %v515
    %v517 = vpop.f32.mrb[0].mxu0
    %v518 = vadd.f32 %v259, %v517
    %519 = vdwg.mxu0
    %520 = vmatprep.subr.mxu0 0.0
    %521 = vmatpush1.msra.mxu0 %v99
    %522 = vmatprep.subr.mxu0 0.0
    %523 = vmatpush1.msra.mxu0 %v104
    %524 = vmatprep.subr.mxu0 0.0
    %525 = vmatpush1.msra.mxu0 0.0
    %526 = vmatprep.subr.mxu0 0.0
    %527 = vmatpush1.msra.mxu0 0.0
    %528 = vmatprep.subr.mxu0 0.0
    %529 = vmatpush1.msra.mxu0 0.0
    %530 = vmatprep.subr.mxu0 0.0
    %531 = vmatpush1.msra.mxu0 0.0
    %532 = vmatprep.subr.mxu0 0.0
    %533 = vmatpush1.msra.mxu0 0.0
    %534 = vmatprep.subr.mxu0 0.0
    %535 = vmatpush1.msra.mxu0 0.0
    %536 = vmatprep.subr.mxu0 0.0
    %537 = vmatpush1.msra.mxu0 0.0
    %538 = vmatprep.subr.mxu0 0.0
    %539 = vmatpush1.msra.mxu0 0.0
    %540 = vmatprep.subr.mxu0 0.0
    %541 = vmatpush1.msra.mxu0 0.0
    %542 = vmatprep.subr.mxu0 0.0
    %543 = vmatpush1.msra.mxu0 0.0
    %544 = vmatprep.subr.mxu0 0.0
    %545 = vmatpush1.msra.mxu0 0.0
    %546 = vmatprep.subr.mxu0 0.0
    %547 = vmatpush1.msra.mxu0 0.0
    %548 = vmatprep.subr.mxu0 0.0
    %549 = vmatpush1.msra.mxu0 0.0
    %550 = vmatprep.subr.mxu0 0.0
    %551 = vmatpush1.msra.mxu0 0.0
    %552 = vmatprep.subr.mxu0 0.0
    %553 = vmatpush1.msra.mxu0 0.0
    %554 = vmatprep.subr.mxu0 0.0
    %555 = vmatpush1.msra.mxu0 0.0
    %556 = vmatprep.subr.mxu0 0.0
    %557 = vmatpush1.msra.mxu0 0.0
    %558 = vmatprep.subr.mxu0 0.0
    %559 = vmatpush1.msra.mxu0 0.0
    %560 = vmatprep.subr.mxu0 0.0
    %561 = vmatpush1.msra.mxu0 0.0
    %562 = vmatprep.subr.mxu0 0.0
    %563 = vmatpush1.msra.mxu0 0.0
    %564 = vmatprep.subr.mxu0 0.0
    %565 = vmatpush1.msra.mxu0 0.0
    %566 = vmatprep.subr.mxu0 0.0
    %567 = vmatpush1.msra.mxu0 0.0
    %568 = vmatprep.subr.mxu0 0.0
    %569 = vmatpush1.msra.mxu0 0.0
    %570 = vmatprep.subr.mxu0 0.0
    %571 = vmatpush1.msra.mxu0 0.0
    %572 = vmatprep.subr.mxu0 0.0
    %573 = vmatpush1.msra.mxu0 0.0
    %574 = vmatprep.subr.mxu0 0.0
    %575 = vmatpush1.msra.mxu0 0.0
    %576 = vmatprep.subr.mxu0 0.0
    %577 = vmatpush1.msra.mxu0 0.0
    %578 = vmatprep.subr.mxu0 0.0
    %579 = vmatpush1.msra.mxu0 0.0
    %580 = vmatprep.subr.mxu0 0.0
    %581 = vmatpush1.msra.mxu0 0.0
    %582 = vmatprep.subr.mxu0 0.0
    %583 = vmatpush1.msra.mxu0 0.0
    %584 = vmatprep.mubr.f32.mxu0 0.0
    %585 = vmatmul.mubr.f32.gmra.mrb[0].mxu0 %v271
    %v586 = vpop.f32.mrb[0].mxu0
    %v587 = vadd.f32 %v263, %v586
    %v588 = vpop.f32.mrb[0].mxu0
    %589 = vmatprep.mubr.f32.mxu0 0.0
    %590 = vmatmul.mubr.f32.gmra.mrb[0].mxu0 %v274
    %v591 = vpop.f32.mrb[0].mxu0
    %v592 = vadd.f32 %v263, %v591
    %v593 = vpop.f32.mrb[0].mxu0
    %594 = vmatprep.mubr.f32.mxu0 0.0
    %595 = vmatmul.mubr.f32.gmra.mrb[0].mxu0 %v277
    %v596 = vpop.f32.mrb[0].mxu0
    %v597 = vadd.f32 %v263, %v596
    %v598 = vpop.f32.mrb[0].mxu0
    %599 = vmatprep.mubr.f32.mxu0 0.0
    %600 = vmatmul.mubr.f32.gmra.mrb[0].mxu0 %v280
    %v601 = vpop.f32.mrb[0].mxu0
    %v602 = vadd.f32 %v263, %v601
    %v603 = vpop.f32.mrb[0].mxu0
    %604 = vmatprep.mubr.f32.mxu0 0.0
    %605 = vmatmul.mubr.f32.gmra.mrb[0].mxu0 %v283
    %v606 = vpop.f32.mrb[0].mxu0
    %v607 = vadd.f32 %v263, %v606
    %v608 = vpop.f32.mrb[0].mxu0
    %609 = vmatprep.mubr.f32.mxu0 0.0
    %610 = vmatmul.mubr.f32.gmra.mrb[0].mxu0 %v286
    %v611 = vpop.f32.mrb[0].mxu0
    %v612 = vadd.f32 %v263, %v611
    %v613 = vpop.f32.mrb[0].mxu0
    %614 = vmatprep.mubr.f32.mxu0 0.0
    %615 = vmatmul.mubr.f32.gmra.mrb[0].mxu0 %v289
    %v616 = vpop.f32.mrb[0].mxu0
    %v617 = vadd.f32 %v263, %v616
    %v618 = vpop.f32.mrb[0].mxu0
    %619 = vmatprep.mubr.f32.mxu0 0.0
    %620 = vmatmul.mubr.f32.gmra.mrb[0].mxu0 %v292
    %v621 = vpop.f32.mrb[0].mxu0
    %v622 = vadd.f32 %v263, %v621
    %v623 = vpop.f32.mrb[0].mxu0
    %624 = vdwg.mxu0
    %625 = vst [vmem:[#allocation2] sm:$0xff] %v361
    %626 = vst [vmem:[#allocation2 + $0x8] sm:$0xff] %v363
    %627 = vst [vmem:[#allocation2 + $0x10] sm:$0xff] %v474
    %628 = vst [vmem:[#allocation2 + $0x18] sm:$0xff] %v476
    %629 = vst [vmem:[#allocation2 + $0x20] sm:$0xff] %v587
    %630 = vst [vmem:[#allocation2 + $0x28] sm:$0xff] %v367
    %631 = vst [vmem:[#allocation2 + $0x30] sm:$0xff] %v369
    %632 = vst [vmem:[#allocation2 + $0x38] sm:$0xff] %v480
    %633 = vst [vmem:[#allocation2 + $0x40] sm:$0xff] %v482
    %634 = vst [vmem:[#allocation2 + $0x48] sm:$0xff] %v592
    %635 = vst [vmem:[#allocation2 + $0x50] sm:$0xff] %v373
    %636 = vst [vmem:[#allocation2 + $0x58] sm:$0xff] %v375
    %637 = vst [vmem:[#allocation2 + $0x60] sm:$0xff] %v486
    %638 = vst [vmem:[#allocation2 + $0x68] sm:$0xff] %v488
    %639 = vst [vmem:[#allocation2 + $0x70] sm:$0xff] %v597
    %640 = vst [vmem:[#allocation2 + $0x78] sm:$0xff] %v379
    %641 = vst [vmem:[#allocation2 + $0x80] sm:$0xff] %v381
    %642 = vst [vmem:[#allocation2 + $0x88] sm:$0xff] %v492
    %643 = vst [vmem:[#allocation2 + $0x90] sm:$0xff] %v494
    %644 = vst [vmem:[#allocation2 + $0x98] sm:$0xff] %v602
    %645 = vst [vmem:[#allocation2 + $0xa0] sm:$0xff] %v385
    %646 = vst [vmem:[#allocation2 + $0xa8] sm:$0xff] %v387
    %647 = vst [vmem:[#allocation2 + $0xb0] sm:$0xff] %v498
    %648 = vst [vmem:[#allocation2 + $0xb8] sm:$0xff] %v500
    %649 = vst [vmem:[#allocation2 + $0xc0] sm:$0xff] %v607
    %650 = vst [vmem:[#allocation2 + $0xc8] sm:$0xff] %v391
    %651 = vst [vmem:[#allocation2 + $0xd0] sm:$0xff] %v393
    %652 = vst [vmem:[#allocation2 + $0xd8] sm:$0xff] %v504
    %653 = vst [vmem:[#allocation2 + $0xe0] sm:$0xff] %v506
    %654 = vst [vmem:[#allocation2 + $0xe8] sm:$0xff] %v612
    %655 = vst [vmem:[#allocation2 + $0xf0] sm:$0xff] %v397
    %656 = vst [vmem:[#allocation2 + $0xf8] sm:$0xff] %v399
    %657 = vst [vmem:[#allocation2 + $0x100] sm:$0xff] %v510
    %658 = vst [vmem:[#allocation2 + $0x108] sm:$0xff] %v512
    %659 = vst [vmem:[#allocation2 + $0x110] sm:$0xff] %v617
    %660 = vst [vmem:[#allocation2 + $0x118] sm:$0xff] %v403
    %661 = vst [vmem:[#allocation2 + $0x120] sm:$0xff] %v405
    %662 = vst [vmem:[#allocation2 + $0x128] sm:$0xff] %v516
    %663 = vst [vmem:[#allocation2 + $0x130] sm:$0xff] %v518
    %664 = vst [vmem:[#allocation2 + $0x138] sm:$0xff] %v622
    %v665 = vld [vmem:[#allocation2] sm:$0xff]
    %v666 = vld [vmem:[#allocation2 + $0x8] sm:$0xff]
    %v667 = vld [vmem:[#allocation2 + $0x10] sm:$0xff]
    %v668 = vld [vmem:[#allocation2 + $0x18] sm:$0xff]
    %v669 = vld [vmem:[#allocation2 + $0x20] sm:$0xff]
    %v670 = vld [vmem:[#allocation6] sm:$0xff]
    %v672 = vlaneseq
    %v673 = vshrl.u32 %v672, 7
    %v674 = vsub.s32 0, %v673
    %v675 = vrot.slane %v234, %v674
    %v676 = vlaneseq
    %v677 = vshrl.u32 %v676, 7
    %v678 = vsub.s32 1, %v677
    %v679 = vrot.slane %v234, %v678
    %v680 = vlaneseq
    %v681 = vshrl.u32 %v680, 7
    %v682 = vsub.s32 2, %v681
    %v683 = vrot.slane %v234, %v682
    %v684 = vlaneseq
    %v685 = vshrl.u32 %v684, 7
    %v686 = vsub.s32 3, %v685
    %v687 = vrot.slane %v234, %v686
    %v688 = vlaneseq
    %v689 = vshrl.u32 %v688, 7
    %v690 = vsub.s32 4, %v689
    %v691 = vrot.slane %v234, %v690
    %697 = vmatprep.subr.mxu0 %v106
    %698 = vmatpush1.msra.mxu0 %v105
    %699 = vmatprep.subr.mxu0 %v111
    %700 = vmatpush1.msra.mxu0 %v110
    %701 = vmatprep.subr.mxu0 %v116
    %702 = vmatpush1.msra.mxu0 %v115
    %703 = vmatprep.subr.mxu0 %v121
    %704 = vmatpush1.msra.mxu0 %v120
    %705 = vmatprep.subr.mxu0 %v126
    %706 = vmatpush1.msra.mxu0 %v125
    %707 = vmatprep.subr.mxu0 %v131
    %708 = vmatpush1.msra.mxu0 %v130
    %709 = vmatprep.subr.mxu0 %v136
    %710 = vmatpush1.msra.mxu0 %v135
    %711 = vmatprep.subr.mxu0 %v141
    %712 = vmatpush1.msra.mxu0 %v140
    %713 = vmatprep.subr.mxu0 %v146
    %714 = vmatpush1.msra.mxu0 %v145
    %715 = vmatprep.subr.mxu0 %v151
    %716 = vmatpush1.msra.mxu0 %v150
    %717 = vmatprep.subr.mxu0 %v156
    %718 = vmatpush1.msra.mxu0 %v155
    %719 = vmatprep.subr.mxu0 %v161
    %720 = vmatpush1.msra.mxu0 %v160
    %721 = vmatprep.subr.mxu0 %v166
    %722 = vmatpush1.msra.mxu0 %v165
    %723 = vmatprep.subr.mxu0 %v171
    %724 = vmatpush1.msra.mxu0 %v170
    %725 = vmatprep.subr.mxu0 %v176
    %726 = vmatpush1.msra.mxu0 %v175
    %727 = vmatprep.subr.mxu0 %v181
    %728 = vmatpush1.msra.mxu0 %v180
    %729 = vmatprep.subr.mxu0 0.0
    %730 = vmatpush1.msra.mxu0 0.0
    %731 = vmatprep.subr.mxu0 0.0
    %732 = vmatpush1.msra.mxu0 0.0
    %733 = vmatprep.subr.mxu0 0.0
    %734 = vmatpush1.msra.mxu0 0.0
    %735 = vmatprep.subr.mxu0 0.0
    %736 = vmatpush1.msra.mxu0 0.0
    %737 = vmatprep.subr.mxu0 0.0
    %738 = vmatpush1.msra.mxu0 0.0
    %739 = vmatprep.subr.mxu0 0.0
    %740 = vmatpush1.msra.mxu0 0.0
    %741 = vmatprep.subr.mxu0 0.0
    %742 = vmatpush1.msra.mxu0 0.0
    %743 = vmatprep.subr.mxu0 0.0
    %744 = vmatpush1.msra.mxu0 0.0
    %745 = vmatprep.subr.mxu0 0.0
    %746 = vmatpush1.msra.mxu0 0.0
    %747 = vmatprep.subr.mxu0 0.0
    %748 = vmatpush1.msra.mxu0 0.0
    %749 = vmatprep.subr.mxu0 0.0
    %750 = vmatpush1.msra.mxu0 0.0
    %751 = vmatprep.subr.mxu0 0.0
    %752 = vmatpush1.msra.mxu0 0.0
    %753 = vmatprep.subr.mxu0 0.0
    %754 = vmatpush1.msra.mxu0 0.0
    %755 = vmatprep.subr.mxu0 0.0
    %756 = vmatpush1.msra.mxu0 0.0
    %757 = vmatprep.subr.mxu0 0.0
    %758 = vmatpush1.msra.mxu0 0.0
    %759 = vmatprep.subr.mxu0 0.0
    %760 = vmatpush1.msra.mxu0 0.0
    %761 = vmatprep.mubr.f32.mxu0 0.0
    %762 = vmatmul.mubr.f32.gmra.mrb[0].mxu0 0.0
    %v763 = vpop.f32.mrb[0].mxu0
    %v764 = vadd.f32 %v675, %v763
    %v765 = vpop.f32.mrb[0].mxu0
    %v766 = vadd.f32 %v679, %v765
    %767 = vdwg.mxu0
    %768 = vmatprep.subr.mxu0 %v108
    %769 = vmatpush1.msra.mxu0 %v107
    %770 = vmatprep.subr.mxu0 %v113
    %771 = vmatpush1.msra.mxu0 %v112
    %772 = vmatprep.subr.mxu0 %v118
    %773 = vmatpush1.msra.mxu0 %v117
    %774 = vmatprep.subr.mxu0 %v123
    %775 = vmatpush1.msra.mxu0 %v122
    %776 = vmatprep.subr.mxu0 %v128
    %777 = vmatpush1.msra.mxu0 %v127
    %778 = vmatprep.subr.mxu0 %v133
    %779 = vmatpush1.msra.mxu0 %v132
    %780 = vmatprep.subr.mxu0 %v138
    %781 = vmatpush1.msra.mxu0 %v137
    %782 = vmatprep.subr.mxu0 %v143
    %783 = vmatpush1.msra.mxu0 %v142
    %784 = vmatprep.subr.mxu0 %v148
    %785 = vmatpush1.msra.mxu0 %v147
    %786 = vmatprep.subr.mxu0 %v153
    %787 = vmatpush1.msra.mxu0 %v152
    %788 = vmatprep.subr.mxu0 %v158
    %789 = vmatpush1.msra.mxu0 %v157
    %790 = vmatprep.subr.mxu0 %v163
    %791 = vmatpush1.msra.mxu0 %v162
    %792 = vmatprep.subr.mxu0 %v168
    %793 = vmatpush1.msra.mxu0 %v167
    %794 = vmatprep.subr.mxu0 %v173
    %795 = vmatpush1.msra.mxu0 %v172
    %796 = vmatprep.subr.mxu0 %v178
    %797 = vmatpush1.msra.mxu0 %v177
    %798 = vmatprep.subr.mxu0 %v183
    %799 = vmatpush1.msra.mxu0 %v182
    %800 = vmatprep.subr.mxu0 0.0
    %801 = vmatpush1.msra.mxu0 0.0
    %802 = vmatprep.subr.mxu0 0.0
    %803 = vmatpush1.msra.mxu0 0.0
    %804 = vmatprep.subr.mxu0 0.0
    %805 = vmatpush1.msra.mxu0 0.0
    %806 = vmatprep.subr.mxu0 0.0
    %807 = vmatpush1.msra.mxu0 0.0
    %808 = vmatprep.subr.mxu0 0.0
    %809 = vmatpush1.msra.mxu0 0.0
    %810 = vmatprep.subr.mxu0 0.0
    %811 = vmatpush1.msra.mxu0 0.0
    %812 = vmatprep.subr.mxu0 0.0
    %813 = vmatpush1.msra.mxu0 0.0
    %814 = vmatprep.subr.mxu0 0.0
    %815 = vmatpush1.msra.mxu0 0.0
    %816 = vmatprep.subr.mxu0 0.0
    %817 = vmatpush1.msra.mxu0 0.0
    %818 = vmatprep.subr.mxu0 0.0
    %819 = vmatpush1.msra.mxu0 0.0
    %820 = vmatprep.subr.mxu0 0.0
    %821 = vmatpush1.msra.mxu0 0.0
    %822 = vmatprep.subr.mxu0 0.0
    %823 = vmatpush1.msra.mxu0 0.0
    %824 = vmatprep.subr.mxu0 0.0
    %825 = vmatpush1.msra.mxu0 0.0
    %826 = vmatprep.subr.mxu0 0.0
    %827 = vmatpush1.msra.mxu0 0.0
    %828 = vmatprep.subr.mxu0 0.0
    %829 = vmatpush1.msra.mxu0 0.0
    %830 = vmatprep.subr.mxu0 0.0
    %831 = vmatpush1.msra.mxu0 0.0
    %832 = vmatprep.mubr.f32.mxu0 0.0
    %833 = vmatmul.mubr.f32.gmra.mrb[0].mxu0 0.0
    %v834 = vpop.f32.mrb[0].mxu0
    %v835 = vadd.f32 %v683, %v834
    %v836 = vpop.f32.mrb[0].mxu0
    %v837 = vadd.f32 %v687, %v836
    %838 = vdwg.mxu0
    %839 = vmatprep.subr.mxu0 0.0
    %840 = vmatpush1.msra.mxu0 %v109
    %841 = vmatprep.subr.mxu0 0.0
    %842 = vmatpush1.msra.mxu0 %v114
    %843 = vmatprep.subr.mxu0 0.0
    %844 = vmatpush1.msra.mxu0 %v119
    %845 = vmatprep.subr.mxu0 0.0
    %846 = vmatpush1.msra.mxu0 %v124
    %847 = vmatprep.subr.mxu0 0.0
    %848 = vmatpush1.msra.mxu0 %v129
    %849 = vmatprep.subr.mxu0 0.0
    %850 = vmatpush1.msra.mxu0 %v134
    %851 = vmatprep.subr.mxu0 0.0
    %852 = vmatpush1.msra.mxu0 %v139
    %853 = vmatprep.subr.mxu0 0.0
    %854 = vmatpush1.msra.mxu0 %v144
    %855 = vmatprep.subr.mxu0 0.0
    %856 = vmatpush1.msra.mxu0 %v149
    %857 = vmatprep.subr.mxu0 0.0
    %858 = vmatpush1.msra.mxu0 %v154
    %859 = vmatprep.subr.mxu0 0.0
    %860 = vmatpush1.msra.mxu0 %v159
    %861 = vmatprep.subr.mxu0 0.0
    %862 = vmatpush1.msra.mxu0 %v164
    %863 = vmatprep.subr.mxu0 0.0
    %864 = vmatpush1.msra.mxu0 %v169
    %865 = vmatprep.subr.mxu0 0.0
    %866 = vmatpush1.msra.mxu0 %v174
    %867 = vmatprep.subr.mxu0 0.0
    %868 = vmatpush1.msra.mxu0 %v179
    %869 = vmatprep.subr.mxu0 0.0
    %870 = vmatpush1.msra.mxu0 %v184
    %871 = vmatprep.subr.mxu0 0.0
    %872 = vmatpush1.msra.mxu0 0.0
    %873 = vmatprep.subr.mxu0 0.0
    %874 = vmatpush1.msra.mxu0 0.0
    %875 = vmatprep.subr.mxu0 0.0
    %876 = vmatpush1.msra.mxu0 0.0
    %877 = vmatprep.subr.mxu0 0.0
    %878 = vmatpush1.msra.mxu0 0.0
    %879 = vmatprep.subr.mxu0 0.0
    %880 = vmatpush1.msra.mxu0 0.0
    %881 = vmatprep.subr.mxu0 0.0
    %882 = vmatpush1.msra.mxu0 0.0
    %883 = vmatprep.subr.mxu0 0.0
    %884 = vmatpush1.msra.mxu0 0.0
    %885 = vmatprep.subr.mxu0 0.0
    %886 = vmatpush1.msra.mxu0 0.0
    %887 = vmatprep.subr.mxu0 0.0
    %888 = vmatpush1.msra.mxu0 0.0
    %889 = vmatprep.subr.mxu0 0.0
    %890 = vmatpush1.msra.mxu0 0.0
    %891 = vmatprep.subr.mxu0 0.0
    %892 = vmatpush1.msra.mxu0 0.0
    %893 = vmatprep.subr.mxu0 0.0
    %894 = vmatpush1.msra.mxu0 0.0
    %895 = vmatprep.subr.mxu0 0.0
    %896 = vmatpush1.msra.mxu0 0.0
    %897 = vmatprep.subr.mxu0 0.0
    %898 = vmatpush1.msra.mxu0 0.0
    %899 = vmatprep.subr.mxu0 0.0
    %900 = vmatpush1.msra.mxu0 0.0
    %901 = vmatprep.subr.mxu0 0.0
    %902 = vmatpush1.msra.mxu0 0.0
    %903 = vmatprep.mubr.f32.mxu0 0.0
    %904 = vmatmul.mubr.f32.gmra.mrb[0].mxu0 0.0
    %v905 = vpop.f32.mrb[0].mxu0
    %v906 = vadd.f32 %v691, %v905
    %v907 = vpop.f32.mrb[0].mxu0
    %908 = vdwg.mxu0
    %v909 = vadd.f32 %v665, %v764
    %v910 = vadd.f32 %v666, %v766
    %v911 = vmul.f32 %v910, 0.5
    %v912 = vmul.f32 %v911, 1.442695
    %v913 = vpow.pop %v912
    %v914 = vmul.f32 %v670, %v913
    %v915 = vadd.f32 %v909, %v914
    %916 = vmatprep.subr.mxu0 %v186
    %917 = vmatpush1.msra.mxu0 %v185
    %918 = vmatprep.subr.mxu0 %v189
    %919 = vmatpush1.msra.mxu0 %v188
    %920 = vmatprep.subr.mxu0 %v192
    %921 = vmatpush1.msra.mxu0 %v191
    %922 = vmatprep.subr.mxu0 %v195
    %923 = vmatpush1.msra.mxu0 %v194
    %924 = vmatprep.subr.mxu0 %v198
    %925 = vmatpush1.msra.mxu0 %v197
    %926 = vmatprep.subr.mxu0 %v201
    %927 = vmatpush1.msra.mxu0 %v200
    %928 = vmatprep.subr.mxu0 %v204
    %929 = vmatpush1.msra.mxu0 %v203
    %930 = vmatprep.subr.mxu0 %v207
    %931 = vmatpush1.msra.mxu0 %v206
    %932 = vmatprep.subr.mxu0 %v210
    %933 = vmatpush1.msra.mxu0 %v209
    %934 = vmatprep.subr.mxu0 %v213
    %935 = vmatpush1.msra.mxu0 %v212
    %936 = vmatprep.subr.mxu0 %v216
    %937 = vmatpush1.msra.mxu0 %v215
    %938 = vmatprep.subr.mxu0 %v219
    %939 = vmatpush1.msra.mxu0 %v218
    %940 = vmatprep.subr.mxu0 %v222
    %941 = vmatpush1.msra.mxu0 %v221
    %942 = vmatprep.subr.mxu0 %v225
    %943 = vmatpush1.msra.mxu0 %v224
    %944 = vmatprep.subr.mxu0 %v228
    %945 = vmatpush1.msra.mxu0 %v227
    %946 = vmatprep.subr.mxu0 %v231
    %947 = vmatpush1.msra.mxu0 %v230
    %948 = vmatprep.subr.mxu0 0.0
    %949 = vmatpush1.msra.mxu0 0.0
    %950 = vmatprep.subr.mxu0 0.0
    %951 = vmatpush1.msra.mxu0 0.0
    %952 = vmatprep.subr.mxu0 0.0
    %953 = vmatpush1.msra.mxu0 0.0
    %954 = vmatprep.subr.mxu0 0.0
    %955 = vmatpush1.msra.mxu0 0.0
    %956 = vmatprep.subr.mxu0 0.0
    %957 = vmatpush1.msra.mxu0 0.0
    %958 = vmatprep.subr.mxu0 0.0
    %959 = vmatpush1.msra.mxu0 0.0
    %960 = vmatprep.subr.mxu0 0.0
    %961 = vmatpush1.msra.mxu0 0.0
    %962 = vmatprep.subr.mxu0 0.0
    %963 = vmatpush1.msra.mxu0 0.0
    %964 = vmatprep.subr.mxu0 0.0
    %965 = vmatpush1.msra.mxu0 0.0
    %966 = vmatprep.subr.mxu0 0.0
    %967 = vmatpush1.msra.mxu0 0.0
    %968 = vmatprep.subr.mxu0 0.0
    %969 = vmatpush1.msra.mxu0 0.0
    %970 = vmatprep.subr.mxu0 0.0
    %971 = vmatpush1.msra.mxu0 0.0
    %972 = vmatprep.subr.mxu0 0.0
    %973 = vmatpush1.msra.mxu0 0.0
    %974 = vmatprep.subr.mxu0 0.0
    %975 = vmatpush1.msra.mxu0 0.0
    %976 = vmatprep.subr.mxu0 0.0
    %977 = vmatpush1.msra.mxu0 0.0
    %978 = vmatprep.subr.mxu0 0.0
    %979 = vmatpush1.msra.mxu0 0.0
    %980 = vmatprep.mubr.f32.mxu0 0.0
    %981 = vmatmul.mubr.f32.gmra.mrb[0].mxu0 %v915
    %v982 = vpop.f32.mrb[0].mxu0
    %v983 = vadd.f32 0.0, %v982
    %v984 = vpop.f32.mrb[0].mxu0
    %v985 = vadd.f32 0.0, %v984
    %986 = vdwg.mxu0
    %987 = vmatprep.subr.mxu0 0.0
    %988 = vmatpush1.msra.mxu0 %v187
    %989 = vmatprep.subr.mxu0 0.0
    %990 = vmatpush1.msra.mxu0 %v190
    %991 = vmatprep.subr.mxu0 0.0
    %992 = vmatpush1.msra.mxu0 %v193
    %993 = vmatprep.subr.mxu0 0.0
    %994 = vmatpush1.msra.mxu0 %v196
    %995 = vmatprep.subr.mxu0 0.0
    %996 = vmatpush1.msra.mxu0 %v199
    %997 = vmatprep.subr.mxu0 0.0
    %998 = vmatpush1.msra.mxu0 %v202
    %999 = vmatprep.subr.mxu0 0.0
    %1000 = vmatpush1.msra.mxu0 %v205
    %1001 = vmatprep.subr.mxu0 0.0
    %1002 = vmatpush1.msra.mxu0 %v208
    %1003 = vmatprep.subr.mxu0 0.0
    %1004 = vmatpush1.msra.mxu0 %v211
    %1005 = vmatprep.subr.mxu0 0.0
    %1006 = vmatpush1.msra.mxu0 %v214
    %1007 = vmatprep.subr.mxu0 0.0
    %1008 = vmatpush1.msra.mxu0 %v217
    %1009 = vmatprep.subr.mxu0 0.0
    %1010 = vmatpush1.msra.mxu0 %v220
    %1011 = vmatprep.subr.mxu0 0.0
    %1012 = vmatpush1.msra.mxu0 %v223
    %1013 = vmatprep.subr.mxu0 0.0
    %1014 = vmatpush1.msra.mxu0 %v226
    %1015 = vmatprep.subr.mxu0 0.0
    %1016 = vmatpush1.msra.mxu0 %v229
    %1017 = vmatprep.subr.mxu0 0.0
    %1018 = vmatpush1.msra.mxu0 %v232
    %1019 = vmatprep.subr.mxu0 0.0
    %1020 = vmatpush1.msra.mxu0 0.0
    %1021 = vmatprep.subr.mxu0 0.0
    %1022 = vmatpush1.msra.mxu0 0.0
    %1023 = vmatprep.subr.mxu0 0.0
    %1024 = vmatpush1.msra.mxu0 0.0
    %1025 = vmatprep.subr.mxu0 0.0
    %1026 = vmatpush1.msra.mxu0 0.0
    %1027 = vmatprep.subr.mxu0 0.0
    %1028 = vmatpush1.msra.mxu0 0.0
    %1029 = vmatprep.subr.mxu0 0.0
    %1030 = vmatpush1.msra.mxu0 0.0
    %1031 = vmatprep.subr.mxu0 0.0
    %1032 = vmatpush1.msra.mxu0 0.0
    %1033 = vmatprep.subr.mxu0 0.0
    %1034 = vmatpush1.msra.mxu0 0.0
    %1035 = vmatprep.subr.mxu0 0.0
    %1036 = vmatpush1.msra.mxu0 0.0
    %1037 = vmatprep.subr.mxu0 0.0
    %1038 = vmatpush1.msra.mxu0 0.0
    %1039 = vmatprep.subr.mxu0 0.0
    %1040 = vmatpush1.msra.mxu0 0.0
    %1041 = vmatprep.subr.mxu0 0.0
    %1042 = vmatpush1.msra.mxu0 0.0
    %1043 = vmatprep.subr.mxu0 0.0
    %1044 = vmatpush1.msra.mxu0 0.0
    %1045 = vmatprep.subr.mxu0 0.0
    %1046 = vmatpush1.msra.mxu0 0.0
    %1047 = vmatprep.subr.mxu0 0.0
    %1048 = vmatpush1.msra.mxu0 0.0
    %1049 = vmatprep.subr.mxu0 0.0
    %1050 = vmatpush1.msra.mxu0 0.0
    %1051 = vmatprep.mubr.f32.mxu0 0.0
    %1052 = vmatmul.mubr.f32.gmra.mrb[0].mxu0 %v915
    %v1053 = vpop.f32.mrb[0].mxu0
    %v1054 = vadd.f32 0.0, %v1053
    %v1055 = vpop.f32.mrb[0].mxu0
    %1056 = vdwg.mxu0
    %v1057 = vadd.f32 %v667, %v835
    %v1058 = vadd.f32 %v668, %v837
    %v1059 = vadd.f32 %v1057, %v983
    %v1060 = vadd.f32 %v1058, %v985
    %v1061 = vxor.u32 %v1059, 2147483648
    %v1062 = vxor.u32 %v1060, 2147483648
    %v1063 = vmul.f32 %v1061, 1.442695
    %v1064 = vpow.pop %v1063
    %v1065 = vmul.f32 %v1062, 1.442695
    %v1066 = vpow.pop %v1065
    %v1067 = vadd.f32 %v1064, 1.0
    %v1068 = vadd.f32 %v1066, 1.0
    %v1069 = vrcp.pop %v1067
    %v1070 = vmul.f32 1.0, %v1069
    %v1071 = vrcp.pop %v1068
    %v1072 = vmul.f32 1.0, %v1071
    %v1073 = vadd.f32 %v669, %v1054
    %v1074 = vmul.f32 %v1070, %v906
    %v1075 = vadd.f32 %v1073, %v1074
    %v1076 = vtanh.pop %v1075
    %v1077 = vsub.f32 1.0, %v1072
    %v1078 = vmul.f32 %v1077, %v1076
    %v1079 = vmul.f32 %v1072, 0.0
    %v1080 = vadd.f32 %v1078, %v1079
    %s1081 = scalar_lea.vmem [#allocation2], 40
    %v1082 = vld [vmem:[%s1081] sm:$0xff]
    %v1083 = vld [vmem:[%s1081 + $0x8] sm:$0xff]
    %v1084 = vld [vmem:[%s1081 + $0x10] sm:$0xff]
    %v1085 = vld [vmem:[%s1081 + $0x18] sm:$0xff]
    %v1086 = vld [vmem:[%s1081 + $0x20] sm:$0xff]
    %s1087 = scalar_lea.vmem [#allocation6], 8
    %v1088 = vld [vmem:[%s1087] sm:$0xff]
    %1089 = vmatprep.subr.mxu0 %v106
    %1090 = vmatpush1.msra.mxu0 %v105
    %1091 = vmatprep.subr.mxu0 %v111
    %1092 = vmatpush1.msra.mxu0 %v110
    %1093 = vmatprep.subr.mxu0 %v116
    %1094 = vmatpush1.msra.mxu0 %v115
    %1095 = vmatprep.subr.mxu0 %v121
    %1096 = vmatpush1.msra.mxu0 %v120
    %1097 = vmatprep.subr.mxu0 %v126
    %1098 = vmatpush1.msra.mxu0 %v125
    %1099 = vmatprep.subr.mxu0 %v131
    %1100 = vmatpush1.msra.mxu0 %v130
    %1101 = vmatprep.subr.mxu0 %v136
    %1102 = vmatpush1.msra.mxu0 %v135
    %1103 = vmatprep.subr.mxu0 %v141
    %1104 = vmatpush1.msra.mxu0 %v140
    %1105 = vmatprep.subr.mxu0 %v146
    %1106 = vmatpush1.msra.mxu0 %v145
    %1107 = vmatprep.subr.mxu0 %v151
    %1108 = vmatpush1.msra.mxu0 %v150
    %1109 = vmatprep.subr.mxu0 %v156
    %1110 = vmatpush1.msra.mxu0 %v155
    %1111 = vmatprep.subr.mxu0 %v161
    %1112 = vmatpush1.msra.mxu0 %v160
    %1113 = vmatprep.subr.mxu0 %v166
    %1114 = vmatpush1.msra.mxu0 %v165
    %1115 = vmatprep.subr.mxu0 %v171
    %1116 = vmatpush1.msra.mxu0 %v170
    %1117 = vmatprep.subr.mxu0 %v176
    %1118 = vmatpush1.msra.mxu0 %v175
    %1119 = vmatprep.subr.mxu0 %v181
    %1120 = vmatpush1.msra.mxu0 %v180
    %1121 = vmatprep.subr.mxu0 0.0
    %1122 = vmatpush1.msra.mxu0 0.0
    %1123 = vmatprep.subr.mxu0 0.0
    %1124 = vmatpush1.msra.mxu0 0.0
    %1125 = vmatprep.subr.mxu0 0.0
    %1126 = vmatpush1.msra.mxu0 0.0
    %1127 = vmatprep.subr.mxu0 0.0
    %1128 = vmatpush1.msra.mxu0 0.0
    %1129 = vmatprep.subr.mxu0 0.0
    %1130 = vmatpush1.msra.mxu0 0.0
    %1131 = vmatprep.subr.mxu0 0.0
    %1132 = vmatpush1.msra.mxu0 0.0
    %1133 = vmatprep.subr.mxu0 0.0
    %1134 = vmatpush1.msra.mxu0 0.0
    %1135 = vmatprep.subr.mxu0 0.0
    %1136 = vmatpush1.msra.mxu0 0.0
    %1137 = vmatprep.subr.mxu0 0.0
    %1138 = vmatpush1.msra.mxu0 0.0
    %1139 = vmatprep.subr.mxu0 0.0
    %1140 = vmatpush1.msra.mxu0 0.0
    %1141 = vmatprep.subr.mxu0 0.0
    %1142 = vmatpush1.msra.mxu0 0.0
    %1143 = vmatprep.subr.mxu0 0.0
    %1144 = vmatpush1.msra.mxu0 0.0
    %1145 = vmatprep.subr.mxu0 0.0
    %1146 = vmatpush1.msra.mxu0 0.0
    %1147 = vmatprep.subr.mxu0 0.0
    %1148 = vmatpush1.msra.mxu0 0.0
    %1149 = vmatprep.subr.mxu0 0.0
    %1150 = vmatpush1.msra.mxu0 0.0
    %1151 = vmatprep.subr.mxu0 0.0
    %1152 = vmatpush1.msra.mxu0 0.0
    %1153 = vmatprep.mubr.f32.mxu0 0.0
    %1154 = vmatmul.mubr.f32.gmra.mrb[0].mxu0 %v1080
    %v1155 = vpop.f32.mrb[0].mxu0
    %v1156 = vadd.f32 %v675, %v1155
    %v1157 = vpop.f32.mrb[0].mxu0
    %v1158 = vadd.f32 %v679, %v1157
    %1159 = vdwg.mxu0
    %1160 = vmatprep.subr.mxu0 %v108
    %1161 = vmatpush1.msra.mxu0 %v107
    %1162 = vmatprep.subr.mxu0 %v113
    %1163 = vmatpush1.msra.mxu0 %v112
    %1164 = vmatprep.subr.mxu0 %v118
    %1165 = vmatpush1.msra.mxu0 %v117
    %1166 = vmatprep.subr.mxu0 %v123
    %1167 = vmatpush1.msra.mxu0 %v122
    %1168 = vmatprep.subr.mxu0 %v128
    %1169 = vmatpush1.msra.mxu0 %v127
    %1170 = vmatprep.subr.mxu0 %v133
    %1171 = vmatpush1.msra.mxu0 %v132
    %1172 = vmatprep.subr.mxu0 %v138
    %1173 = vmatpush1.msra.mxu0 %v137
    %1174 = vmatprep.subr.mxu0 %v143
    %1175 = vmatpush1.msra.mxu0 %v142
    %1176 = vmatprep.subr.mxu0 %v148
    %1177 = vmatpush1.msra.mxu0 %v147
    %1178 = vmatprep.subr.mxu0 %v153
    %1179 = vmatpush1.msra.mxu0 %v152
    %1180 = vmatprep.subr.mxu0 %v158
    %1181 = vmatpush1.msra.mxu0 %v157
    %1182 = vmatprep.subr.mxu0 %v163
    %1183 = vmatpush1.msra.mxu0 %v162
    %1184 = vmatprep.subr.mxu0 %v168
    %1185 = vmatpush1.msra.mxu0 %v167
    %1186 = vmatprep.subr.mxu0 %v173
    %1187 = vmatpush1.msra.mxu0 %v172
    %1188 = vmatprep.subr.mxu0 %v178
    %1189 = vmatpush1.msra.mxu0 %v177
    %1190 = vmatprep.subr.mxu0 %v183
    %1191 = vmatpush1.msra.mxu0 %v182
    %1192 = vmatprep.subr.mxu0 0.0
    %1193 = vmatpush1.msra.mxu0 0.0
    %1194 = vmatprep.subr.mxu0 0.0
    %1195 = vmatpush1.msra.mxu0 0.0
    %1196 = vmatprep.subr.mxu0 0.0
    %1197 = vmatpush1.msra.mxu0 0.0
    %1198 = vmatprep.subr.mxu0 0.0
    %1199 = vmatpush1.msra.mxu0 0.0
    %1200 = vmatprep.subr.mxu0 0.0
    %1201 = vmatpush1.msra.mxu0 0.0
    %1202 = vmatprep.subr.mxu0 0.0
    %1203 = vmatpush1.msra.mxu0 0.0
    %1204 = vmatprep.subr.mxu0 0.0
    %1205 = vmatpush1.msra.mxu0 0.0
    %1206 = vmatprep.subr.mxu0 0.0
    %1207 = vmatpush1.msra.mxu0 0.0
    %1208 = vmatprep.subr.mxu0 0.0
    %1209 = vmatpush1.msra.mxu0 0.0
    %1210 = vmatprep.subr.mxu0 0.0
    %1211 = vmatpush1.msra.mxu0 0.0
    %1212 = vmatprep.subr.mxu0 0.0
    %1213 = vmatpush1.msra.mxu0 0.0
    %1214 = vmatprep.subr.mxu0 0.0
    %1215 = vmatpush1.msra.mxu0 0.0
    %1216 = vmatprep.subr.mxu0 0.0
    %1217 = vmatpush1.msra.mxu0 0.0
    %1218 = vmatprep.subr.mxu0 0.0
    %1219 = vmatpush1.msra.mxu0 0.0
    %1220 = vmatprep.subr.mxu0 0.0
    %1221 = vmatpush1.msra.mxu0 0.0
    %1222 = vmatprep.subr.mxu0 0.0
    %1223 = vmatpush1.msra.mxu0 0.0
    %1224 = vmatprep.mubr.f32.mxu0 0.0
    %1225 = vmatmul.mubr.f32.gmra.mrb[0].mxu0 %v1080
    %v1226 = vpop.f32.mrb[0].mxu0
    %v1227 = vadd.f32 %v683, %v1226
    %v1228 = vpop.f32.mrb[0].mxu0
    %v1229 = vadd.f32 %v687, %v1228
    %1230 = vdwg.mxu0
    %1231 = vmatprep.subr.mxu0 0.0
    %1232 = vmatpush1.msra.mxu0 %v109
    %1233 = vmatprep.subr.mxu0 0.0
    %1234 = vmatpush1.msra.mxu0 %v114
    %1235 = vmatprep.subr.mxu0 0.0
    %1236 = vmatpush1.msra.mxu0 %v119
    %1237 = vmatprep.subr.mxu0 0.0
    %1238 = vmatpush1.msra.mxu0 %v124
    %1239 = vmatprep.subr.mxu0 0.0
    %1240 = vmatpush1.msra.mxu0 %v129
    %1241 = vmatprep.subr.mxu0 0.0
    %1242 = vmatpush1.msra.mxu0 %v134
    %1243 = vmatprep.subr.mxu0 0.0
    %1244 = vmatpush1.msra.mxu0 %v139
    %1245 = vmatprep.subr.mxu0 0.0
    %1246 = vmatpush1.msra.mxu0 %v144
    %1247 = vmatprep.subr.mxu0 0.0
    %1248 = vmatpush1.msra.mxu0 %v149
    %1249 = vmatprep.subr.mxu0 0.0
    %1250 = vmatpush1.msra.mxu0 %v154
    %1251 = vmatprep.subr.mxu0 0.0
    %1252 = vmatpush1.msra.mxu0 %v159
    %1253 = vmatprep.subr.mxu0 0.0
    %1254 = vmatpush1.msra.mxu0 %v164
    %1255 = vmatprep.subr.mxu0 0.0
    %1256 = vmatpush1.msra.mxu0 %v169
    %1257 = vmatprep.subr.mxu0 0.0
    %1258 = vmatpush1.msra.mxu0 %v174
    %1259 = vmatprep.subr.mxu0 0.0
    %1260 = vmatpush1.msra.mxu0 %v179
    %1261 = vmatprep.subr.mxu0 0.0
    %1262 = vmatpush1.msra.mxu0 %v184
    %1263 = vmatprep.subr.mxu0 0.0
    %1264 = vmatpush1.msra.mxu0 0.0
    %1265 = vmatprep.subr.mxu0 0.0
    %1266 = vmatpush1.msra.mxu0 0.0
    %1267 = vmatprep.subr.mxu0 0.0
    %1268 = vmatpush1.msra.mxu0 0.0
    %1269 = vmatprep.subr.mxu0 0.0
    %1270 = vmatpush1.msra.mxu0 0.0
    %1271 = vmatprep.subr.mxu0 0.0
    %1272 = vmatpush1.msra.mxu0 0.0
    %1273 = vmatprep.subr.mxu0 0.0
    %1274 = vmatpush1.msra.mxu0 0.0
    %1275 = vmatprep.subr.mxu0 0.0
    %1276 = vmatpush1.msra.mxu0 0.0
    %1277 = vmatprep.subr.mxu0 0.0
    %1278 = vmatpush1.msra.mxu0 0.0
    %1279 = vmatprep.subr.mxu0 0.0
    %1280 = vmatpush1.msra.mxu0 0.0
    %1281 = vmatprep.subr.mxu0 0.0
    %1282 = vmatpush1.msra.mxu0 0.0
    %1283 = vmatprep.subr.mxu0 0.0
    %1284 = vmatpush1.msra.mxu0 0.0
    %1285 = vmatprep.subr.mxu0 0.0
    %1286 = vmatpush1.msra.mxu0 0.0
    %1287 = vmatprep.subr.mxu0 0.0
    %1288 = vmatpush1.msra.mxu0 0.0
    %1289 = vmatprep.subr.mxu0 0.0
    %1290 = vmatpush1.msra.mxu0 0.0
    %1291 = vmatprep.subr.mxu0 0.0
    %1292 = vmatpush1.msra.mxu0 0.0
    %1293 = vmatprep.subr.mxu0 0.0
    %1294 = vmatpush1.msra.mxu0 0.0
    %1295 = vmatprep.mubr.f32.mxu0 0.0
    %1296 = vmatmul.mubr.f32.gmra.mrb[0].mxu0 %v1080
    %v1297 = vpop.f32.mrb[0].mxu0
    %v1298 = vadd.f32 %v691, %v1297
    %v1299 = vpop.f32.mrb[0].mxu0
    %1300 = vdwg.mxu0
    %v1301 = vadd.f32 %v1082, %v1156
    %v1302 = vadd.f32 %v1083, %v1158
    %v1303 = vmul.f32 %v1302, 0.5
    %v1304 = vmul.f32 %v1303, 1.442695
    %v1305 = vpow.pop %v1304
    %v1306 = vmul.f32 %v1088, %v1305
    %v1307 = vadd.f32 %v1301, %v1306
    %1308 = vmatprep.subr.mxu0 %v186
    %1309 = vmatpush1.msra.mxu0 %v185
    %1310 = vmatprep.subr.mxu0 %v189
    %1311 = vmatpush1.msra.mxu0 %v188
    %1312 = vmatprep.subr.mxu0 %v192
    %1313 = vmatpush1.msra.mxu0 %v191
    %1314 = vmatprep.subr.mxu0 %v195
    %1315 = vmatpush1.msra.mxu0 %v194
    %1316 = vmatprep.subr.mxu0 %v198
    %1317 = vmatpush1.msra.mxu0 %v197
    %1318 = vmatprep.subr.mxu0 %v201
    %1319 = vmatpush1.msra.mxu0 %v200
    %1320 = vmatprep.subr.mxu0 %v204
    %1321 = vmatpush1.msra.mxu0 %v203
    %1322 = vmatprep.subr.mxu0 %v207
    %1323 = vmatpush1.msra.mxu0 %v206
    %1324 = vmatprep.subr.mxu0 %v210
    %1325 = vmatpush1.msra.mxu0 %v209
    %1326 = vmatprep.subr.mxu0 %v213
    %1327 = vmatpush1.msra.mxu0 %v212
    %1328 = vmatprep.subr.mxu0 %v216
    %1329 = vmatpush1.msra.mxu0 %v215
    %1330 = vmatprep.subr.mxu0 %v219
    %1331 = vmatpush1.msra.mxu0 %v218
    %1332 = vmatprep.subr.mxu0 %v222
    %1333 = vmatpush1.msra.mxu0 %v221
    %1334 = vmatprep.subr.mxu0 %v225
    %1335 = vmatpush1.msra.mxu0 %v224
    %1336 = vmatprep.subr.mxu0 %v228
    %1337 = vmatpush1.msra.mxu0 %v227
    %1338 = vmatprep.subr.mxu0 %v231
    %1339 = vmatpush1.msra.mxu0 %v230
    %1340 = vmatprep.subr.mxu0 0.0
    %1341 = vmatpush1.msra.mxu0 0.0
    %1342 = vmatprep.subr.mxu0 0.0
    %1343 = vmatpush1.msra.mxu0 0.0
    %1344 = vmatprep.subr.mxu0 0.0
    %1345 = vmatpush1.msra.mxu0 0.0
    %1346 = vmatprep.subr.mxu0 0.0
    %1347 = vmatpush1.msra.mxu0 0.0
    %1348 = vmatprep.subr.mxu0 0.0
    %1349 = vmatpush1.msra.mxu0 0.0
    %1350 = vmatprep.subr.mxu0 0.0
    %1351 = vmatpush1.msra.mxu0 0.0
    %1352 = vmatprep.subr.mxu0 0.0
    %1353 = vmatpush1.msra.mxu0 0.0
    %1354 = vmatprep.subr.mxu0 0.0
    %1355 = vmatpush1.msra.mxu0 0.0
    %1356 = vmatprep.subr.mxu0 0.0
    %1357 = vmatpush1.msra.mxu0 0.0
    %1358 = vmatprep.subr.mxu0 0.0
    %1359 = vmatpush1.msra.mxu0 0.0
    %1360 = vmatprep.subr.mxu0 0.0
    %1361 = vmatpush1.msra.mxu0 0.0
    %1362 = vmatprep.subr.mxu0 0.0
    %1363 = vmatpush1.msra.mxu0 0.0
    %1364 = vmatprep.subr.mxu0 0.0
    %1365 = vmatpush1.msra.mxu0 0.0
    %1366 = vmatprep.subr.mxu0 0.0
    %1367 = vmatpush1.msra.mxu0 0.0
    %1368 = vmatprep.subr.mxu0 0.0
    %1369 = vmatpush1.msra.mxu0 0.0
    %1370 = vmatprep.subr.mxu0 0.0
    %1371 = vmatpush1.msra.mxu0 0.0
    %1372 = vmatprep.mubr.f32.mxu0 0.0
    %1373 = vmatmul.mubr.f32.gmra.mrb[0].mxu0 %v1307
    %v1374 = vpop.f32.mrb[0].mxu0
    %v1375 = vadd.f32 0.0, %v1374
    %v1376 = vpop.f32.mrb[0].mxu0
    %v1377 = vadd.f32 0.0, %v1376
    %1378 = vdwg.mxu0
    %1379 = vmatprep.subr.mxu0 0.0
    %1380 = vmatpush1.msra.mxu0 %v187
    %1381 = vmatprep.subr.mxu0 0.0
    %1382 = vmatpush1.msra.mxu0 %v190
    %1383 = vmatprep.subr.mxu0 0.0
    %1384 = vmatpush1.msra.mxu0 %v193
    %1385 = vmatprep.subr.mxu0 0.0
    %1386 = vmatpush1.msra.mxu0 %v196
    %1387 = vmatprep.subr.mxu0 0.0
    %1388 = vmatpush1.msra.mxu0 %v199
    %1389 = vmatprep.subr.mxu0 0.0
    %1390 = vmatpush1.msra.mxu0 %v202
    %1391 = vmatprep.subr.mxu0 0.0
    %1392 = vmatpush1.msra.mxu0 %v205
    %1393 = vmatprep.subr.mxu0 0.0
    %1394 = vmatpush1.msra.mxu0 %v208
    %1395 = vmatprep.subr.mxu0 0.0
    %1396 = vmatpush1.msra.mxu0 %v211
    %1397 = vmatprep.subr.mxu0 0.0
    %1398 = vmatpush1.msra.mxu0 %v214
    %1399 = vmatprep.subr.mxu0 0.0
    %1400 = vmatpush1.msra.mxu0 %v217
    %1401 = vmatprep.subr.mxu0 0.0
    %1402 = vmatpush1.msra.mxu0 %v220
    %1403 = vmatprep.subr.mxu0 0.0
    %1404 = vmatpush1.msra.mxu0 %v223
    %1405 = vmatprep.subr.mxu0 0.0
    %1406 = vmatpush1.msra.mxu0 %v226
    %1407 = vmatprep.subr.mxu0 0.0
    %1408 = vmatpush1.msra.mxu0 %v229
    %1409 = vmatprep.subr.mxu0 0.0
    %1410 = vmatpush1.msra.mxu0 %v232
    %1411 = vmatprep.subr.mxu0 0.0
    %1412 = vmatpush1.msra.mxu0 0.0
    %1413 = vmatprep.subr.mxu0 0.0
    %1414 = vmatpush1.msra.mxu0 0.0
    %1415 = vmatprep.subr.mxu0 0.0
    %1416 = vmatpush1.msra.mxu0 0.0
    %1417 = vmatprep.subr.mxu0 0.0
    %1418 = vmatpush1.msra.mxu0 0.0
    %1419 = vmatprep.subr.mxu0 0.0
    %1420 = vmatpush1.msra.mxu0 0.0
    %1421 = vmatprep.subr.mxu0 0.0
    %1422 = vmatpush1.msra.mxu0 0.0
    %1423 = vmatprep.subr.mxu0 0.0
    %1424 = vmatpush1.msra.mxu0 0.0
    %1425 = vmatprep.subr.mxu0 0.0
    %1426 = vmatpush1.msra.mxu0 0.0
    %1427 = vmatprep.subr.mxu0 0.0
    %1428 = vmatpush1.msra.mxu0 0.0
    %1429 = vmatprep.subr.mxu0 0.0
    %1430 = vmatpush1.msra.mxu0 0.0
    %1431 = vmatprep.subr.mxu0 0.0
    %1432 = vmatpush1.msra.mxu0 0.0
    %1433 = vmatprep.subr.mxu0 0.0
    %1434 = vmatpush1.msra.mxu0 0.0
    %1435 = vmatprep.subr.mxu0 0.0
    %1436 = vmatpush1.msra.mxu0 0.0
    %1437 = vmatprep.subr.mxu0 0.0
    %1438 = vmatpush1.msra.mxu0 0.0
    %1439 = vmatprep.subr.mxu0 0.0
    %1440 = vmatpush1.msra.mxu0 0.0
    %1441 = vmatprep.subr.mxu0 0.0
    %1442 = vmatpush1.msra.mxu0 0.0
    %1443 = vmatprep.mubr.f32.mxu0 0.0
    %1444 = vmatmul.mubr.f32.gmra.mrb[0].mxu0 %v1307
    %v1445 = vpop.f32.mrb[0].mxu0
    %v1446 = vadd.f32 0.0, %v1445
    %v1447 = vpop.f32.mrb[0].mxu0
    %1448 = vdwg.mxu0
    %v1449 = vadd.f32 %v1084, %v1227
    %v1450 = vadd.f32 %v1085, %v1229
    %v1451 = vadd.f32 %v1449, %v1375
    %v1452 = vadd.f32 %v1450, %v1377
    %v1453 = vxor.u32 %v1451, 2147483648
    %v1454 = vxor.u32 %v1452, 2147483648
    %v1455 = vmul.f32 %v1453, 1.442695
    %v1456 = vpow.pop %v1455
    %v1457 = vmul.f32 %v1454, 1.442695
    %v1458 = vpow.pop %v1457
    %v1459 = vadd.f32 %v1456, 1.0
    %v1460 = vadd.f32 %v1458, 1.0
    %v1461 = vrcp.pop %v1459
    %v1462 = vmul.f32 1.0, %v1461
    %v1463 = vrcp.pop %v1460
    %v1464 = vmul.f32 1.0, %v1463
    %v1465 = vadd.f32 %v1086, %v1446
    %v1466 = vmul.f32 %v1462, %v1298
    %v1467 = vadd.f32 %v1465, %v1466
    %v1468 = vtanh.pop %v1467
    %v1469 = vsub.f32 1.0, %v1464
    %v1470 = vmul.f32 %v1469, %v1468
    %v1471 = vmul.f32 %v1464, %v1080
    %v1472 = vadd.f32 %v1470, %v1471
    %s1473 = scalar_lea.vmem [#allocation2], 80
    %v1474 = vld [vmem:[%s1473] sm:$0xff]
    %v1475 = vld [vmem:[%s1473 + $0x8] sm:$0xff]
    %v1476 = vld [vmem:[%s1473 + $0x10] sm:$0xff]
    %v1477 = vld [vmem:[%s1473 + $0x18] sm:$0xff]
    %v1478 = vld [vmem:[%s1473 + $0x20] sm:$0xff]
    %s1479 = scalar_lea.vmem [#allocation6], 16
    %v1480 = vld [vmem:[%s1479] sm:$0xff]
    %1481 = vmatprep.subr.mxu0 %v106
    %1482 = vmatpush1.msra.mxu0 %v105
    %1483 = vmatprep.subr.mxu0 %v111
    %1484 = vmatpush1.msra.mxu0 %v110
    %1485 = vmatprep.subr.mxu0 %v116
    %1486 = vmatpush1.msra.mxu0 %v115
    %1487 = vmatprep.subr.mxu0 %v121
    %1488 = vmatpush1.msra.mxu0 %v120
    %1489 = vmatprep.subr.mxu0 %v126
    %1490 = vmatpush1.msra.mxu0 %v125
    %1491 = vmatprep.subr.mxu0 %v131
    %1492 = vmatpush1.msra.mxu0 %v130
    %1493 = vmatprep.subr.mxu0 %v136
    %1494 = vmatpush1.msra.mxu0 %v135
    %1495 = vmatprep.subr.mxu0 %v141
    %1496 = vmatpush1.msra.mxu0 %v140
    %1497 = vmatprep.subr.mxu0 %v146
    %1498 = vmatpush1.msra.mxu0 %v145
    %1499 = vmatprep.subr.mxu0 %v151
    %1500 = vmatpush1.msra.mxu0 %v150
    %1501 = vmatprep.subr.mxu0 %v156
    %1502 = vmatpush1.msra.mxu0 %v155
    %1503 = vmatprep.subr.mxu0 %v161
    %1504 = vmatpush1.msra.mxu0 %v160
    %1505 = vmatprep.subr.mxu0 %v166
    %1506 = vmatpush1.msra.mxu0 %v165
    %1507 = vmatprep.subr.mxu0 %v171
    %1508 = vmatpush1.msra.mxu0 %v170
    %1509 = vmatprep.subr.mxu0 %v176
    %1510 = vmatpush1.msra.mxu0 %v175
    %1511 = vmatprep.subr.mxu0 %v181
    %1512 = vmatpush1.msra.mxu0 %v180
    %1513 = vmatprep.subr.mxu0 0.0
    %1514 = vmatpush1.msra.mxu0 0.0
    %1515 = vmatprep.subr.mxu0 0.0
    %1516 = vmatpush1.msra.mxu0 0.0
    %1517 = vmatprep.subr.mxu0 0.0
    %1518 = vmatpush1.msra.mxu0 0.0
    %1519 = vmatprep.subr.mxu0 0.0
    %1520 = vmatpush1.msra.mxu0 0.0
    %1521 = vmatprep.subr.mxu0 0.0
    %1522 = vmatpush1.msra.mxu0 0.0
    %1523 = vmatprep.subr.mxu0 0.0
    %1524 = vmatpush1.msra.mxu0 0.0
    %1525 = vmatprep.subr.mxu0 0.0
    %1526 = vmatpush1.msra.mxu0 0.0
    %1527 = vmatprep.subr.mxu0 0.0
    %1528 = vmatpush1.msra.mxu0 0.0
    %1529 = vmatprep.subr.mxu0 0.0
    %1530 = vmatpush1.msra.mxu0 0.0
    %1531 = vmatprep.subr.mxu0 0.0
    %1532 = vmatpush1.msra.mxu0 0.0
    %1533 = vmatprep.subr.mxu0 0.0
    %1534 = vmatpush1.msra.mxu0 0.0
    %1535 = vmatprep.subr.mxu0 0.0
    %1536 = vmatpush1.msra.mxu0 0.0
    %1537 = vmatprep.subr.mxu0 0.0
    %1538 = vmatpush1.msra.mxu0 0.0
    %1539 = vmatprep.subr.mxu0 0.0
    %1540 = vmatpush1.msra.mxu0 0.0
    %1541 = vmatprep.subr.mxu0 0.0
    %1542 = vmatpush1.msra.mxu0 0.0
    %1543 = vmatprep.subr.mxu0 0.0
    %1544 = vmatpush1.msra.mxu0 0.0
    %1545 = vmatprep.mubr.f32.mxu0 0.0
    %1546 = vmatmul.mubr.f32.gmra.mrb[0].mxu0 %v1472
    %v1547 = vpop.f32.mrb[0].mxu0
    %v1548 = vadd.f32 %v675, %v1547
    %v1549 = vpop.f32.mrb[0].mxu0
    %v1550 = vadd.f32 %v679, %v1549
    %1551 = vdwg.mxu0
    %1552 = vmatprep.subr.mxu0 %v108
    %1553 = vmatpush1.msra.mxu0 %v107
    %1554 = vmatprep.subr.mxu0 %v113
    %1555 = vmatpush1.msra.mxu0 %v112
    %1556 = vmatprep.subr.mxu0 %v118
    %1557 = vmatpush1.msra.mxu0 %v117
    %1558 = vmatprep.subr.mxu0 %v123
    %1559 = vmatpush1.msra.mxu0 %v122
    %1560 = vmatprep.subr.mxu0 %v128
    %1561 = vmatpush1.msra.mxu0 %v127
    %1562 = vmatprep.subr.mxu0 %v133
    %1563 = vmatpush1.msra.mxu0 %v132
    %1564 = vmatprep.subr.mxu0 %v138
    %1565 = vmatpush1.msra.mxu0 %v137
    %1566 = vmatprep.subr.mxu0 %v143
    %1567 = vmatpush1.msra.mxu0 %v142
    %1568 = vmatprep.subr.mxu0 %v148
    %1569 = vmatpush1.msra.mxu0 %v147
    %1570 = vmatprep.subr.mxu0 %v153
    %1571 = vmatpush1.msra.mxu0 %v152
    %1572 = vmatprep.subr.mxu0 %v158
    %1573 = vmatpush1.msra.mxu0 %v157
    %1574 = vmatprep.subr.mxu0 %v163
    %1575 = vmatpush1.msra.mxu0 %v162
    %1576 = vmatprep.subr.mxu0 %v168
    %1577 = vmatpush1.msra.mxu0 %v167
    %1578 = vmatprep.subr.mxu0 %v173
    %1579 = vmatpush1.msra.mxu0 %v172
    %1580 = vmatprep.subr.mxu0 %v178
    %1581 = vmatpush1.msra.mxu0 %v177
    %1582 = vmatprep.subr.mxu0 %v183
    %1583 = vmatpush1.msra.mxu0 %v182
    %1584 = vmatprep.subr.mxu0 0.0
    %1585 = vmatpush1.msra.mxu0 0.0
    %1586 = vmatprep.subr.mxu0 0.0
    %1587 = vmatpush1.msra.mxu0 0.0
    %1588 = vmatprep.subr.mxu0 0.0
    %1589 = vmatpush1.msra.mxu0 0.0
    %1590 = vmatprep.subr.mxu0 0.0
    %1591 = vmatpush1.msra.mxu0 0.0
    %1592 = vmatprep.subr.mxu0 0.0
    %1593 = vmatpush1.msra.mxu0 0.0
    %1594 = vmatprep.subr.mxu0 0.0
    %1595 = vmatpush1.msra.mxu0 0.0
    %1596 = vmatprep.subr.mxu0 0.0
    %1597 = vmatpush1.msra.mxu0 0.0
    %1598 = vmatprep.subr.mxu0 0.0
    %1599 = vmatpush1.msra.mxu0 0.0
    %1600 = vmatprep.subr.mxu0 0.0
    %1601 = vmatpush1.msra.mxu0 0.0
    %1602 = vmatprep.subr.mxu0 0.0
    %1603 = vmatpush1.msra.mxu0 0.0
    %1604 = vmatprep.subr.mxu0 0.0
    %1605 = vmatpush1.msra.mxu0 0.0
    %1606 = vmatprep.subr.mxu0 0.0
    %1607 = vmatpush1.msra.mxu0 0.0
    %1608 = vmatprep.subr.mxu0 0.0
    %1609 = vmatpush1.msra.mxu0 0.0
    %1610 = vmatprep.subr.mxu0 0.0
    %1611 = vmatpush1.msra.mxu0 0.0
    %1612 = vmatprep.subr.mxu0 0.0
    %1613 = vmatpush1.msra.mxu0 0.0
    %1614 = vmatprep.subr.mxu0 0.0
    %1615 = vmatpush1.msra.mxu0 0.0
    %1616 = vmatprep.mubr.f32.mxu0 0.0
    %1617 = vmatmul.mubr.f32.gmra.mrb[0].mxu0 %v1472
    %v1618 = vpop.f32.mrb[0].mxu0
    %v1619 = vadd.f32 %v683, %v1618
    %v1620 = vpop.f32.mrb[0].mxu0
    %v1621 = vadd.f32 %v687, %v1620
    %1622 = vdwg.mxu0
    %1623 = vmatprep.subr.mxu0 0.0
    %1624 = vmatpush1.msra.mxu0 %v109
    %1625 = vmatprep.subr.mxu0 0.0
    %1626 = vmatpush1.msra.mxu0 %v114
    %1627 = vmatprep.subr.mxu0 0.0
    %1628 = vmatpush1.msra.mxu0 %v119
    %1629 = vmatprep.subr.mxu0 0.0
    %1630 = vmatpush1.msra.mxu0 %v124
    %1631 = vmatprep.subr.mxu0 0.0
    %1632 = vmatpush1.msra.mxu0 %v129
    %1633 = vmatprep.subr.mxu0 0.0
    %1634 = vmatpush1.msra.mxu0 %v134
    %1635 = vmatprep.subr.mxu0 0.0
    %1636 = vmatpush1.msra.mxu0 %v139
    %1637 = vmatprep.subr.mxu0 0.0
    %1638 = vmatpush1.msra.mxu0 %v144
    %1639 = vmatprep.subr.mxu0 0.0
    %1640 = vmatpush1.msra.mxu0 %v149
    %1641 = vmatprep.subr.mxu0 0.0
    %1642 = vmatpush1.msra.mxu0 %v154
    %1643 = vmatprep.subr.mxu0 0.0
    %1644 = vmatpush1.msra.mxu0 %v159
    %1645 = vmatprep.subr.mxu0 0.0
    %1646 = vmatpush1.msra.mxu0 %v164
    %1647 = vmatprep.subr.mxu0 0.0
    %1648 = vmatpush1.msra.mxu0 %v169
    %1649 = vmatprep.subr.mxu0 0.0
    %1650 = vmatpush1.msra.mxu0 %v174
    %1651 = vmatprep.subr.mxu0 0.0
    %1652 = vmatpush1.msra.mxu0 %v179
    %1653 = vmatprep.subr.mxu0 0.0
    %1654 = vmatpush1.msra.mxu0 %v184
    %1655 = vmatprep.subr.mxu0 0.0
    %1656 = vmatpush1.msra.mxu0 0.0
    %1657 = vmatprep.subr.mxu0 0.0
    %1658 = vmatpush1.msra.mxu0 0.0
    %1659 = vmatprep.subr.mxu0 0.0
    %1660 = vmatpush1.msra.mxu0 0.0
    %1661 = vmatprep.subr.mxu0 0.0
    %1662 = vmatpush1.msra.mxu0 0.0
    %1663 = vmatprep.subr.mxu0 0.0
    %1664 = vmatpush1.msra.mxu0 0.0
    %1665 = vmatprep.subr.mxu0 0.0
    %1666 = vmatpush1.msra.mxu0 0.0
    %1667 = vmatprep.subr.mxu0 0.0
    %1668 = vmatpush1.msra.mxu0 0.0
    %1669 = vmatprep.subr.mxu0 0.0
    %1670 = vmatpush1.msra.mxu0 0.0
    %1671 = vmatprep.subr.mxu0 0.0
    %1672 = vmatpush1.msra.mxu0 0.0
    %1673 = vmatprep.subr.mxu0 0.0
    %1674 = vmatpush1.msra.mxu0 0.0
    %1675 = vmatprep.subr.mxu0 0.0
    %1676 = vmatpush1.msra.mxu0 0.0
    %1677 = vmatprep.subr.mxu0 0.0
    %1678 = vmatpush1.msra.mxu0 0.0
    %1679 = vmatprep.subr.mxu0 0.0
    %1680 = vmatpush1.msra.mxu0 0.0
    %1681 = vmatprep.subr.mxu0 0.0
    %1682 = vmatpush1.msra.mxu0 0.0
    %1683 = vmatprep.subr.mxu0 0.0
    %1684 = vmatpush1.msra.mxu0 0.0
    %1685 = vmatprep.subr.mxu0 0.0
    %1686 = vmatpush1.msra.mxu0 0.0
    %1687 = vmatprep.mubr.f32.mxu0 0.0
    %1688 = vmatmul.mubr.f32.gmra.mrb[0].mxu0 %v1472
    %v1689 = vpop.f32.mrb[0].mxu0
    %v1690 = vadd.f32 %v691, %v1689
    %v1691 = vpop.f32.mrb[0].mxu0
    %1692 = vdwg.mxu0
    %v1693 = vadd.f32 %v1474, %v1548
    %v1694 = vadd.f32 %v1475, %v1550
    %v1695 = vmul.f32 %v1694, 0.5
    %v1696 = vmul.f32 %v1695, 1.442695
    %v1697 = vpow.pop %v1696
    %v1698 = vmul.f32 %v1480, %v1697
    %v1699 = vadd.f32 %v1693, %v1698
    %1700 = vmatprep.subr.mxu0 %v186
    %1701 = vmatpush1.msra.mxu0 %v185
    %1702 = vmatprep.subr.mxu0 %v189
    %1703 = vmatpush1.msra.mxu0 %v188
    %1704 = vmatprep.subr.mxu0 %v192
    %1705 = vmatpush1.msra.mxu0 %v191
    %1706 = vmatprep.subr.mxu0 %v195
    %1707 = vmatpush1.msra.mxu0 %v194
    %1708 = vmatprep.subr.mxu0 %v198
    %1709 = vmatpush1.msra.mxu0 %v197
    %1710 = vmatprep.subr.mxu0 %v201
    %1711 = vmatpush1.msra.mxu0 %v200
    %1712 = vmatprep.subr.mxu0 %v204
    %1713 = vmatpush1.msra.mxu0 %v203
    %1714 = vmatprep.subr.mxu0 %v207
    %1715 = vmatpush1.msra.mxu0 %v206
    %1716 = vmatprep.subr.mxu0 %v210
    %1717 = vmatpush1.msra.mxu0 %v209
    %1718 = vmatprep.subr.mxu0 %v213
    %1719 = vmatpush1.msra.mxu0 %v212
    %1720 = vmatprep.subr.mxu0 %v216
    %1721 = vmatpush1.msra.mxu0 %v215
    %1722 = vmatprep.subr.mxu0 %v219
    %1723 = vmatpush1.msra.mxu0 %v218
    %1724 = vmatprep.subr.mxu0 %v222
    %1725 = vmatpush1.msra.mxu0 %v221
    %1726 = vmatprep.subr.mxu0 %v225
    %1727 = vmatpush1.msra.mxu0 %v224
    %1728 = vmatprep.subr.mxu0 %v228
    %1729 = vmatpush1.msra.mxu0 %v227
    %1730 = vmatprep.subr.mxu0 %v231
    %1731 = vmatpush1.msra.mxu0 %v230
    %1732 = vmatprep.subr.mxu0 0.0
    %1733 = vmatpush1.msra.mxu0 0.0
    %1734 = vmatprep.subr.mxu0 0.0
    %1735 = vmatpush1.msra.mxu0 0.0
    %1736 = vmatprep.subr.mxu0 0.0
    %1737 = vmatpush1.msra.mxu0 0.0
    %1738 = vmatprep.subr.mxu0 0.0
    %1739 = vmatpush1.msra.mxu0 0.0
    %1740 = vmatprep.subr.mxu0 0.0
    %1741 = vmatpush1.msra.mxu0 0.0
    %1742 = vmatprep.subr.mxu0 0.0
    %1743 = vmatpush1.msra.mxu0 0.0
    %1744 = vmatprep.subr.mxu0 0.0
    %1745 = vmatpush1.msra.mxu0 0.0
    %1746 = vmatprep.subr.mxu0 0.0
    %1747 = vmatpush1.msra.mxu0 0.0
    %1748 = vmatprep.subr.mxu0 0.0
    %1749 = vmatpush1.msra.mxu0 0.0
    %1750 = vmatprep.subr.mxu0 0.0
    %1751 = vmatpush1.msra.mxu0 0.0
    %1752 = vmatprep.subr.mxu0 0.0
    %1753 = vmatpush1.msra.mxu0 0.0
    %1754 = vmatprep.subr.mxu0 0.0
    %1755 = vmatpush1.msra.mxu0 0.0
    %1756 = vmatprep.subr.mxu0 0.0
    %1757 = vmatpush1.msra.mxu0 0.0
    %1758 = vmatprep.subr.mxu0 0.0
    %1759 = vmatpush1.msra.mxu0 0.0
    %1760 = vmatprep.subr.mxu0 0.0
    %1761 = vmatpush1.msra.mxu0 0.0
    %1762 = vmatprep.subr.mxu0 0.0
    %1763 = vmatpush1.msra.mxu0 0.0
    %1764 = vmatprep.mubr.f32.mxu0 0.0
    %1765 = vmatmul.mubr.f32.gmra.mrb[0].mxu0 %v1699
    %v1766 = vpop.f32.mrb[0].mxu0
    %v1767 = vadd.f32 0.0, %v1766
    %v1768 = vpop.f32.mrb[0].mxu0
    %v1769 = vadd.f32 0.0, %v1768
    %1770 = vdwg.mxu0
    %1771 = vmatprep.subr.mxu0 0.0
    %1772 = vmatpush1.msra.mxu0 %v187
    %1773 = vmatprep.subr.mxu0 0.0
    %1774 = vmatpush1.msra.mxu0 %v190
    %1775 = vmatprep.subr.mxu0 0.0
    %1776 = vmatpush1.msra.mxu0 %v193
    %1777 = vmatprep.subr.mxu0 0.0
    %1778 = vmatpush1.msra.mxu0 %v196
    %1779 = vmatprep.subr.mxu0 0.0
    %1780 = vmatpush1.msra.mxu0 %v199
    %1781 = vmatprep.subr.mxu0 0.0
    %1782 = vmatpush1.msra.mxu0 %v202
    %1783 = vmatprep.subr.mxu0 0.0
    %1784 = vmatpush1.msra.mxu0 %v205
    %1785 = vmatprep.subr.mxu0 0.0
    %1786 = vmatpush1.msra.mxu0 %v208
    %1787 = vmatprep.subr.mxu0 0.0
    %1788 = vmatpush1.msra.mxu0 %v211
    %1789 = vmatprep.subr.mxu0 0.0
    %1790 = vmatpush1.msra.mxu0 %v214
    %1791 = vmatprep.subr.mxu0 0.0
    %1792 = vmatpush1.msra.mxu0 %v217
    %1793 = vmatprep.subr.mxu0 0.0
    %1794 = vmatpush1.msra.mxu0 %v220
    %1795 = vmatprep.subr.mxu0 0.0
    %1796 = vmatpush1.msra.mxu0 %v223
    %1797 = vmatprep.subr.mxu0 0.0
    %1798 = vmatpush1.msra.mxu0 %v226
    %1799 = vmatprep.subr.mxu0 0.0
    %1800 = vmatpush1.msra.mxu0 %v229
    %1801 = vmatprep.subr.mxu0 0.0
    %1802 = vmatpush1.msra.mxu0 %v232
    %1803 = vmatprep.subr.mxu0 0.0
    %1804 = vmatpush1.msra.mxu0 0.0
    %1805 = vmatprep.subr.mxu0 0.0
    %1806 = vmatpush1.msra.mxu0 0.0
    %1807 = vmatprep.subr.mxu0 0.0
    %1808 = vmatpush1.msra.mxu0 0.0
    %1809 = vmatprep.subr.mxu0 0.0
    %1810 = vmatpush1.msra.mxu0 0.0
    %1811 = vmatprep.subr.mxu0 0.0
    %1812 = vmatpush1.msra.mxu0 0.0
    %1813 = vmatprep.subr.mxu0 0.0
    %1814 = vmatpush1.msra.mxu0 0.0
    %1815 = vmatprep.subr.mxu0 0.0
    %1816 = vmatpush1.msra.mxu0 0.0
    %1817 = vmatprep.subr.mxu0 0.0
    %1818 = vmatpush1.msra.mxu0 0.0
    %1819 = vmatprep.subr.mxu0 0.0
    %1820 = vmatpush1.msra.mxu0 0.0
    %1821 = vmatprep.subr.mxu0 0.0
    %1822 = vmatpush1.msra.mxu0 0.0
    %1823 = vmatprep.subr.mxu0 0.0
    %1824 = vmatpush1.msra.mxu0 0.0
    %1825 = vmatprep.subr.mxu0 0.0
    %1826 = vmatpush1.msra.mxu0 0.0
    %1827 = vmatprep.subr.mxu0 0.0
    %1828 = vmatpush1.msra.mxu0 0.0
    %1829 = vmatprep.subr.mxu0 0.0
    %1830 = vmatpush1.msra.mxu0 0.0
    %1831 = vmatprep.subr.mxu0 0.0
    %1832 = vmatpush1.msra.mxu0 0.0
    %1833 = vmatprep.subr.mxu0 0.0
    %1834 = vmatpush1.msra.mxu0 0.0
    %1835 = vmatprep.mubr.f32.mxu0 0.0
    %1836 = vmatmul.mubr.f32.gmra.mrb[0].mxu0 %v1699
    %v1837 = vpop.f32.mrb[0].mxu0
    %v1838 = vadd.f32 0.0, %v1837
    %v1839 = vpop.f32.mrb[0].mxu0
    %1840 = vdwg.mxu0
    %v1841 = vadd.f32 %v1476, %v1619
    %v1842 = vadd.f32 %v1477, %v1621
    %v1843 = vadd.f32 %v1841, %v1767
    %v1844 = vadd.f32 %v1842, %v1769
    %v1845 = vxor.u32 %v1843, 2147483648
    %v1846 = vxor.u32 %v1844, 2147483648
    %v1847 = vmul.f32 %v1845, 1.442695
    %v1848 = vpow.pop %v1847
    %v1849 = vmul.f32 %v1846, 1.442695
    %v1850 = vpow.pop %v1849
    %v1851 = vadd.f32 %v1848, 1.0
    %v1852 = vadd.f32 %v1850, 1.0
    %v1853 = vrcp.pop %v1851
    %v1854 = vmul.f32 1.0, %v1853
    %v1855 = vrcp.pop %v1852
    %v1856 = vmul.f32 1.0, %v1855
    %v1857 = vadd.f32 %v1478, %v1838
    %v1858 = vmul.f32 %v1854, %v1690
    %v1859 = vadd.f32 %v1857, %v1858
    %v1860 = vtanh.pop %v1859
    %v1861 = vsub.f32 1.0, %v1856
    %v1862 = vmul.f32 %v1861, %v1860
    %v1863 = vmul.f32 %v1856, %v1472
    %v1864 = vadd.f32 %v1862, %v1863
    %s1865 = scalar_lea.vmem [#allocation2], 120
    %v1866 = vld [vmem:[%s1865] sm:$0xff]
    %v1867 = vld [vmem:[%s1865 + $0x8] sm:$0xff]
    %v1868 = vld [vmem:[%s1865 + $0x10] sm:$0xff]
    %v1869 = vld [vmem:[%s1865 + $0x18] sm:$0xff]
    %v1870 = vld [vmem:[%s1865 + $0x20] sm:$0xff]
    %s1871 = scalar_lea.vmem [#allocation6], 24
    %v1872 = vld [vmem:[%s1871] sm:$0xff]
    %1873 = vmatprep.subr.mxu0 %v106
    %1874 = vmatpush1.msra.mxu0 %v105
    %1875 = vmatprep.subr.mxu0 %v111
    %1876 = vmatpush1.msra.mxu0 %v110
    %1877 = vmatprep.subr.mxu0 %v116
    %1878 = vmatpush1.msra.mxu0 %v115
    %1879 = vmatprep.subr.mxu0 %v121
    %1880 = vmatpush1.msra.mxu0 %v120
    %1881 = vmatprep.subr.mxu0 %v126
    %1882 = vmatpush1.msra.mxu0 %v125
    %1883 = vmatprep.subr.mxu0 %v131
    %1884 = vmatpush1.msra.mxu0 %v130
    %1885 = vmatprep.subr.mxu0 %v136
    %1886 = vmatpush1.msra.mxu0 %v135
    %1887 = vmatprep.subr.mxu0 %v141
    %1888 = vmatpush1.msra.mxu0 %v140
    %1889 = vmatprep.subr.mxu0 %v146
    %1890 = vmatpush1.msra.mxu0 %v145
    %1891 = vmatprep.subr.mxu0 %v151
    %1892 = vmatpush1.msra.mxu0 %v150
    %1893 = vmatprep.subr.mxu0 %v156
    %1894 = vmatpush1.msra.mxu0 %v155
    %1895 = vmatprep.subr.mxu0 %v161
    %1896 = vmatpush1.msra.mxu0 %v160
    %1897 = vmatprep.subr.mxu0 %v166
    %1898 = vmatpush1.msra.mxu0 %v165
    %1899 = vmatprep.subr.mxu0 %v171
    %1900 = vmatpush1.msra.mxu0 %v170
    %1901 = vmatprep.subr.mxu0 %v176
    %1902 = vmatpush1.msra.mxu0 %v175
    %1903 = vmatprep.subr.mxu0 %v181
    %1904 = vmatpush1.msra.mxu0 %v180
    %1905 = vmatprep.subr.mxu0 0.0
    %1906 = vmatpush1.msra.mxu0 0.0
    %1907 = vmatprep.subr.mxu0 0.0
    %1908 = vmatpush1.msra.mxu0 0.0
    %1909 = vmatprep.subr.mxu0 0.0
    %1910 = vmatpush1.msra.mxu0 0.0
    %1911 = vmatprep.subr.mxu0 0.0
    %1912 = vmatpush1.msra.mxu0 0.0
    %1913 = vmatprep.subr.mxu0 0.0
    %1914 = vmatpush1.msra.mxu0 0.0
    %1915 = vmatprep.subr.mxu0 0.0
    %1916 = vmatpush1.msra.mxu0 0.0
    %1917 = vmatprep.subr.mxu0 0.0
    %1918 = vmatpush1.msra.mxu0 0.0
    %1919 = vmatprep.subr.mxu0 0.0
    %1920 = vmatpush1.msra.mxu0 0.0
    %1921 = vmatprep.subr.mxu0 0.0
    %1922 = vmatpush1.msra.mxu0 0.0
    %1923 = vmatprep.subr.mxu0 0.0
    %1924 = vmatpush1.msra.mxu0 0.0
    %1925 = vmatprep.subr.mxu0 0.0
    %1926 = vmatpush1.msra.mxu0 0.0
    %1927 = vmatprep.subr.mxu0 0.0
    %1928 = vmatpush1.msra.mxu0 0.0
    %1929 = vmatprep.subr.mxu0 0.0
    %1930 = vmatpush1.msra.mxu0 0.0
    %1931 = vmatprep.subr.mxu0 0.0
    %1932 = vmatpush1.msra.mxu0 0.0
    %1933 = vmatprep.subr.mxu0 0.0
    %1934 = vmatpush1.msra.mxu0 0.0
    %1935 = vmatprep.subr.mxu0 0.0
    %1936 = vmatpush1.msra.mxu0 0.0
    %1937 = vmatprep.mubr.f32.mxu0 0.0
    %1938 = vmatmul.mubr.f32.gmra.mrb[0].mxu0 %v1864
    %v1939 = vpop.f32.mrb[0].mxu0
    %v1940 = vadd.f32 %v675, %v1939
    %v1941 = vpop.f32.mrb[0].mxu0
    %v1942 = vadd.f32 %v679, %v1941
    %1943 = vdwg.mxu0
    %1944 = vmatprep.subr.mxu0 %v108
    %1945 = vmatpush1.msra.mxu0 %v107
    %1946 = vmatprep.subr.mxu0 %v113
    %1947 = vmatpush1.msra.mxu0 %v112
    %1948 = vmatprep.subr.mxu0 %v118
    %1949 = vmatpush1.msra.mxu0 %v117
    %1950 = vmatprep.subr.mxu0 %v123
    %1951 = vmatpush1.msra.mxu0 %v122
    %1952 = vmatprep.subr.mxu0 %v128
    %1953 = vmatpush1.msra.mxu0 %v127
    %1954 = vmatprep.subr.mxu0 %v133
    %1955 = vmatpush1.msra.mxu0 %v132
    %1956 = vmatprep.subr.mxu0 %v138
    %1957 = vmatpush1.msra.mxu0 %v137
    %1958 = vmatprep.subr.mxu0 %v143
    %1959 = vmatpush1.msra.mxu0 %v142
    %1960 = vmatprep.subr.mxu0 %v148
    %1961 = vmatpush1.msra.mxu0 %v147
    %1962 = vmatprep.subr.mxu0 %v153
    %1963 = vmatpush1.msra.mxu0 %v152
    %1964 = vmatprep.subr.mxu0 %v158
    %1965 = vmatpush1.msra.mxu0 %v157
    %1966 = vmatprep.subr.mxu0 %v163
    %1967 = vmatpush1.msra.mxu0 %v162
    %1968 = vmatprep.subr.mxu0 %v168
    %1969 = vmatpush1.msra.mxu0 %v167
    %1970 = vmatprep.subr.mxu0 %v173
    %1971 = vmatpush1.msra.mxu0 %v172
    %1972 = vmatprep.subr.mxu0 %v178
    %1973 = vmatpush1.msra.mxu0 %v177
    %1974 = vmatprep.subr.mxu0 %v183
    %1975 = vmatpush1.msra.mxu0 %v182
    %1976 = vmatprep.subr.mxu0 0.0
    %1977 = vmatpush1.msra.mxu0 0.0
    %1978 = vmatprep.subr.mxu0 0.0
    %1979 = vmatpush1.msra.mxu0 0.0
    %1980 = vmatprep.subr.mxu0 0.0
    %1981 = vmatpush1.msra.mxu0 0.0
    %1982 = vmatprep.subr.mxu0 0.0
    %1983 = vmatpush1.msra.mxu0 0.0
    %1984 = vmatprep.subr.mxu0 0.0
    %1985 = vmatpush1.msra.mxu0 0.0
    %1986 = vmatprep.subr.mxu0 0.0
    %1987 = vmatpush1.msra.mxu0 0.0
    %1988 = vmatprep.subr.mxu0 0.0
    %1989 = vmatpush1.msra.mxu0 0.0
    %1990 = vmatprep.subr.mxu0 0.0
    %1991 = vmatpush1.msra.mxu0 0.0
    %1992 = vmatprep.subr.mxu0 0.0
    %1993 = vmatpush1.msra.mxu0 0.0
    %1994 = vmatprep.subr.mxu0 0.0
    %1995 = vmatpush1.msra.mxu0 0.0
    %1996 = vmatprep.subr.mxu0 0.0
    %1997 = vmatpush1.msra.mxu0 0.0
    %1998 = vmatprep.subr.mxu0 0.0
    %1999 = vmatpush1.msra.mxu0 0.0
    %2000 = vmatprep.subr.mxu0 0.0
    %2001 = vmatpush1.msra.mxu0 0.0
    %2002 = vmatprep.subr.mxu0 0.0
    %2003 = vmatpush1.msra.mxu0 0.0
    %2004 = vmatprep.subr.mxu0 0.0
    %2005 = vmatpush1.msra.mxu0 0.0
    %2006 = vmatprep.subr.mxu0 0.0
    %2007 = vmatpush1.msra.mxu0 0.0
    %2008 = vmatprep.mubr.f32.mxu0 0.0
    %2009 = vmatmul.mubr.f32.gmra.mrb[0].mxu0 %v1864
    %v2010 = vpop.f32.mrb[0].mxu0
    %v2011 = vadd.f32 %v683, %v2010
    %v2012 = vpop.f32.mrb[0].mxu0
    %v2013 = vadd.f32 %v687, %v2012
    %2014 = vdwg.mxu0
    %2015 = vmatprep.subr.mxu0 0.0
    %2016 = vmatpush1.msra.mxu0 %v109
    %2017 = vmatprep.subr.mxu0 0.0
    %2018 = vmatpush1.msra.mxu0 %v114
    %2019 = vmatprep.subr.mxu0 0.0
    %2020 = vmatpush1.msra.mxu0 %v119
    %2021 = vmatprep.subr.mxu0 0.0
    %2022 = vmatpush1.msra.mxu0 %v124
    %2023 = vmatprep.subr.mxu0 0.0
    %2024 = vmatpush1.msra.mxu0 %v129
    %2025 = vmatprep.subr.mxu0 0.0
    %2026 = vmatpush1.msra.mxu0 %v134
    %2027 = vmatprep.subr.mxu0 0.0
    %2028 = vmatpush1.msra.mxu0 %v139
    %2029 = vmatprep.subr.mxu0 0.0
    %2030 = vmatpush1.msra.mxu0 %v144
    %2031 = vmatprep.subr.mxu0 0.0
    %2032 = vmatpush1.msra.mxu0 %v149
    %2033 = vmatprep.subr.mxu0 0.0
    %2034 = vmatpush1.msra.mxu0 %v154
    %2035 = vmatprep.subr.mxu0 0.0
    %2036 = vmatpush1.msra.mxu0 %v159
    %2037 = vmatprep.subr.mxu0 0.0
    %2038 = vmatpush1.msra.mxu0 %v164
    %2039 = vmatprep.subr.mxu0 0.0
    %2040 = vmatpush1.msra.mxu0 %v169
    %2041 = vmatprep.subr.mxu0 0.0
    %2042 = vmatpush1.msra.mxu0 %v174
    %2043 = vmatprep.subr.mxu0 0.0
    %2044 = vmatpush1.msra.mxu0 %v179
    %2045 = vmatprep.subr.mxu0 0.0
    %2046 = vmatpush1.msra.mxu0 %v184
    %2047 = vmatprep.subr.mxu0 0.0
    %2048 = vmatpush1.msra.mxu0 0.0
    %2049 = vmatprep.subr.mxu0 0.0
    %2050 = vmatpush1.msra.mxu0 0.0
    %2051 = vmatprep.subr.mxu0 0.0
    %2052 = vmatpush1.msra.mxu0 0.0
    %2053 = vmatprep.subr.mxu0 0.0
    %2054 = vmatpush1.msra.mxu0 0.0
    %2055 = vmatprep.subr.mxu0 0.0
    %2056 = vmatpush1.msra.mxu0 0.0
    %2057 = vmatprep.subr.mxu0 0.0
    %2058 = vmatpush1.msra.mxu0 0.0
    %2059 = vmatprep.subr.mxu0 0.0
    %2060 = vmatpush1.msra.mxu0 0.0
    %2061 = vmatprep.subr.mxu0 0.0
    %2062 = vmatpush1.msra.mxu0 0.0
    %2063 = vmatprep.subr.mxu0 0.0
    %2064 = vmatpush1.msra.mxu0 0.0
    %2065 = vmatprep.subr.mxu0 0.0
    %2066 = vmatpush1.msra.mxu0 0.0
    %2067 = vmatprep.subr.mxu0 0.0
    %2068 = vmatpush1.msra.mxu0 0.0
    %2069 = vmatprep.subr.mxu0 0.0
    %2070 = vmatpush1.msra.mxu0 0.0
    %2071 = vmatprep.subr.mxu0 0.0
    %2072 = vmatpush1.msra.mxu0 0.0
    %2073 = vmatprep.subr.mxu0 0.0
    %2074 = vmatpush1.msra.mxu0 0.0
    %2075 = vmatprep.subr.mxu0 0.0
    %2076 = vmatpush1.msra.mxu0 0.0
    %2077 = vmatprep.subr.mxu0 0.0
    %2078 = vmatpush1.msra.mxu0 0.0
    %2079 = vmatprep.mubr.f32.mxu0 0.0
    %2080 = vmatmul.mubr.f32.gmra.mrb[0].mxu0 %v1864
    %v2081 = vpop.f32.mrb[0].mxu0
    %v2082 = vadd.f32 %v691, %v2081
    %v2083 = vpop.f32.mrb[0].mxu0
    %2084 = vdwg.mxu0
    %v2085 = vadd.f32 %v1866, %v1940
    %v2086 = vadd.f32 %v1867, %v1942
    %v2087 = vmul.f32 %v2086, 0.5
    %v2088 = vmul.f32 %v2087, 1.442695
    %v2089 = vpow.pop %v2088
    %v2090 = vmul.f32 %v1872, %v2089
    %v2091 = vadd.f32 %v2085, %v2090
    %2092 = vmatprep.subr.mxu0 %v186
    %2093 = vmatpush1.msra.mxu0 %v185
    %2094 = vmatprep.subr.mxu0 %v189
    %2095 = vmatpush1.msra.mxu0 %v188
    %2096 = vmatprep.subr.mxu0 %v192
    %2097 = vmatpush1.msra.mxu0 %v191
    %2098 = vmatprep.subr.mxu0 %v195
    %2099 = vmatpush1.msra.mxu0 %v194
    %2100 = vmatprep.subr.mxu0 %v198
    %2101 = vmatpush1.msra.mxu0 %v197
    %2102 = vmatprep.subr.mxu0 %v201
    %2103 = vmatpush1.msra.mxu0 %v200
    %2104 = vmatprep.subr.mxu0 %v204
    %2105 = vmatpush1.msra.mxu0 %v203
    %2106 = vmatprep.subr.mxu0 %v207
    %2107 = vmatpush1.msra.mxu0 %v206
    %2108 = vmatprep.subr.mxu0 %v210
    %2109 = vmatpush1.msra.mxu0 %v209
    %2110 = vmatprep.subr.mxu0 %v213
    %2111 = vmatpush1.msra.mxu0 %v212
    %2112 = vmatprep.subr.mxu0 %v216
    %2113 = vmatpush1.msra.mxu0 %v215
    %2114 = vmatprep.subr.mxu0 %v219
    %2115 = vmatpush1.msra.mxu0 %v218
    %2116 = vmatprep.subr.mxu0 %v222
    %2117 = vmatpush1.msra.mxu0 %v221
    %2118 = vmatprep.subr.mxu0 %v225
    %2119 = vmatpush1.msra.mxu0 %v224
    %2120 = vmatprep.subr.mxu0 %v228
    %2121 = vmatpush1.msra.mxu0 %v227
    %2122 = vmatprep.subr.mxu0 %v231
    %2123 = vmatpush1.msra.mxu0 %v230
    %2124 = vmatprep.subr.mxu0 0.0
    %2125 = vmatpush1.msra.mxu0 0.0
    %2126 = vmatprep.subr.mxu0 0.0
    %2127 = vmatpush1.msra.mxu0 0.0
    %2128 = vmatprep.subr.mxu0 0.0
    %2129 = vmatpush1.msra.mxu0 0.0
    %2130 = vmatprep.subr.mxu0 0.0
    %2131 = vmatpush1.msra.mxu0 0.0
    %2132 = vmatprep.subr.mxu0 0.0
    %2133 = vmatpush1.msra.mxu0 0.0
    %2134 = vmatprep.subr.mxu0 0.0
    %2135 = vmatpush1.msra.mxu0 0.0
    %2136 = vmatprep.subr.mxu0 0.0
    %2137 = vmatpush1.msra.mxu0 0.0
    %2138 = vmatprep.subr.mxu0 0.0
    %2139 = vmatpush1.msra.mxu0 0.0
    %2140 = vmatprep.subr.mxu0 0.0
    %2141 = vmatpush1.msra.mxu0 0.0
    %2142 = vmatprep.subr.mxu0 0.0
    %2143 = vmatpush1.msra.mxu0 0.0
    %2144 = vmatprep.subr.mxu0 0.0
    %2145 = vmatpush1.msra.mxu0 0.0
    %2146 = vmatprep.subr.mxu0 0.0
    %2147 = vmatpush1.msra.mxu0 0.0
    %2148 = vmatprep.subr.mxu0 0.0
    %2149 = vmatpush1.msra.mxu0 0.0
    %2150 = vmatprep.subr.mxu0 0.0
    %2151 = vmatpush1.msra.mxu0 0.0
    %2152 = vmatprep.subr.mxu0 0.0
    %2153 = vmatpush1.msra.mxu0 0.0
    %2154 = vmatprep.subr.mxu0 0.0
    %2155 = vmatpush1.msra.mxu0 0.0
    %2156 = vmatprep.mubr.f32.mxu0 0.0
    %2157 = vmatmul.mubr.f32.gmra.mrb[0].mxu0 %v2091
    %v2158 = vpop.f32.mrb[0].mxu0
    %v2159 = vadd.f32 0.0, %v2158
    %v2160 = vpop.f32.mrb[0].mxu0
    %v2161 = vadd.f32 0.0, %v2160
    %2162 = vdwg.mxu0
    %2163 = vmatprep.subr.mxu0 0.0
    %2164 = vmatpush1.msra.mxu0 %v187
    %2165 = vmatprep.subr.mxu0 0.0
    %2166 = vmatpush1.msra.mxu0 %v190
    %2167 = vmatprep.subr.mxu0 0.0
    %2168 = vmatpush1.msra.mxu0 %v193
    %2169 = vmatprep.subr.mxu0 0.0
    %2170 = vmatpush1.msra.mxu0 %v196
    %2171 = vmatprep.subr.mxu0 0.0
    %2172 = vmatpush1.msra.mxu0 %v199
    %2173 = vmatprep.subr.mxu0 0.0
    %2174 = vmatpush1.msra.mxu0 %v202
    %2175 = vmatprep.subr.mxu0 0.0
    %2176 = vmatpush1.msra.mxu0 %v205
    %2177 = vmatprep.subr.mxu0 0.0
    %2178 = vmatpush1.msra.mxu0 %v208
    %2179 = vmatprep.subr.mxu0 0.0
    %2180 = vmatpush1.msra.mxu0 %v211
    %2181 = vmatprep.subr.mxu0 0.0
    %2182 = vmatpush1.msra.mxu0 %v214
    %2183 = vmatprep.subr.mxu0 0.0
    %2184 = vmatpush1.msra.mxu0 %v217
    %2185 = vmatprep.subr.mxu0 0.0
    %2186 = vmatpush1.msra.mxu0 %v220
    %2187 = vmatprep.subr.mxu0 0.0
    %2188 = vmatpush1.msra.mxu0 %v223
    %2189 = vmatprep.subr.mxu0 0.0
    %2190 = vmatpush1.msra.mxu0 %v226
    %2191 = vmatprep.subr.mxu0 0.0
    %2192 = vmatpush1.msra.mxu0 %v229
    %2193 = vmatprep.subr.mxu0 0.0
    %2194 = vmatpush1.msra.mxu0 %v232
    %2195 = vmatprep.subr.mxu0 0.0
    %2196 = vmatpush1.msra.mxu0 0.0
    %2197 = vmatprep.subr.mxu0 0.0
    %2198 = vmatpush1.msra.mxu0 0.0
    %2199 = vmatprep.subr.mxu0 0.0
    %2200 = vmatpush1.msra.mxu0 0.0
    %2201 = vmatprep.subr.mxu0 0.0
    %2202 = vmatpush1.msra.mxu0 0.0
    %2203 = vmatprep.subr.mxu0 0.0
    %2204 = vmatpush1.msra.mxu0 0.0
    %2205 = vmatprep.subr.mxu0 0.0
    %2206 = vmatpush1.msra.mxu0 0.0
    %2207 = vmatprep.subr.mxu0 0.0
    %2208 = vmatpush1.msra.mxu0 0.0
    %2209 = vmatprep.subr.mxu0 0.0
    %2210 = vmatpush1.msra.mxu0 0.0
    %2211 = vmatprep.subr.mxu0 0.0
    %2212 = vmatpush1.msra.mxu0 0.0
    %2213 = vmatprep.subr.mxu0 0.0
    %2214 = vmatpush1.msra.mxu0 0.0
    %2215 = vmatprep.subr.mxu0 0.0
    %2216 = vmatpush1.msra.mxu0 0.0
    %2217 = vmatprep.subr.mxu0 0.0
    %2218 = vmatpush1.msra.mxu0 0.0
    %2219 = vmatprep.subr.mxu0 0.0
    %2220 = vmatpush1.msra.mxu0 0.0
    %2221 = vmatprep.subr.mxu0 0.0
    %2222 = vmatpush1.msra.mxu0 0.0
    %2223 = vmatprep.subr.mxu0 0.0
    %2224 = vmatpush1.msra.mxu0 0.0
    %2225 = vmatprep.subr.mxu0 0.0
    %2226 = vmatpush1.msra.mxu0 0.0
    %2227 = vmatprep.mubr.f32.mxu0 0.0
    %2228 = vmatmul.mubr.f32.gmra.mrb[0].mxu0 %v2091
    %v2229 = vpop.f32.mrb[0].mxu0
    %v2230 = vadd.f32 0.0, %v2229
    %v2231 = vpop.f32.mrb[0].mxu0
    %2232 = vdwg.mxu0
    %v2233 = vadd.f32 %v1868, %v2011
    %v2234 = vadd.f32 %v1869, %v2013
    %v2235 = vadd.f32 %v2233, %v2159
    %v2236 = vadd.f32 %v2234, %v2161
    %v2237 = vxor.u32 %v2235, 2147483648
    %v2238 = vxor.u32 %v2236, 2147483648
    %v2239 = vmul.f32 %v2237, 1.442695
    %v2240 = vpow.pop %v2239
    %v2241 = vmul.f32 %v2238, 1.442695
    %v2242 = vpow.pop %v2241
    %v2243 = vadd.f32 %v2240, 1.0
    %v2244 = vadd.f32 %v2242, 1.0
    %v2245 = vrcp.pop %v2243
    %v2246 = vmul.f32 1.0, %v2245
    %v2247 = vrcp.pop %v2244
    %v2248 = vmul.f32 1.0, %v2247
    %v2249 = vadd.f32 %v1870, %v2230
    %v2250 = vmul.f32 %v2246, %v2082
    %v2251 = vadd.f32 %v2249, %v2250
    %v2252 = vtanh.pop %v2251
    %v2253 = vsub.f32 1.0, %v2248
    %v2254 = vmul.f32 %v2253, %v2252
    %v2255 = vmul.f32 %v2248, %v1864
    %v2256 = vadd.f32 %v2254, %v2255
    %s2257 = scalar_lea.vmem [#allocation2], 160
    %v2258 = vld [vmem:[%s2257] sm:$0xff]
    %v2259 = vld [vmem:[%s2257 + $0x8] sm:$0xff]
    %v2260 = vld [vmem:[%s2257 + $0x10] sm:$0xff]
    %v2261 = vld [vmem:[%s2257 + $0x18] sm:$0xff]
    %v2262 = vld [vmem:[%s2257 + $0x20] sm:$0xff]
    %s2263 = scalar_lea.vmem [#allocation6], 32
    %v2264 = vld [vmem:[%s2263] sm:$0xff]
    %2265 = vmatprep.subr.mxu0 %v106
    %2266 = vmatpush1.msra.mxu0 %v105
    %2267 = vmatprep.subr.mxu0 %v111
    %2268 = vmatpush1.msra.mxu0 %v110
    %2269 = vmatprep.subr.mxu0 %v116
    %2270 = vmatpush1.msra.mxu0 %v115
    %2271 = vmatprep.subr.mxu0 %v121
    %2272 = vmatpush1.msra.mxu0 %v120
    %2273 = vmatprep.subr.mxu0 %v126
    %2274 = vmatpush1.msra.mxu0 %v125
    %2275 = vmatprep.subr.mxu0 %v131
    %2276 = vmatpush1.msra.mxu0 %v130
    %2277 = vmatprep.subr.mxu0 %v136
    %2278 = vmatpush1.msra.mxu0 %v135
    %2279 = vmatprep.subr.mxu0 %v141
    %2280 = vmatpush1.msra.mxu0 %v140
    %2281 = vmatprep.subr.mxu0 %v146
    %2282 = vmatpush1.msra.mxu0 %v145
    %2283 = vmatprep.subr.mxu0 %v151
    %2284 = vmatpush1.msra.mxu0 %v150
    %2285 = vmatprep.subr.mxu0 %v156
    %2286 = vmatpush1.msra.mxu0 %v155
    %2287 = vmatprep.subr.mxu0 %v161
    %2288 = vmatpush1.msra.mxu0 %v160
    %2289 = vmatprep.subr.mxu0 %v166
    %2290 = vmatpush1.msra.mxu0 %v165
    %2291 = vmatprep.subr.mxu0 %v171
    %2292 = vmatpush1.msra.mxu0 %v170
    %2293 = vmatprep.subr.mxu0 %v176
    %2294 = vmatpush1.msra.mxu0 %v175
    %2295 = vmatprep.subr.mxu0 %v181
    %2296 = vmatpush1.msra.mxu0 %v180
    %2297 = vmatprep.subr.mxu0 0.0
    %2298 = vmatpush1.msra.mxu0 0.0
    %2299 = vmatprep.subr.mxu0 0.0
    %2300 = vmatpush1.msra.mxu0 0.0
    %2301 = vmatprep.subr.mxu0 0.0
    %2302 = vmatpush1.msra.mxu0 0.0
    %2303 = vmatprep.subr.mxu0 0.0
    %2304 = vmatpush1.msra.mxu0 0.0
    %2305 = vmatprep.subr.mxu0 0.0
    %2306 = vmatpush1.msra.mxu0 0.0
    %2307 = vmatprep.subr.mxu0 0.0
    %2308 = vmatpush1.msra.mxu0 0.0
    %2309 = vmatprep.subr.mxu0 0.0
    %2310 = vmatpush1.msra.mxu0 0.0
    %2311 = vmatprep.subr.mxu0 0.0
    %2312 = vmatpush1.msra.mxu0 0.0
    %2313 = vmatprep.subr.mxu0 0.0
    %2314 = vmatpush1.msra.mxu0 0.0
    %2315 = vmatprep.subr.mxu0 0.0
    %2316 = vmatpush1.msra.mxu0 0.0
    %2317 = vmatprep.subr.mxu0 0.0
    %2318 = vmatpush1.msra.mxu0 0.0
    %2319 = vmatprep.subr.mxu0 0.0
    %2320 = vmatpush1.msra.mxu0 0.0
    %2321 = vmatprep.subr.mxu0 0.0
    %2322 = vmatpush1.msra.mxu0 0.0
    %2323 = vmatprep.subr.mxu0 0.0
    %2324 = vmatpush1.msra.mxu0 0.0
    %2325 = vmatprep.subr.mxu0 0.0
    %2326 = vmatpush1.msra.mxu0 0.0
    %2327 = vmatprep.subr.mxu0 0.0
    %2328 = vmatpush1.msra.mxu0 0.0
    %2329 = vmatprep.mubr.f32.mxu0 0.0
    %2330 = vmatmul.mubr.f32.gmra.mrb[0].mxu0 %v2256
    %v2331 = vpop.f32.mrb[0].mxu0
    %v2332 = vadd.f32 %v675, %v2331
    %v2333 = vpop.f32.mrb[0].mxu0
    %v2334 = vadd.f32 %v679, %v2333
    %2335 = vdwg.mxu0
    %2336 = vmatprep.subr.mxu0 %v108
    %2337 = vmatpush1.msra.mxu0 %v107
    %2338 = vmatprep.subr.mxu0 %v113
    %2339 = vmatpush1.msra.mxu0 %v112
    %2340 = vmatprep.subr.mxu0 %v118
    %2341 = vmatpush1.msra.mxu0 %v117
    %2342 = vmatprep.subr.mxu0 %v123
    %2343 = vmatpush1.msra.mxu0 %v122
    %2344 = vmatprep.subr.mxu0 %v128
    %2345 = vmatpush1.msra.mxu0 %v127
    %2346 = vmatprep.subr.mxu0 %v133
    %2347 = vmatpush1.msra.mxu0 %v132
    %2348 = vmatprep.subr.mxu0 %v138
    %2349 = vmatpush1.msra.mxu0 %v137
    %2350 = vmatprep.subr.mxu0 %v143
    %2351 = vmatpush1.msra.mxu0 %v142
    %2352 = vmatprep.subr.mxu0 %v148
    %2353 = vmatpush1.msra.mxu0 %v147
    %2354 = vmatprep.subr.mxu0 %v153
    %2355 = vmatpush1.msra.mxu0 %v152
    %2356 = vmatprep.subr.mxu0 %v158
    %2357 = vmatpush1.msra.mxu0 %v157
    %2358 = vmatprep.subr.mxu0 %v163
    %2359 = vmatpush1.msra.mxu0 %v162
    %2360 = vmatprep.subr.mxu0 %v168
    %2361 = vmatpush1.msra.mxu0 %v167
    %2362 = vmatprep.subr.mxu0 %v173
    %2363 = vmatpush1.msra.mxu0 %v172
    %2364 = vmatprep.subr.mxu0 %v178
    %2365 = vmatpush1.msra.mxu0 %v177
    %2366 = vmatprep.subr.mxu0 %v183
    %2367 = vmatpush1.msra.mxu0 %v182
    %2368 = vmatprep.subr.mxu0 0.0
    %2369 = vmatpush1.msra.mxu0 0.0
    %2370 = vmatprep.subr.mxu0 0.0
    %2371 = vmatpush1.msra.mxu0 0.0
    %2372 = vmatprep.subr.mxu0 0.0
    %2373 = vmatpush1.msra.mxu0 0.0
    %2374 = vmatprep.subr.mxu0 0.0
    %2375 = vmatpush1.msra.mxu0 0.0
    %2376 = vmatprep.subr.mxu0 0.0
    %2377 = vmatpush1.msra.mxu0 0.0
    %2378 = vmatprep.subr.mxu0 0.0
    %2379 = vmatpush1.msra.mxu0 0.0
    %2380 = vmatprep.subr.mxu0 0.0
    %2381 = vmatpush1.msra.mxu0 0.0
    %2382 = vmatprep.subr.mxu0 0.0
    %2383 = vmatpush1.msra.mxu0 0.0
    %2384 = vmatprep.subr.mxu0 0.0
    %2385 = vmatpush1.msra.mxu0 0.0
    %2386 = vmatprep.subr.mxu0 0.0
    %2387 = vmatpush1.msra.mxu0 0.0
    %2388 = vmatprep.subr.mxu0 0.0
    %2389 = vmatpush1.msra.mxu0 0.0
    %2390 = vmatprep.subr.mxu0 0.0
    %2391 = vmatpush1.msra.mxu0 0.0
    %2392 = vmatprep.subr.mxu0 0.0
    %2393 = vmatpush1.msra.mxu0 0.0
    %2394 = vmatprep.subr.mxu0 0.0
    %2395 = vmatpush1.msra.mxu0 0.0
    %2396 = vmatprep.subr.mxu0 0.0
    %2397 = vmatpush1.msra.mxu0 0.0
    %2398 = vmatprep.subr.mxu0 0.0
    %2399 = vmatpush1.msra.mxu0 0.0
    %2400 = vmatprep.mubr.f32.mxu0 0.0
    %2401 = vmatmul.mubr.f32.gmra.mrb[0].mxu0 %v2256
    %v2402 = vpop.f32.mrb[0].mxu0
    %v2403 = vadd.f32 %v683, %v2402
    %v2404 = vpop.f32.mrb[0].mxu0
    %v2405 = vadd.f32 %v687, %v2404
    %2406 = vdwg.mxu0
    %2407 = vmatprep.subr.mxu0 0.0
    %2408 = vmatpush1.msra.mxu0 %v109
    %2409 = vmatprep.subr.mxu0 0.0
    %2410 = vmatpush1.msra.mxu0 %v114
    %2411 = vmatprep.subr.mxu0 0.0
    %2412 = vmatpush1.msra.mxu0 %v119
    %2413 = vmatprep.subr.mxu0 0.0
    %2414 = vmatpush1.msra.mxu0 %v124
    %2415 = vmatprep.subr.mxu0 0.0
    %2416 = vmatpush1.msra.mxu0 %v129
    %2417 = vmatprep.subr.mxu0 0.0
    %2418 = vmatpush1.msra.mxu0 %v134
    %2419 = vmatprep.subr.mxu0 0.0
    %2420 = vmatpush1.msra.mxu0 %v139
    %2421 = vmatprep.subr.mxu0 0.0
    %2422 = vmatpush1.msra.mxu0 %v144
    %2423 = vmatprep.subr.mxu0 0.0
    %2424 = vmatpush1.msra.mxu0 %v149
    %2425 = vmatprep.subr.mxu0 0.0
    %2426 = vmatpush1.msra.mxu0 %v154
    %2427 = vmatprep.subr.mxu0 0.0
    %2428 = vmatpush1.msra.mxu0 %v159
    %2429 = vmatprep.subr.mxu0 0.0
    %2430 = vmatpush1.msra.mxu0 %v164
    %2431 = vmatprep.subr.mxu0 0.0
    %2432 = vmatpush1.msra.mxu0 %v169
    %2433 = vmatprep.subr.mxu0 0.0
    %2434 = vmatpush1.msra.mxu0 %v174
    %2435 = vmatprep.subr.mxu0 0.0
    %2436 = vmatpush1.msra.mxu0 %v179
    %2437 = vmatprep.subr.mxu0 0.0
    %2438 = vmatpush1.msra.mxu0 %v184
    %2439 = vmatprep.subr.mxu0 0.0
    %2440 = vmatpush1.msra.mxu0 0.0
    %2441 = vmatprep.subr.mxu0 0.0
    %2442 = vmatpush1.msra.mxu0 0.0
    %2443 = vmatprep.subr.mxu0 0.0
    %2444 = vmatpush1.msra.mxu0 0.0
    %2445 = vmatprep.subr.mxu0 0.0
    %2446 = vmatpush1.msra.mxu0 0.0
    %2447 = vmatprep.subr.mxu0 0.0
    %2448 = vmatpush1.msra.mxu0 0.0
    %2449 = vmatprep.subr.mxu0 0.0
    %2450 = vmatpush1.msra.mxu0 0.0
    %2451 = vmatprep.subr.mxu0 0.0
    %2452 = vmatpush1.msra.mxu0 0.0
    %2453 = vmatprep.subr.mxu0 0.0
    %2454 = vmatpush1.msra.mxu0 0.0
    %2455 = vmatprep.subr.mxu0 0.0
    %2456 = vmatpush1.msra.mxu0 0.0
    %2457 = vmatprep.subr.mxu0 0.0
    %2458 = vmatpush1.msra.mxu0 0.0
    %2459 = vmatprep.subr.mxu0 0.0
    %2460 = vmatpush1.msra.mxu0 0.0
    %2461 = vmatprep.subr.mxu0 0.0
    %2462 = vmatpush1.msra.mxu0 0.0
    %2463 = vmatprep.subr.mxu0 0.0
    %2464 = vmatpush1.msra.mxu0 0.0
    %2465 = vmatprep.subr.mxu0 0.0
    %2466 = vmatpush1.msra.mxu0 0.0
    %2467 = vmatprep.subr.mxu0 0.0
    %2468 = vmatpush1.msra.mxu0 0.0
    %2469 = vmatprep.subr.mxu0 0.0
    %2470 = vmatpush1.msra.mxu0 0.0
    %2471 = vmatprep.mubr.f32.mxu0 0.0
    %2472 = vmatmul.mubr.f32.gmra.mrb[0].mxu0 %v2256
    %v2473 = vpop.f32.mrb[0].mxu0
    %v2474 = vadd.f32 %v691, %v2473
    %v2475 = vpop.f32.mrb[0].mxu0
    %2476 = vdwg.mxu0
    %v2477 = vadd.f32 %v2258, %v2332
    %v2478 = vadd.f32 %v2259, %v2334
    %v2479 = vmul.f32 %v2478, 0.5
    %v2480 = vmul.f32 %v2479, 1.442695
    %v2481 = vpow.pop %v2480
    %v2482 = vmul.f32 %v2264, %v2481
    %v2483 = vadd.f32 %v2477, %v2482
    %2484 = vmatprep.subr.mxu0 %v186
    %2485 = vmatpush1.msra.mxu0 %v185
    %2486 = vmatprep.subr.mxu0 %v189
    %2487 = vmatpush1.msra.mxu0 %v188
    %2488 = vmatprep.subr.mxu0 %v192
    %2489 = vmatpush1.msra.mxu0 %v191
    %2490 = vmatprep.subr.mxu0 %v195
    %2491 = vmatpush1.msra.mxu0 %v194
    %2492 = vmatprep.subr.mxu0 %v198
    %2493 = vmatpush1.msra.mxu0 %v197
    %2494 = vmatprep.subr.mxu0 %v201
    %2495 = vmatpush1.msra.mxu0 %v200
    %2496 = vmatprep.subr.mxu0 %v204
    %2497 = vmatpush1.msra.mxu0 %v203
    %2498 = vmatprep.subr.mxu0 %v207
    %2499 = vmatpush1.msra.mxu0 %v206
    %2500 = vmatprep.subr.mxu0 %v210
    %2501 = vmatpush1.msra.mxu0 %v209
    %2502 = vmatprep.subr.mxu0 %v213
    %2503 = vmatpush1.msra.mxu0 %v212
    %2504 = vmatprep.subr.mxu0 %v216
    %2505 = vmatpush1.msra.mxu0 %v215
    %2506 = vmatprep.subr.mxu0 %v219
    %2507 = vmatpush1.msra.mxu0 %v218
    %2508 = vmatprep.subr.mxu0 %v222
    %2509 = vmatpush1.msra.mxu0 %v221
    %2510 = vmatprep.subr.mxu0 %v225
    %2511 = vmatpush1.msra.mxu0 %v224
    %2512 = vmatprep.subr.mxu0 %v228
    %2513 = vmatpush1.msra.mxu0 %v227
    %2514 = vmatprep.subr.mxu0 %v231
    %2515 = vmatpush1.msra.mxu0 %v230
    %2516 = vmatprep.subr.mxu0 0.0
    %2517 = vmatpush1.msra.mxu0 0.0
    %2518 = vmatprep.subr.mxu0 0.0
    %2519 = vmatpush1.msra.mxu0 0.0
    %2520 = vmatprep.subr.mxu0 0.0
    %2521 = vmatpush1.msra.mxu0 0.0
    %2522 = vmatprep.subr.mxu0 0.0
    %2523 = vmatpush1.msra.mxu0 0.0
    %2524 = vmatprep.subr.mxu0 0.0
    %2525 = vmatpush1.msra.mxu0 0.0
    %2526 = vmatprep.subr.mxu0 0.0
    %2527 = vmatpush1.msra.mxu0 0.0
    %2528 = vmatprep.subr.mxu0 0.0
    %2529 = vmatpush1.msra.mxu0 0.0
    %2530 = vmatprep.subr.mxu0 0.0
    %2531 = vmatpush1.msra.mxu0 0.0
    %2532 = vmatprep.subr.mxu0 0.0
    %2533 = vmatpush1.msra.mxu0 0.0
    %2534 = vmatprep.subr.mxu0 0.0
    %2535 = vmatpush1.msra.mxu0 0.0
    %2536 = vmatprep.subr.mxu0 0.0
    %2537 = vmatpush1.msra.mxu0 0.0
    %2538 = vmatprep.subr.mxu0 0.0
    %2539 = vmatpush1.msra.mxu0 0.0
    %2540 = vmatprep.subr.mxu0 0.0
    %2541 = vmatpush1.msra.mxu0 0.0
    %2542 = vmatprep.subr.mxu0 0.0
    %2543 = vmatpush1.msra.mxu0 0.0
    %2544 = vmatprep.subr.mxu0 0.0
    %2545 = vmatpush1.msra.mxu0 0.0
    %2546 = vmatprep.subr.mxu0 0.0
    %2547 = vmatpush1.msra.mxu0 0.0
    %2548 = vmatprep.mubr.f32.mxu0 0.0
    %2549 = vmatmul.mubr.f32.gmra.mrb[0].mxu0 %v2483
    %v2550 = vpop.f32.mrb[0].mxu0
    %v2551 = vadd.f32 0.0, %v2550
    %v2552 = vpop.f32.mrb[0].mxu0
    %v2553 = vadd.f32 0.0, %v2552
    %2554 = vdwg.mxu0
    %2555 = vmatprep.subr.mxu0 0.0
    %2556 = vmatpush1.msra.mxu0 %v187
    %2557 = vmatprep.subr.mxu0 0.0
    %2558 = vmatpush1.msra.mxu0 %v190
    %2559 = vmatprep.subr.mxu0 0.0
    %2560 = vmatpush1.msra.mxu0 %v193
    %2561 = vmatprep.subr.mxu0 0.0
    %2562 = vmatpush1.msra.mxu0 %v196
    %2563 = vmatprep.subr.mxu0 0.0
    %2564 = vmatpush1.msra.mxu0 %v199
    %2565 = vmatprep.subr.mxu0 0.0
    %2566 = vmatpush1.msra.mxu0 %v202
    %2567 = vmatprep.subr.mxu0 0.0
    %2568 = vmatpush1.msra.mxu0 %v205
    %2569 = vmatprep.subr.mxu0 0.0
    %2570 = vmatpush1.msra.mxu0 %v208
    %2571 = vmatprep.subr.mxu0 0.0
    %2572 = vmatpush1.msra.mxu0 %v211
    %2573 = vmatprep.subr.mxu0 0.0
    %2574 = vmatpush1.msra.mxu0 %v214
    %2575 = vmatprep.subr.mxu0 0.0
    %2576 = vmatpush1.msra.mxu0 %v217
    %2577 = vmatprep.subr.mxu0 0.0
    %2578 = vmatpush1.msra.mxu0 %v220
    %2579 = vmatprep.subr.mxu0 0.0
    %2580 = vmatpush1.msra.mxu0 %v223
    %2581 = vmatprep.subr.mxu0 0.0
    %2582 = vmatpush1.msra.mxu0 %v226
    %2583 = vmatprep.subr.mxu0 0.0
    %2584 = vmatpush1.msra.mxu0 %v229
    %2585 = vmatprep.subr.mxu0 0.0
    %2586 = vmatpush1.msra.mxu0 %v232
    %2587 = vmatprep.subr.mxu0 0.0
    %2588 = vmatpush1.msra.mxu0 0.0
    %2589 = vmatprep.subr.mxu0 0.0
    %2590 = vmatpush1.msra.mxu0 0.0
    %2591 = vmatprep.subr.mxu0 0.0
    %2592 = vmatpush1.msra.mxu0 0.0
    %2593 = vmatprep.subr.mxu0 0.0
    %2594 = vmatpush1.msra.mxu0 0.0
    %2595 = vmatprep.subr.mxu0 0.0
    %2596 = vmatpush1.msra.mxu0 0.0
    %2597 = vmatprep.subr.mxu0 0.0
    %2598 = vmatpush1.msra.mxu0 0.0
    %2599 = vmatprep.subr.mxu0 0.0
    %2600 = vmatpush1.msra.mxu0 0.0
    %2601 = vmatprep.subr.mxu0 0.0
    %2602 = vmatpush1.msra.mxu0 0.0
    %2603 = vmatprep.subr.mxu0 0.0
    %2604 = vmatpush1.msra.mxu0 0.0
    %2605 = vmatprep.subr.mxu0 0.0
    %2606 = vmatpush1.msra.mxu0 0.0
    %2607 = vmatprep.subr.mxu0 0.0
    %2608 = vmatpush1.msra.mxu0 0.0
    %2609 = vmatprep.subr.mxu0 0.0
    %2610 = vmatpush1.msra.mxu0 0.0
    %2611 = vmatprep.subr.mxu0 0.0
    %2612 = vmatpush1.msra.mxu0 0.0
    %2613 = vmatprep.subr.mxu0 0.0
    %2614 = vmatpush1.msra.mxu0 0.0
    %2615 = vmatprep.subr.mxu0 0.0
    %2616 = vmatpush1.msra.mxu0 0.0
    %2617 = vmatprep.subr.mxu0 0.0
    %2618 = vmatpush1.msra.mxu0 0.0
    %2619 = vmatprep.mubr.f32.mxu0 0.0
    %2620 = vmatmul.mubr.f32.gmra.mrb[0].mxu0 %v2483
    %v2621 = vpop.f32.mrb[0].mxu0
    %v2622 = vadd.f32 0.0, %v2621
    %v2623 = vpop.f32.mrb[0].mxu0
    %2624 = vdwg.mxu0
    %v2625 = vadd.f32 %v2260, %v2403
    %v2626 = vadd.f32 %v2261, %v2405
    %v2627 = vadd.f32 %v2625, %v2551
    %v2628 = vadd.f32 %v2626, %v2553
    %v2629 = vxor.u32 %v2627, 2147483648
    %v2630 = vxor.u32 %v2628, 2147483648
    %v2631 = vmul.f32 %v2629, 1.442695
    %v2632 = vpow.pop %v2631
    %v2633 = vmul.f32 %v2630, 1.442695
    %v2634 = vpow.pop %v2633
    %v2635 = vadd.f32 %v2632, 1.0
    %v2636 = vadd.f32 %v2634, 1.0
    %v2637 = vrcp.pop %v2635
    %v2638 = vmul.f32 1.0, %v2637
    %v2639 = vrcp.pop %v2636
    %v2640 = vmul.f32 1.0, %v2639
    %v2641 = vadd.f32 %v2262, %v2622
    %v2642 = vmul.f32 %v2638, %v2474
    %v2643 = vadd.f32 %v2641, %v2642
    %v2644 = vtanh.pop %v2643
    %v2645 = vsub.f32 1.0, %v2640
    %v2646 = vmul.f32 %v2645, %v2644
    %v2647 = vmul.f32 %v2640, %v2256
    %v2648 = vadd.f32 %v2646, %v2647
    %s2649 = scalar_lea.vmem [#allocation2], 200
    %v2650 = vld [vmem:[%s2649] sm:$0xff]
    %v2651 = vld [vmem:[%s2649 + $0x8] sm:$0xff]
    %v2652 = vld [vmem:[%s2649 + $0x10] sm:$0xff]
    %v2653 = vld [vmem:[%s2649 + $0x18] sm:$0xff]
    %v2654 = vld [vmem:[%s2649 + $0x20] sm:$0xff]
    %s2655 = scalar_lea.vmem [#allocation6], 40
    %v2656 = vld [vmem:[%s2655] sm:$0xff]
    %2657 = vmatprep.subr.mxu0 %v106
    %2658 = vmatpush1.msra.mxu0 %v105
    %2659 = vmatprep.subr.mxu0 %v111
    %2660 = vmatpush1.msra.mxu0 %v110
    %2661 = vmatprep.subr.mxu0 %v116
    %2662 = vmatpush1.msra.mxu0 %v115
    %2663 = vmatprep.subr.mxu0 %v121
    %2664 = vmatpush1.msra.mxu0 %v120
    %2665 = vmatprep.subr.mxu0 %v126
    %2666 = vmatpush1.msra.mxu0 %v125
    %2667 = vmatprep.subr.mxu0 %v131
    %2668 = vmatpush1.msra.mxu0 %v130
    %2669 = vmatprep.subr.mxu0 %v136
    %2670 = vmatpush1.msra.mxu0 %v135
    %2671 = vmatprep.subr.mxu0 %v141
    %2672 = vmatpush1.msra.mxu0 %v140
    %2673 = vmatprep.subr.mxu0 %v146
    %2674 = vmatpush1.msra.mxu0 %v145
    %2675 = vmatprep.subr.mxu0 %v151
    %2676 = vmatpush1.msra.mxu0 %v150
    %2677 = vmatprep.subr.mxu0 %v156
    %2678 = vmatpush1.msra.mxu0 %v155
    %2679 = vmatprep.subr.mxu0 %v161
    %2680 = vmatpush1.msra.mxu0 %v160
    %2681 = vmatprep.subr.mxu0 %v166
    %2682 = vmatpush1.msra.mxu0 %v165
    %2683 = vmatprep.subr.mxu0 %v171
    %2684 = vmatpush1.msra.mxu0 %v170
    %2685 = vmatprep.subr.mxu0 %v176
    %2686 = vmatpush1.msra.mxu0 %v175
    %2687 = vmatprep.subr.mxu0 %v181
    %2688 = vmatpush1.msra.mxu0 %v180
    %2689 = vmatprep.subr.mxu0 0.0
    %2690 = vmatpush1.msra.mxu0 0.0
    %2691 = vmatprep.subr.mxu0 0.0
    %2692 = vmatpush1.msra.mxu0 0.0
    %2693 = vmatprep.subr.mxu0 0.0
    %2694 = vmatpush1.msra.mxu0 0.0
    %2695 = vmatprep.subr.mxu0 0.0
    %2696 = vmatpush1.msra.mxu0 0.0
    %2697 = vmatprep.subr.mxu0 0.0
    %2698 = vmatpush1.msra.mxu0 0.0
    %2699 = vmatprep.subr.mxu0 0.0
    %2700 = vmatpush1.msra.mxu0 0.0
    %2701 = vmatprep.subr.mxu0 0.0
    %2702 = vmatpush1.msra.mxu0 0.0
    %2703 = vmatprep.subr.mxu0 0.0
    %2704 = vmatpush1.msra.mxu0 0.0
    %2705 = vmatprep.subr.mxu0 0.0
    %2706 = vmatpush1.msra.mxu0 0.0
    %2707 = vmatprep.subr.mxu0 0.0
    %2708 = vmatpush1.msra.mxu0 0.0
    %2709 = vmatprep.subr.mxu0 0.0
    %2710 = vmatpush1.msra.mxu0 0.0
    %2711 = vmatprep.subr.mxu0 0.0
    %2712 = vmatpush1.msra.mxu0 0.0
    %2713 = vmatprep.subr.mxu0 0.0
    %2714 = vmatpush1.msra.mxu0 0.0
    %2715 = vmatprep.subr.mxu0 0.0
    %2716 = vmatpush1.msra.mxu0 0.0
    %2717 = vmatprep.subr.mxu0 0.0
    %2718 = vmatpush1.msra.mxu0 0.0
    %2719 = vmatprep.subr.mxu0 0.0
    %2720 = vmatpush1.msra.mxu0 0.0
    %2721 = vmatprep.mubr.f32.mxu0 0.0
    %2722 = vmatmul.mubr.f32.gmra.mrb[0].mxu0 %v2648
    %v2723 = vpop.f32.mrb[0].mxu0
    %v2724 = vadd.f32 %v675, %v2723
    %v2725 = vpop.f32.mrb[0].mxu0
    %v2726 = vadd.f32 %v679, %v2725
    %2727 = vdwg.mxu0
    %2728 = vmatprep.subr.mxu0 %v108
    %2729 = vmatpush1.msra.mxu0 %v107
    %2730 = vmatprep.subr.mxu0 %v113
    %2731 = vmatpush1.msra.mxu0 %v112
    %2732 = vmatprep.subr.mxu0 %v118
    %2733 = vmatpush1.msra.mxu0 %v117
    %2734 = vmatprep.subr.mxu0 %v123
    %2735 = vmatpush1.msra.mxu0 %v122
    %2736 = vmatprep.subr.mxu0 %v128
    %2737 = vmatpush1.msra.mxu0 %v127
    %2738 = vmatprep.subr.mxu0 %v133
    %2739 = vmatpush1.msra.mxu0 %v132
    %2740 = vmatprep.subr.mxu0 %v138
    %2741 = vmatpush1.msra.mxu0 %v137
    %2742 = vmatprep.subr.mxu0 %v143
    %2743 = vmatpush1.msra.mxu0 %v142
    %2744 = vmatprep.subr.mxu0 %v148
    %2745 = vmatpush1.msra.mxu0 %v147
    %2746 = vmatprep.subr.mxu0 %v153
    %2747 = vmatpush1.msra.mxu0 %v152
    %2748 = vmatprep.subr.mxu0 %v158
    %2749 = vmatpush1.msra.mxu0 %v157
    %2750 = vmatprep.subr.mxu0 %v163
    %2751 = vmatpush1.msra.mxu0 %v162
    %2752 = vmatprep.subr.mxu0 %v168
    %2753 = vmatpush1.msra.mxu0 %v167
    %2754 = vmatprep.subr.mxu0 %v173
    %2755 = vmatpush1.msra.mxu0 %v172
    %2756 = vmatprep.subr.mxu0 %v178
    %2757 = vmatpush1.msra.mxu0 %v177
    %2758 = vmatprep.subr.mxu0 %v183
    %2759 = vmatpush1.msra.mxu0 %v182
    %2760 = vmatprep.subr.mxu0 0.0
    %2761 = vmatpush1.msra.mxu0 0.0
    %2762 = vmatprep.subr.mxu0 0.0
    %2763 = vmatpush1.msra.mxu0 0.0
    %2764 = vmatprep.subr.mxu0 0.0
    %2765 = vmatpush1.msra.mxu0 0.0
    %2766 = vmatprep.subr.mxu0 0.0
    %2767 = vmatpush1.msra.mxu0 0.0
    %2768 = vmatprep.subr.mxu0 0.0
    %2769 = vmatpush1.msra.mxu0 0.0
    %2770 = vmatprep.subr.mxu0 0.0
    %2771 = vmatpush1.msra.mxu0 0.0
    %2772 = vmatprep.subr.mxu0 0.0
    %2773 = vmatpush1.msra.mxu0 0.0
    %2774 = vmatprep.subr.mxu0 0.0
    %2775 = vmatpush1.msra.mxu0 0.0
    %2776 = vmatprep.subr.mxu0 0.0
    %2777 = vmatpush1.msra.mxu0 0.0
    %2778 = vmatprep.subr.mxu0 0.0
    %2779 = vmatpush1.msra.mxu0 0.0
    %2780 = vmatprep.subr.mxu0 0.0
    %2781 = vmatpush1.msra.mxu0 0.0
    %2782 = vmatprep.subr.mxu0 0.0
    %2783 = vmatpush1.msra.mxu0 0.0
    %2784 = vmatprep.subr.mxu0 0.0
    %2785 = vmatpush1.msra.mxu0 0.0
    %2786 = vmatprep.subr.mxu0 0.0
    %2787 = vmatpush1.msra.mxu0 0.0
    %2788 = vmatprep.subr.mxu0 0.0
    %2789 = vmatpush1.msra.mxu0 0.0
    %2790 = vmatprep.subr.mxu0 0.0
    %2791 = vmatpush1.msra.mxu0 0.0
    %2792 = vmatprep.mubr.f32.mxu0 0.0
    %2793 = vmatmul.mubr.f32.gmra.mrb[0].mxu0 %v2648
    %v2794 = vpop.f32.mrb[0].mxu0
    %v2795 = vadd.f32 %v683, %v2794
    %v2796 = vpop.f32.mrb[0].mxu0
    %v2797 = vadd.f32 %v687, %v2796
    %2798 = vdwg.mxu0
    %2799 = vmatprep.subr.mxu0 0.0
    %2800 = vmatpush1.msra.mxu0 %v109
    %2801 = vmatprep.subr.mxu0 0.0
    %2802 = vmatpush1.msra.mxu0 %v114
    %2803 = vmatprep.subr.mxu0 0.0
    %2804 = vmatpush1.msra.mxu0 %v119
    %2805 = vmatprep.subr.mxu0 0.0
    %2806 = vmatpush1.msra.mxu0 %v124
    %2807 = vmatprep.subr.mxu0 0.0
    %2808 = vmatpush1.msra.mxu0 %v129
    %2809 = vmatprep.subr.mxu0 0.0
    %2810 = vmatpush1.msra.mxu0 %v134
    %2811 = vmatprep.subr.mxu0 0.0
    %2812 = vmatpush1.msra.mxu0 %v139
    %2813 = vmatprep.subr.mxu0 0.0
    %2814 = vmatpush1.msra.mxu0 %v144
    %2815 = vmatprep.subr.mxu0 0.0
    %2816 = vmatpush1.msra.mxu0 %v149
    %2817 = vmatprep.subr.mxu0 0.0
    %2818 = vmatpush1.msra.mxu0 %v154
    %2819 = vmatprep.subr.mxu0 0.0
    %2820 = vmatpush1.msra.mxu0 %v159
    %2821 = vmatprep.subr.mxu0 0.0
    %2822 = vmatpush1.msra.mxu0 %v164
    %2823 = vmatprep.subr.mxu0 0.0
    %2824 = vmatpush1.msra.mxu0 %v169
    %2825 = vmatprep.subr.mxu0 0.0
    %2826 = vmatpush1.msra.mxu0 %v174
    %2827 = vmatprep.subr.mxu0 0.0
    %2828 = vmatpush1.msra.mxu0 %v179
    %2829 = vmatprep.subr.mxu0 0.0
    %2830 = vmatpush1.msra.mxu0 %v184
    %2831 = vmatprep.subr.mxu0 0.0
    %2832 = vmatpush1.msra.mxu0 0.0
    %2833 = vmatprep.subr.mxu0 0.0
    %2834 = vmatpush1.msra.mxu0 0.0
    %2835 = vmatprep.subr.mxu0 0.0
    %2836 = vmatpush1.msra.mxu0 0.0
    %2837 = vmatprep.subr.mxu0 0.0
    %2838 = vmatpush1.msra.mxu0 0.0
    %2839 = vmatprep.subr.mxu0 0.0
    %2840 = vmatpush1.msra.mxu0 0.0
    %2841 = vmatprep.subr.mxu0 0.0
    %2842 = vmatpush1.msra.mxu0 0.0
    %2843 = vmatprep.subr.mxu0 0.0
    %2844 = vmatpush1.msra.mxu0 0.0
    %2845 = vmatprep.subr.mxu0 0.0
    %2846 = vmatpush1.msra.mxu0 0.0
    %2847 = vmatprep.subr.mxu0 0.0
    %2848 = vmatpush1.msra.mxu0 0.0
    %2849 = vmatprep.subr.mxu0 0.0
    %2850 = vmatpush1.msra.mxu0 0.0
    %2851 = vmatprep.subr.mxu0 0.0
    %2852 = vmatpush1.msra.mxu0 0.0
    %2853 = vmatprep.subr.mxu0 0.0
    %2854 = vmatpush1.msra.mxu0 0.0
    %2855 = vmatprep.subr.mxu0 0.0
    %2856 = vmatpush1.msra.mxu0 0.0
    %2857 = vmatprep.subr.mxu0 0.0
    %2858 = vmatpush1.msra.mxu0 0.0
    %2859 = vmatprep.subr.mxu0 0.0
    %2860 = vmatpush1.msra.mxu0 0.0
    %2861 = vmatprep.subr.mxu0 0.0
    %2862 = vmatpush1.msra.mxu0 0.0
    %2863 = vmatprep.mubr.f32.mxu0 0.0
    %2864 = vmatmul.mubr.f32.gmra.mrb[0].mxu0 %v2648
    %v2865 = vpop.f32.mrb[0].mxu0
    %v2866 = vadd.f32 %v691, %v2865
    %v2867 = vpop.f32.mrb[0].mxu0
    %2868 = vdwg.mxu0
    %v2869 = vadd.f32 %v2650, %v2724
    %v2870 = vadd.f32 %v2651, %v2726
    %v2871 = vmul.f32 %v2870, 0.5
    %v2872 = vmul.f32 %v2871, 1.442695
    %v2873 = vpow.pop %v2872
    %v2874 = vmul.f32 %v2656, %v2873
    %v2875 = vadd.f32 %v2869, %v2874
    %2876 = vmatprep.subr.mxu0 %v186
    %2877 = vmatpush1.msra.mxu0 %v185
    %2878 = vmatprep.subr.mxu0 %v189
    %2879 = vmatpush1.msra.mxu0 %v188
    %2880 = vmatprep.subr.mxu0 %v192
    %2881 = vmatpush1.msra.mxu0 %v191
    %2882 = vmatprep.subr.mxu0 %v195
    %2883 = vmatpush1.msra.mxu0 %v194
    %2884 = vmatprep.subr.mxu0 %v198
    %2885 = vmatpush1.msra.mxu0 %v197
    %2886 = vmatprep.subr.mxu0 %v201
    %2887 = vmatpush1.msra.mxu0 %v200
    %2888 = vmatprep.subr.mxu0 %v204
    %2889 = vmatpush1.msra.mxu0 %v203
    %2890 = vmatprep.subr.mxu0 %v207
    %2891 = vmatpush1.msra.mxu0 %v206
    %2892 = vmatprep.subr.mxu0 %v210
    %2893 = vmatpush1.msra.mxu0 %v209
    %2894 = vmatprep.subr.mxu0 %v213
    %2895 = vmatpush1.msra.mxu0 %v212
    %2896 = vmatprep.subr.mxu0 %v216
    %2897 = vmatpush1.msra.mxu0 %v215
    %2898 = vmatprep.subr.mxu0 %v219
    %2899 = vmatpush1.msra.mxu0 %v218
    %2900 = vmatprep.subr.mxu0 %v222
    %2901 = vmatpush1.msra.mxu0 %v221
    %2902 = vmatprep.subr.mxu0 %v225
    %2903 = vmatpush1.msra.mxu0 %v224
    %2904 = vmatprep.subr.mxu0 %v228
    %2905 = vmatpush1.msra.mxu0 %v227
    %2906 = vmatprep.subr.mxu0 %v231
    %2907 = vmatpush1.msra.mxu0 %v230
    %2908 = vmatprep.subr.mxu0 0.0
    %2909 = vmatpush1.msra.mxu0 0.0
    %2910 = vmatprep.subr.mxu0 0.0
    %2911 = vmatpush1.msra.mxu0 0.0
    %2912 = vmatprep.subr.mxu0 0.0
    %2913 = vmatpush1.msra.mxu0 0.0
    %2914 = vmatprep.subr.mxu0 0.0
    %2915 = vmatpush1.msra.mxu0 0.0
    %2916 = vmatprep.subr.mxu0 0.0
    %2917 = vmatpush1.msra.mxu0 0.0
    %2918 = vmatprep.subr.mxu0 0.0
    %2919 = vmatpush1.msra.mxu0 0.0
    %2920 = vmatprep.subr.mxu0 0.0
    %2921 = vmatpush1.msra.mxu0 0.0
    %2922 = vmatprep.subr.mxu0 0.0
    %2923 = vmatpush1.msra.mxu0 0.0
    %2924 = vmatprep.subr.mxu0 0.0
    %2925 = vmatpush1.msra.mxu0 0.0
    %2926 = vmatprep.subr.mxu0 0.0
    %2927 = vmatpush1.msra.mxu0 0.0
    %2928 = vmatprep.subr.mxu0 0.0
    %2929 = vmatpush1.msra.mxu0 0.0
    %2930 = vmatprep.subr.mxu0 0.0
    %2931 = vmatpush1.msra.mxu0 0.0
    %2932 = vmatprep.subr.mxu0 0.0
    %2933 = vmatpush1.msra.mxu0 0.0
    %2934 = vmatprep.subr.mxu0 0.0
    %2935 = vmatpush1.msra.mxu0 0.0
    %2936 = vmatprep.subr.mxu0 0.0
    %2937 = vmatpush1.msra.mxu0 0.0
    %2938 = vmatprep.subr.mxu0 0.0
    %2939 = vmatpush1.msra.mxu0 0.0
    %2940 = vmatprep.mubr.f32.mxu0 0.0
    %2941 = vmatmul.mubr.f32.gmra.mrb[0].mxu0 %v2875
    %v2942 = vpop.f32.mrb[0].mxu0
    %v2943 = vadd.f32 0.0, %v2942
    %v2944 = vpop.f32.mrb[0].mxu0
    %v2945 = vadd.f32 0.0, %v2944
    %2946 = vdwg.mxu0
    %2947 = vmatprep.subr.mxu0 0.0
    %2948 = vmatpush1.msra.mxu0 %v187
    %2949 = vmatprep.subr.mxu0 0.0
    %2950 = vmatpush1.msra.mxu0 %v190
    %2951 = vmatprep.subr.mxu0 0.0
    %2952 = vmatpush1.msra.mxu0 %v193
    %2953 = vmatprep.subr.mxu0 0.0
    %2954 = vmatpush1.msra.mxu0 %v196
    %2955 = vmatprep.subr.mxu0 0.0
    %2956 = vmatpush1.msra.mxu0 %v199
    %2957 = vmatprep.subr.mxu0 0.0
    %2958 = vmatpush1.msra.mxu0 %v202
    %2959 = vmatprep.subr.mxu0 0.0
    %2960 = vmatpush1.msra.mxu0 %v205
    %2961 = vmatprep.subr.mxu0 0.0
    %2962 = vmatpush1.msra.mxu0 %v208
    %2963 = vmatprep.subr.mxu0 0.0
    %2964 = vmatpush1.msra.mxu0 %v211
    %2965 = vmatprep.subr.mxu0 0.0
    %2966 = vmatpush1.msra.mxu0 %v214
    %2967 = vmatprep.subr.mxu0 0.0
    %2968 = vmatpush1.msra.mxu0 %v217
    %2969 = vmatprep.subr.mxu0 0.0
    %2970 = vmatpush1.msra.mxu0 %v220
    %2971 = vmatprep.subr.mxu0 0.0
    %2972 = vmatpush1.msra.mxu0 %v223
    %2973 = vmatprep.subr.mxu0 0.0
    %2974 = vmatpush1.msra.mxu0 %v226
    %2975 = vmatprep.subr.mxu0 0.0
    %2976 = vmatpush1.msra.mxu0 %v229
    %2977 = vmatprep.subr.mxu0 0.0
    %2978 = vmatpush1.msra.mxu0 %v232
    %2979 = vmatprep.subr.mxu0 0.0
    %2980 = vmatpush1.msra.mxu0 0.0
    %2981 = vmatprep.subr.mxu0 0.0
    %2982 = vmatpush1.msra.mxu0 0.0
    %2983 = vmatprep.subr.mxu0 0.0
    %2984 = vmatpush1.msra.mxu0 0.0
    %2985 = vmatprep.subr.mxu0 0.0
    %2986 = vmatpush1.msra.mxu0 0.0
    %2987 = vmatprep.subr.mxu0 0.0
    %2988 = vmatpush1.msra.mxu0 0.0
    %2989 = vmatprep.subr.mxu0 0.0
    %2990 = vmatpush1.msra.mxu0 0.0
    %2991 = vmatprep.subr.mxu0 0.0
    %2992 = vmatpush1.msra.mxu0 0.0
    %2993 = vmatprep.subr.mxu0 0.0
    %2994 = vmatpush1.msra.mxu0 0.0
    %2995 = vmatprep.subr.mxu0 0.0
    %2996 = vmatpush1.msra.mxu0 0.0
    %2997 = vmatprep.subr.mxu0 0.0
    %2998 = vmatpush1.msra.mxu0 0.0
    %2999 = vmatprep.subr.mxu0 0.0
    %3000 = vmatpush1.msra.mxu0 0.0
    %3001 = vmatprep.subr.mxu0 0.0
    %3002 = vmatpush1.msra.mxu0 0.0
    %3003 = vmatprep.subr.mxu0 0.0
    %3004 = vmatpush1.msra.mxu0 0.0
    %3005 = vmatprep.subr.mxu0 0.0
    %3006 = vmatpush1.msra.mxu0 0.0
    %3007 = vmatprep.subr.mxu0 0.0
    %3008 = vmatpush1.msra.mxu0 0.0
    %3009 = vmatprep.subr.mxu0 0.0
    %3010 = vmatpush1.msra.mxu0 0.0
    %3011 = vmatprep.mubr.f32.mxu0 0.0
    %3012 = vmatmul.mubr.f32.gmra.mrb[0].mxu0 %v2875
    %v3013 = vpop.f32.mrb[0].mxu0
    %v3014 = vadd.f32 0.0, %v3013
    %v3015 = vpop.f32.mrb[0].mxu0
    %3016 = vdwg.mxu0
    %v3017 = vadd.f32 %v2652, %v2795
    %v3018 = vadd.f32 %v2653, %v2797
    %v3019 = vadd.f32 %v3017, %v2943
    %v3020 = vadd.f32 %v3018, %v2945
    %v3021 = vxor.u32 %v3019, 2147483648
    %v3022 = vxor.u32 %v3020, 2147483648
    %v3023 = vmul.f32 %v3021, 1.442695
    %v3024 = vpow.pop %v3023
    %v3025 = vmul.f32 %v3022, 1.442695
    %v3026 = vpow.pop %v3025
    %v3027 = vadd.f32 %v3024, 1.0
    %v3028 = vadd.f32 %v3026, 1.0
    %v3029 = vrcp.pop %v3027
    %v3030 = vmul.f32 1.0, %v3029
    %v3031 = vrcp.pop %v3028
    %v3032 = vmul.f32 1.0, %v3031
    %v3033 = vadd.f32 %v2654, %v3014
    %v3034 = vmul.f32 %v3030, %v2866
    %v3035 = vadd.f32 %v3033, %v3034
    %v3036 = vtanh.pop %v3035
    %v3037 = vsub.f32 1.0, %v3032
    %v3038 = vmul.f32 %v3037, %v3036
    %v3039 = vmul.f32 %v3032, %v2648
    %v3040 = vadd.f32 %v3038, %v3039
    %s3041 = scalar_lea.vmem [#allocation2], 240
    %v3042 = vld [vmem:[%s3041] sm:$0xff]
    %v3043 = vld [vmem:[%s3041 + $0x8] sm:$0xff]
    %v3044 = vld [vmem:[%s3041 + $0x10] sm:$0xff]
    %v3045 = vld [vmem:[%s3041 + $0x18] sm:$0xff]
    %v3046 = vld [vmem:[%s3041 + $0x20] sm:$0xff]
    %s3047 = scalar_lea.vmem [#allocation6], 48
    %v3048 = vld [vmem:[%s3047] sm:$0xff]
    %3049 = vmatprep.subr.mxu0 %v106
    %3050 = vmatpush1.msra.mxu0 %v105
    %3051 = vmatprep.subr.mxu0 %v111
    %3052 = vmatpush1.msra.mxu0 %v110
    %3053 = vmatprep.subr.mxu0 %v116
    %3054 = vmatpush1.msra.mxu0 %v115
    %3055 = vmatprep.subr.mxu0 %v121
    %3056 = vmatpush1.msra.mxu0 %v120
    %3057 = vmatprep.subr.mxu0 %v126
    %3058 = vmatpush1.msra.mxu0 %v125
    %3059 = vmatprep.subr.mxu0 %v131
    %3060 = vmatpush1.msra.mxu0 %v130
    %3061 = vmatprep.subr.mxu0 %v136
    %3062 = vmatpush1.msra.mxu0 %v135
    %3063 = vmatprep.subr.mxu0 %v141
    %3064 = vmatpush1.msra.mxu0 %v140
    %3065 = vmatprep.subr.mxu0 %v146
    %3066 = vmatpush1.msra.mxu0 %v145
    %3067 = vmatprep.subr.mxu0 %v151
    %3068 = vmatpush1.msra.mxu0 %v150
    %3069 = vmatprep.subr.mxu0 %v156
    %3070 = vmatpush1.msra.mxu0 %v155
    %3071 = vmatprep.subr.mxu0 %v161
    %3072 = vmatpush1.msra.mxu0 %v160
    %3073 = vmatprep.subr.mxu0 %v166
    %3074 = vmatpush1.msra.mxu0 %v165
    %3075 = vmatprep.subr.mxu0 %v171
    %3076 = vmatpush1.msra.mxu0 %v170
    %3077 = vmatprep.subr.mxu0 %v176
    %3078 = vmatpush1.msra.mxu0 %v175
    %3079 = vmatprep.subr.mxu0 %v181
    %3080 = vmatpush1.msra.mxu0 %v180
    %3081 = vmatprep.subr.mxu0 0.0
    %3082 = vmatpush1.msra.mxu0 0.0
    %3083 = vmatprep.subr.mxu0 0.0
    %3084 = vmatpush1.msra.mxu0 0.0
    %3085 = vmatprep.subr.mxu0 0.0
    %3086 = vmatpush1.msra.mxu0 0.0
    %3087 = vmatprep.subr.mxu0 0.0
    %3088 = vmatpush1.msra.mxu0 0.0
    %3089 = vmatprep.subr.mxu0 0.0
    %3090 = vmatpush1.msra.mxu0 0.0
    %3091 = vmatprep.subr.mxu0 0.0
    %3092 = vmatpush1.msra.mxu0 0.0
    %3093 = vmatprep.subr.mxu0 0.0
    %3094 = vmatpush1.msra.mxu0 0.0
    %3095 = vmatprep.subr.mxu0 0.0
    %3096 = vmatpush1.msra.mxu0 0.0
    %3097 = vmatprep.subr.mxu0 0.0
    %3098 = vmatpush1.msra.mxu0 0.0
    %3099 = vmatprep.subr.mxu0 0.0
    %3100 = vmatpush1.msra.mxu0 0.0
    %3101 = vmatprep.subr.mxu0 0.0
    %3102 = vmatpush1.msra.mxu0 0.0
    %3103 = vmatprep.subr.mxu0 0.0
    %3104 = vmatpush1.msra.mxu0 0.0
    %3105 = vmatprep.subr.mxu0 0.0
    %3106 = vmatpush1.msra.mxu0 0.0
    %3107 = vmatprep.subr.mxu0 0.0
    %3108 = vmatpush1.msra.mxu0 0.0
    %3109 = vmatprep.subr.mxu0 0.0
    %3110 = vmatpush1.msra.mxu0 0.0
    %3111 = vmatprep.subr.mxu0 0.0
    %3112 = vmatpush1.msra.mxu0 0.0
    %3113 = vmatprep.mubr.f32.mxu0 0.0
    %3114 = vmatmul.mubr.f32.gmra.mrb[0].mxu0 %v3040
    %v3115 = vpop.f32.mrb[0].mxu0
    %v3116 = vadd.f32 %v675, %v3115
    %v3117 = vpop.f32.mrb[0].mxu0
    %v3118 = vadd.f32 %v679, %v3117
    %3119 = vdwg.mxu0
    %3120 = vmatprep.subr.mxu0 %v108
    %3121 = vmatpush1.msra.mxu0 %v107
    %3122 = vmatprep.subr.mxu0 %v113
    %3123 = vmatpush1.msra.mxu0 %v112
    %3124 = vmatprep.subr.mxu0 %v118
    %3125 = vmatpush1.msra.mxu0 %v117
    %3126 = vmatprep.subr.mxu0 %v123
    %3127 = vmatpush1.msra.mxu0 %v122
    %3128 = vmatprep.subr.mxu0 %v128
    %3129 = vmatpush1.msra.mxu0 %v127
    %3130 = vmatprep.subr.mxu0 %v133
    %3131 = vmatpush1.msra.mxu0 %v132
    %3132 = vmatprep.subr.mxu0 %v138
    %3133 = vmatpush1.msra.mxu0 %v137
    %3134 = vmatprep.subr.mxu0 %v143
    %3135 = vmatpush1.msra.mxu0 %v142
    %3136 = vmatprep.subr.mxu0 %v148
    %3137 = vmatpush1.msra.mxu0 %v147
    %3138 = vmatprep.subr.mxu0 %v153
    %3139 = vmatpush1.msra.mxu0 %v152
    %3140 = vmatprep.subr.mxu0 %v158
    %3141 = vmatpush1.msra.mxu0 %v157
    %3142 = vmatprep.subr.mxu0 %v163
    %3143 = vmatpush1.msra.mxu0 %v162
    %3144 = vmatprep.subr.mxu0 %v168
    %3145 = vmatpush1.msra.mxu0 %v167
    %3146 = vmatprep.subr.mxu0 %v173
    %3147 = vmatpush1.msra.mxu0 %v172
    %3148 = vmatprep.subr.mxu0 %v178
    %3149 = vmatpush1.msra.mxu0 %v177
    %3150 = vmatprep.subr.mxu0 %v183
    %3151 = vmatpush1.msra.mxu0 %v182
    %3152 = vmatprep.subr.mxu0 0.0
    %3153 = vmatpush1.msra.mxu0 0.0
    %3154 = vmatprep.subr.mxu0 0.0
    %3155 = vmatpush1.msra.mxu0 0.0
    %3156 = vmatprep.subr.mxu0 0.0
    %3157 = vmatpush1.msra.mxu0 0.0
    %3158 = vmatprep.subr.mxu0 0.0
    %3159 = vmatpush1.msra.mxu0 0.0
    %3160 = vmatprep.subr.mxu0 0.0
    %3161 = vmatpush1.msra.mxu0 0.0
    %3162 = vmatprep.subr.mxu0 0.0
    %3163 = vmatpush1.msra.mxu0 0.0
    %3164 = vmatprep.subr.mxu0 0.0
    %3165 = vmatpush1.msra.mxu0 0.0
    %3166 = vmatprep.subr.mxu0 0.0
    %3167 = vmatpush1.msra.mxu0 0.0
    %3168 = vmatprep.subr.mxu0 0.0
    %3169 = vmatpush1.msra.mxu0 0.0
    %3170 = vmatprep.subr.mxu0 0.0
    %3171 = vmatpush1.msra.mxu0 0.0
    %3172 = vmatprep.subr.mxu0 0.0
    %3173 = vmatpush1.msra.mxu0 0.0
    %3174 = vmatprep.subr.mxu0 0.0
    %3175 = vmatpush1.msra.mxu0 0.0
    %3176 = vmatprep.subr.mxu0 0.0
    %3177 = vmatpush1.msra.mxu0 0.0
    %3178 = vmatprep.subr.mxu0 0.0
    %3179 = vmatpush1.msra.mxu0 0.0
    %3180 = vmatprep.subr.mxu0 0.0
    %3181 = vmatpush1.msra.mxu0 0.0
    %3182 = vmatprep.subr.mxu0 0.0
    %3183 = vmatpush1.msra.mxu0 0.0
    %3184 = vmatprep.mubr.f32.mxu0 0.0
    %3185 = vmatmul.mubr.f32.gmra.mrb[0].mxu0 %v3040
    %v3186 = vpop.f32.mrb[0].mxu0
    %v3187 = vadd.f32 %v683, %v3186
    %v3188 = vpop.f32.mrb[0].mxu0
    %v3189 = vadd.f32 %v687, %v3188
    %3190 = vdwg.mxu0
    %3191 = vmatprep.subr.mxu0 0.0
    %3192 = vmatpush1.msra.mxu0 %v109
    %3193 = vmatprep.subr.mxu0 0.0
    %3194 = vmatpush1.msra.mxu0 %v114
    %3195 = vmatprep.subr.mxu0 0.0
    %3196 = vmatpush1.msra.mxu0 %v119
    %3197 = vmatprep.subr.mxu0 0.0
    %3198 = vmatpush1.msra.mxu0 %v124
    %3199 = vmatprep.subr.mxu0 0.0
    %3200 = vmatpush1.msra.mxu0 %v129
    %3201 = vmatprep.subr.mxu0 0.0
    %3202 = vmatpush1.msra.mxu0 %v134
    %3203 = vmatprep.subr.mxu0 0.0
    %3204 = vmatpush1.msra.mxu0 %v139
    %3205 = vmatprep.subr.mxu0 0.0
    %3206 = vmatpush1.msra.mxu0 %v144
    %3207 = vmatprep.subr.mxu0 0.0
    %3208 = vmatpush1.msra.mxu0 %v149
    %3209 = vmatprep.subr.mxu0 0.0
    %3210 = vmatpush1.msra.mxu0 %v154
    %3211 = vmatprep.subr.mxu0 0.0
    %3212 = vmatpush1.msra.mxu0 %v159
    %3213 = vmatprep.subr.mxu0 0.0
    %3214 = vmatpush1.msra.mxu0 %v164
    %3215 = vmatprep.subr.mxu0 0.0
    %3216 = vmatpush1.msra.mxu0 %v169
    %3217 = vmatprep.subr.mxu0 0.0
    %3218 = vmatpush1.msra.mxu0 %v174
    %3219 = vmatprep.subr.mxu0 0.0
    %3220 = vmatpush1.msra.mxu0 %v179
    %3221 = vmatprep.subr.mxu0 0.0
    %3222 = vmatpush1.msra.mxu0 %v184
    %3223 = vmatprep.subr.mxu0 0.0
    %3224 = vmatpush1.msra.mxu0 0.0
    %3225 = vmatprep.subr.mxu0 0.0
    %3226 = vmatpush1.msra.mxu0 0.0
    %3227 = vmatprep.subr.mxu0 0.0
    %3228 = vmatpush1.msra.mxu0 0.0
    %3229 = vmatprep.subr.mxu0 0.0
    %3230 = vmatpush1.msra.mxu0 0.0
    %3231 = vmatprep.subr.mxu0 0.0
    %3232 = vmatpush1.msra.mxu0 0.0
    %3233 = vmatprep.subr.mxu0 0.0
    %3234 = vmatpush1.msra.mxu0 0.0
    %3235 = vmatprep.subr.mxu0 0.0
    %3236 = vmatpush1.msra.mxu0 0.0
    %3237 = vmatprep.subr.mxu0 0.0
    %3238 = vmatpush1.msra.mxu0 0.0
    %3239 = vmatprep.subr.mxu0 0.0
    %3240 = vmatpush1.msra.mxu0 0.0
    %3241 = vmatprep.subr.mxu0 0.0
    %3242 = vmatpush1.msra.mxu0 0.0
    %3243 = vmatprep.subr.mxu0 0.0
    %3244 = vmatpush1.msra.mxu0 0.0
    %3245 = vmatprep.subr.mxu0 0.0
    %3246 = vmatpush1.msra.mxu0 0.0
    %3247 = vmatprep.subr.mxu0 0.0
    %3248 = vmatpush1.msra.mxu0 0.0
    %3249 = vmatprep.subr.mxu0 0.0
    %3250 = vmatpush1.msra.mxu0 0.0
    %3251 = vmatprep.subr.mxu0 0.0
    %3252 = vmatpush1.msra.mxu0 0.0
    %3253 = vmatprep.subr.mxu0 0.0
    %3254 = vmatpush1.msra.mxu0 0.0
    %3255 = vmatprep.mubr.f32.mxu0 0.0
    %3256 = vmatmul.mubr.f32.gmra.mrb[0].mxu0 %v3040
    %v3257 = vpop.f32.mrb[0].mxu0
    %v3258 = vadd.f32 %v691, %v3257
    %v3259 = vpop.f32.mrb[0].mxu0
    %3260 = vdwg.mxu0
    %v3261 = vadd.f32 %v3042, %v3116
    %v3262 = vadd.f32 %v3043, %v3118
    %v3263 = vmul.f32 %v3262, 0.5
    %v3264 = vmul.f32 %v3263, 1.442695
    %v3265 = vpow.pop %v3264
    %v3266 = vmul.f32 %v3048, %v3265
    %v3267 = vadd.f32 %v3261, %v3266
    %3268 = vmatprep.subr.mxu0 %v186
    %3269 = vmatpush1.msra.mxu0 %v185
    %3270 = vmatprep.subr.mxu0 %v189
    %3271 = vmatpush1.msra.mxu0 %v188
    %3272 = vmatprep.subr.mxu0 %v192
    %3273 = vmatpush1.msra.mxu0 %v191
    %3274 = vmatprep.subr.mxu0 %v195
    %3275 = vmatpush1.msra.mxu0 %v194
    %3276 = vmatprep.subr.mxu0 %v198
    %3277 = vmatpush1.msra.mxu0 %v197
    %3278 = vmatprep.subr.mxu0 %v201
    %3279 = vmatpush1.msra.mxu0 %v200
    %3280 = vmatprep.subr.mxu0 %v204
    %3281 = vmatpush1.msra.mxu0 %v203
    %3282 = vmatprep.subr.mxu0 %v207
    %3283 = vmatpush1.msra.mxu0 %v206
    %3284 = vmatprep.subr.mxu0 %v210
    %3285 = vmatpush1.msra.mxu0 %v209
    %3286 = vmatprep.subr.mxu0 %v213
    %3287 = vmatpush1.msra.mxu0 %v212
    %3288 = vmatprep.subr.mxu0 %v216
    %3289 = vmatpush1.msra.mxu0 %v215
    %3290 = vmatprep.subr.mxu0 %v219
    %3291 = vmatpush1.msra.mxu0 %v218
    %3292 = vmatprep.subr.mxu0 %v222
    %3293 = vmatpush1.msra.mxu0 %v221
    %3294 = vmatprep.subr.mxu0 %v225
    %3295 = vmatpush1.msra.mxu0 %v224
    %3296 = vmatprep.subr.mxu0 %v228
    %3297 = vmatpush1.msra.mxu0 %v227
    %3298 = vmatprep.subr.mxu0 %v231
    %3299 = vmatpush1.msra.mxu0 %v230
    %3300 = vmatprep.subr.mxu0 0.0
    %3301 = vmatpush1.msra.mxu0 0.0
    %3302 = vmatprep.subr.mxu0 0.0
    %3303 = vmatpush1.msra.mxu0 0.0
    %3304 = vmatprep.subr.mxu0 0.0
    %3305 = vmatpush1.msra.mxu0 0.0
    %3306 = vmatprep.subr.mxu0 0.0
    %3307 = vmatpush1.msra.mxu0 0.0
    %3308 = vmatprep.subr.mxu0 0.0
    %3309 = vmatpush1.msra.mxu0 0.0
    %3310 = vmatprep.subr.mxu0 0.0
    %3311 = vmatpush1.msra.mxu0 0.0
    %3312 = vmatprep.subr.mxu0 0.0
    %3313 = vmatpush1.msra.mxu0 0.0
    %3314 = vmatprep.subr.mxu0 0.0
    %3315 = vmatpush1.msra.mxu0 0.0
    %3316 = vmatprep.subr.mxu0 0.0
    %3317 = vmatpush1.msra.mxu0 0.0
    %3318 = vmatprep.subr.mxu0 0.0
    %3319 = vmatpush1.msra.mxu0 0.0
    %3320 = vmatprep.subr.mxu0 0.0
    %3321 = vmatpush1.msra.mxu0 0.0
    %3322 = vmatprep.subr.mxu0 0.0
    %3323 = vmatpush1.msra.mxu0 0.0
    %3324 = vmatprep.subr.mxu0 0.0
    %3325 = vmatpush1.msra.mxu0 0.0
    %3326 = vmatprep.subr.mxu0 0.0
    %3327 = vmatpush1.msra.mxu0 0.0
    %3328 = vmatprep.subr.mxu0 0.0
    %3329 = vmatpush1.msra.mxu0 0.0
    %3330 = vmatprep.subr.mxu0 0.0
    %3331 = vmatpush1.msra.mxu0 0.0
    %3332 = vmatprep.mubr.f32.mxu0 0.0
    %3333 = vmatmul.mubr.f32.gmra.mrb[0].mxu0 %v3267
    %v3334 = vpop.f32.mrb[0].mxu0
    %v3335 = vadd.f32 0.0, %v3334
    %v3336 = vpop.f32.mrb[0].mxu0
    %v3337 = vadd.f32 0.0, %v3336
    %3338 = vdwg.mxu0
    %3339 = vmatprep.subr.mxu0 0.0
    %3340 = vmatpush1.msra.mxu0 %v187
    %3341 = vmatprep.subr.mxu0 0.0
    %3342 = vmatpush1.msra.mxu0 %v190
    %3343 = vmatprep.subr.mxu0 0.0
    %3344 = vmatpush1.msra.mxu0 %v193
    %3345 = vmatprep.subr.mxu0 0.0
    %3346 = vmatpush1.msra.mxu0 %v196
    %3347 = vmatprep.subr.mxu0 0.0
    %3348 = vmatpush1.msra.mxu0 %v199
    %3349 = vmatprep.subr.mxu0 0.0
    %3350 = vmatpush1.msra.mxu0 %v202
    %3351 = vmatprep.subr.mxu0 0.0
    %3352 = vmatpush1.msra.mxu0 %v205
    %3353 = vmatprep.subr.mxu0 0.0
    %3354 = vmatpush1.msra.mxu0 %v208
    %3355 = vmatprep.subr.mxu0 0.0
    %3356 = vmatpush1.msra.mxu0 %v211
    %3357 = vmatprep.subr.mxu0 0.0
    %3358 = vmatpush1.msra.mxu0 %v214
    %3359 = vmatprep.subr.mxu0 0.0
    %3360 = vmatpush1.msra.mxu0 %v217
    %3361 = vmatprep.subr.mxu0 0.0
    %3362 = vmatpush1.msra.mxu0 %v220
    %3363 = vmatprep.subr.mxu0 0.0
    %3364 = vmatpush1.msra.mxu0 %v223
    %3365 = vmatprep.subr.mxu0 0.0
    %3366 = vmatpush1.msra.mxu0 %v226
    %3367 = vmatprep.subr.mxu0 0.0
    %3368 = vmatpush1.msra.mxu0 %v229
    %3369 = vmatprep.subr.mxu0 0.0
    %3370 = vmatpush1.msra.mxu0 %v232
    %3371 = vmatprep.subr.mxu0 0.0
    %3372 = vmatpush1.msra.mxu0 0.0
    %3373 = vmatprep.subr.mxu0 0.0
    %3374 = vmatpush1.msra.mxu0 0.0
    %3375 = vmatprep.subr.mxu0 0.0
    %3376 = vmatpush1.msra.mxu0 0.0
    %3377 = vmatprep.subr.mxu0 0.0
    %3378 = vmatpush1.msra.mxu0 0.0
    %3379 = vmatprep.subr.mxu0 0.0
    %3380 = vmatpush1.msra.mxu0 0.0
    %3381 = vmatprep.subr.mxu0 0.0
    %3382 = vmatpush1.msra.mxu0 0.0
    %3383 = vmatprep.subr.mxu0 0.0
    %3384 = vmatpush1.msra.mxu0 0.0
    %3385 = vmatprep.subr.mxu0 0.0
    %3386 = vmatpush1.msra.mxu0 0.0
    %3387 = vmatprep.subr.mxu0 0.0
    %3388 = vmatpush1.msra.mxu0 0.0
    %3389 = vmatprep.subr.mxu0 0.0
    %3390 = vmatpush1.msra.mxu0 0.0
    %3391 = vmatprep.subr.mxu0 0.0
    %3392 = vmatpush1.msra.mxu0 0.0
    %3393 = vmatprep.subr.mxu0 0.0
    %3394 = vmatpush1.msra.mxu0 0.0
    %3395 = vmatprep.subr.mxu0 0.0
    %3396 = vmatpush1.msra.mxu0 0.0
    %3397 = vmatprep.subr.mxu0 0.0
    %3398 = vmatpush1.msra.mxu0 0.0
    %3399 = vmatprep.subr.mxu0 0.0
    %3400 = vmatpush1.msra.mxu0 0.0
    %3401 = vmatprep.subr.mxu0 0.0
    %3402 = vmatpush1.msra.mxu0 0.0
    %3403 = vmatprep.mubr.f32.mxu0 0.0
    %3404 = vmatmul.mubr.f32.gmra.mrb[0].mxu0 %v3267
    %v3405 = vpop.f32.mrb[0].mxu0
    %v3406 = vadd.f32 0.0, %v3405
    %v3407 = vpop.f32.mrb[0].mxu0
    %3408 = vdwg.mxu0
    %v3409 = vadd.f32 %v3044, %v3187
    %v3410 = vadd.f32 %v3045, %v3189
    %v3411 = vadd.f32 %v3409, %v3335
    %v3412 = vadd.f32 %v3410, %v3337
    %v3413 = vxor.u32 %v3411, 2147483648
    %v3414 = vxor.u32 %v3412, 2147483648
    %v3415 = vmul.f32 %v3413, 1.442695
    %v3416 = vpow.pop %v3415
    %v3417 = vmul.f32 %v3414, 1.442695
    %v3418 = vpow.pop %v3417
    %v3419 = vadd.f32 %v3416, 1.0
    %v3420 = vadd.f32 %v3418, 1.0
    %v3421 = vrcp.pop %v3419
    %v3422 = vmul.f32 1.0, %v3421
    %v3423 = vrcp.pop %v3420
    %v3424 = vmul.f32 1.0, %v3423
    %v3425 = vadd.f32 %v3046, %v3406
    %v3426 = vmul.f32 %v3422, %v3258
    %v3427 = vadd.f32 %v3425, %v3426
    %v3428 = vtanh.pop %v3427
    %v3429 = vsub.f32 1.0, %v3424
    %v3430 = vmul.f32 %v3429, %v3428
    %v3431 = vmul.f32 %v3424, %v3040
    %v3432 = vadd.f32 %v3430, %v3431
    %s3433 = scalar_lea.vmem [#allocation2], 280
    %v3434 = vld [vmem:[%s3433] sm:$0xff]
    %v3435 = vld [vmem:[%s3433 + $0x8] sm:$0xff]
    %v3436 = vld [vmem:[%s3433 + $0x10] sm:$0xff]
    %v3437 = vld [vmem:[%s3433 + $0x18] sm:$0xff]
    %v3438 = vld [vmem:[%s3433 + $0x20] sm:$0xff]
    %s3439 = scalar_lea.vmem [#allocation6], 56
    %v3440 = vld [vmem:[%s3439] sm:$0xff]
    %3441 = vmatprep.subr.mxu0 %v106
    %3442 = vmatpush1.msra.mxu0 %v105
    %3443 = vmatprep.subr.mxu0 %v111
    %3444 = vmatpush1.msra.mxu0 %v110
    %3445 = vmatprep.subr.mxu0 %v116
    %3446 = vmatpush1.msra.mxu0 %v115
    %3447 = vmatprep.subr.mxu0 %v121
    %3448 = vmatpush1.msra.mxu0 %v120
    %3449 = vmatprep.subr.mxu0 %v126
    %3450 = vmatpush1.msra.mxu0 %v125
    %3451 = vmatprep.subr.mxu0 %v131
    %3452 = vmatpush1.msra.mxu0 %v130
    %3453 = vmatprep.subr.mxu0 %v136
    %3454 = vmatpush1.msra.mxu0 %v135
    %3455 = vmatprep.subr.mxu0 %v141
    %3456 = vmatpush1.msra.mxu0 %v140
    %3457 = vmatprep.subr.mxu0 %v146
    %3458 = vmatpush1.msra.mxu0 %v145
    %3459 = vmatprep.subr.mxu0 %v151
    %3460 = vmatpush1.msra.mxu0 %v150
    %3461 = vmatprep.subr.mxu0 %v156
    %3462 = vmatpush1.msra.mxu0 %v155
    %3463 = vmatprep.subr.mxu0 %v161
    %3464 = vmatpush1.msra.mxu0 %v160
    %3465 = vmatprep.subr.mxu0 %v166
    %3466 = vmatpush1.msra.mxu0 %v165
    %3467 = vmatprep.subr.mxu0 %v171
    %3468 = vmatpush1.msra.mxu0 %v170
    %3469 = vmatprep.subr.mxu0 %v176
    %3470 = vmatpush1.msra.mxu0 %v175
    %3471 = vmatprep.subr.mxu0 %v181
    %3472 = vmatpush1.msra.mxu0 %v180
    %3473 = vmatprep.subr.mxu0 0.0
    %3474 = vmatpush1.msra.mxu0 0.0
    %3475 = vmatprep.subr.mxu0 0.0
    %3476 = vmatpush1.msra.mxu0 0.0
    %3477 = vmatprep.subr.mxu0 0.0
    %3478 = vmatpush1.msra.mxu0 0.0
    %3479 = vmatprep.subr.mxu0 0.0
    %3480 = vmatpush1.msra.mxu0 0.0
    %3481 = vmatprep.subr.mxu0 0.0
    %3482 = vmatpush1.msra.mxu0 0.0
    %3483 = vmatprep.subr.mxu0 0.0
    %3484 = vmatpush1.msra.mxu0 0.0
    %3485 = vmatprep.subr.mxu0 0.0
    %3486 = vmatpush1.msra.mxu0 0.0
    %3487 = vmatprep.subr.mxu0 0.0
    %3488 = vmatpush1.msra.mxu0 0.0
    %3489 = vmatprep.subr.mxu0 0.0
    %3490 = vmatpush1.msra.mxu0 0.0
    %3491 = vmatprep.subr.mxu0 0.0
    %3492 = vmatpush1.msra.mxu0 0.0
    %3493 = vmatprep.subr.mxu0 0.0
    %3494 = vmatpush1.msra.mxu0 0.0
    %3495 = vmatprep.subr.mxu0 0.0
    %3496 = vmatpush1.msra.mxu0 0.0
    %3497 = vmatprep.subr.mxu0 0.0
    %3498 = vmatpush1.msra.mxu0 0.0
    %3499 = vmatprep.subr.mxu0 0.0
    %3500 = vmatpush1.msra.mxu0 0.0
    %3501 = vmatprep.subr.mxu0 0.0
    %3502 = vmatpush1.msra.mxu0 0.0
    %3503 = vmatprep.subr.mxu0 0.0
    %3504 = vmatpush1.msra.mxu0 0.0
    %3505 = vmatprep.mubr.f32.mxu0 0.0
    %3506 = vmatmul.mubr.f32.gmra.mrb[0].mxu0 %v3432
    %v3507 = vpop.f32.mrb[0].mxu0
    %v3508 = vadd.f32 %v675, %v3507
    %v3509 = vpop.f32.mrb[0].mxu0
    %v3510 = vadd.f32 %v679, %v3509
    %3511 = vdwg.mxu0
    %3512 = vmatprep.subr.mxu0 %v108
    %3513 = vmatpush1.msra.mxu0 %v107
    %3514 = vmatprep.subr.mxu0 %v113
    %3515 = vmatpush1.msra.mxu0 %v112
    %3516 = vmatprep.subr.mxu0 %v118
    %3517 = vmatpush1.msra.mxu0 %v117
    %3518 = vmatprep.subr.mxu0 %v123
    %3519 = vmatpush1.msra.mxu0 %v122
    %3520 = vmatprep.subr.mxu0 %v128
    %3521 = vmatpush1.msra.mxu0 %v127
    %3522 = vmatprep.subr.mxu0 %v133
    %3523 = vmatpush1.msra.mxu0 %v132
    %3524 = vmatprep.subr.mxu0 %v138
    %3525 = vmatpush1.msra.mxu0 %v137
    %3526 = vmatprep.subr.mxu0 %v143
    %3527 = vmatpush1.msra.mxu0 %v142
    %3528 = vmatprep.subr.mxu0 %v148
    %3529 = vmatpush1.msra.mxu0 %v147
    %3530 = vmatprep.subr.mxu0 %v153
    %3531 = vmatpush1.msra.mxu0 %v152
    %3532 = vmatprep.subr.mxu0 %v158
    %3533 = vmatpush1.msra.mxu0 %v157
    %3534 = vmatprep.subr.mxu0 %v163
    %3535 = vmatpush1.msra.mxu0 %v162
    %3536 = vmatprep.subr.mxu0 %v168
    %3537 = vmatpush1.msra.mxu0 %v167
    %3538 = vmatprep.subr.mxu0 %v173
    %3539 = vmatpush1.msra.mxu0 %v172
    %3540 = vmatprep.subr.mxu0 %v178
    %3541 = vmatpush1.msra.mxu0 %v177
    %3542 = vmatprep.subr.mxu0 %v183
    %3543 = vmatpush1.msra.mxu0 %v182
    %3544 = vmatprep.subr.mxu0 0.0
    %3545 = vmatpush1.msra.mxu0 0.0
    %3546 = vmatprep.subr.mxu0 0.0
    %3547 = vmatpush1.msra.mxu0 0.0
    %3548 = vmatprep.subr.mxu0 0.0
    %3549 = vmatpush1.msra.mxu0 0.0
    %3550 = vmatprep.subr.mxu0 0.0
    %3551 = vmatpush1.msra.mxu0 0.0
    %3552 = vmatprep.subr.mxu0 0.0
    %3553 = vmatpush1.msra.mxu0 0.0
    %3554 = vmatprep.subr.mxu0 0.0
    %3555 = vmatpush1.msra.mxu0 0.0
    %3556 = vmatprep.subr.mxu0 0.0
    %3557 = vmatpush1.msra.mxu0 0.0
    %3558 = vmatprep.subr.mxu0 0.0
    %3559 = vmatpush1.msra.mxu0 0.0
    %3560 = vmatprep.subr.mxu0 0.0
    %3561 = vmatpush1.msra.mxu0 0.0
    %3562 = vmatprep.subr.mxu0 0.0
    %3563 = vmatpush1.msra.mxu0 0.0
    %3564 = vmatprep.subr.mxu0 0.0
    %3565 = vmatpush1.msra.mxu0 0.0
    %3566 = vmatprep.subr.mxu0 0.0
    %3567 = vmatpush1.msra.mxu0 0.0
    %3568 = vmatprep.subr.mxu0 0.0
    %3569 = vmatpush1.msra.mxu0 0.0
    %3570 = vmatprep.subr.mxu0 0.0
    %3571 = vmatpush1.msra.mxu0 0.0
    %3572 = vmatprep.subr.mxu0 0.0
    %3573 = vmatpush1.msra.mxu0 0.0
    %3574 = vmatprep.subr.mxu0 0.0
    %3575 = vmatpush1.msra.mxu0 0.0
    %3576 = vmatprep.mubr.f32.mxu0 0.0
    %3577 = vmatmul.mubr.f32.gmra.mrb[0].mxu0 %v3432
    %v3578 = vpop.f32.mrb[0].mxu0
    %v3579 = vadd.f32 %v683, %v3578
    %v3580 = vpop.f32.mrb[0].mxu0
    %v3581 = vadd.f32 %v687, %v3580
    %3582 = vdwg.mxu0
    %3583 = vmatprep.subr.mxu0 0.0
    %3584 = vmatpush1.msra.mxu0 %v109
    %3585 = vmatprep.subr.mxu0 0.0
    %3586 = vmatpush1.msra.mxu0 %v114
    %3587 = vmatprep.subr.mxu0 0.0
    %3588 = vmatpush1.msra.mxu0 %v119
    %3589 = vmatprep.subr.mxu0 0.0
    %3590 = vmatpush1.msra.mxu0 %v124
    %3591 = vmatprep.subr.mxu0 0.0
    %3592 = vmatpush1.msra.mxu0 %v129
    %3593 = vmatprep.subr.mxu0 0.0
    %3594 = vmatpush1.msra.mxu0 %v134
    %3595 = vmatprep.subr.mxu0 0.0
    %3596 = vmatpush1.msra.mxu0 %v139
    %3597 = vmatprep.subr.mxu0 0.0
    %3598 = vmatpush1.msra.mxu0 %v144
    %3599 = vmatprep.subr.mxu0 0.0
    %3600 = vmatpush1.msra.mxu0 %v149
    %3601 = vmatprep.subr.mxu0 0.0
    %3602 = vmatpush1.msra.mxu0 %v154
    %3603 = vmatprep.subr.mxu0 0.0
    %3604 = vmatpush1.msra.mxu0 %v159
    %3605 = vmatprep.subr.mxu0 0.0
    %3606 = vmatpush1.msra.mxu0 %v164
    %3607 = vmatprep.subr.mxu0 0.0
    %3608 = vmatpush1.msra.mxu0 %v169
    %3609 = vmatprep.subr.mxu0 0.0
    %3610 = vmatpush1.msra.mxu0 %v174
    %3611 = vmatprep.subr.mxu0 0.0
    %3612 = vmatpush1.msra.mxu0 %v179
    %3613 = vmatprep.subr.mxu0 0.0
    %3614 = vmatpush1.msra.mxu0 %v184
    %3615 = vmatprep.subr.mxu0 0.0
    %3616 = vmatpush1.msra.mxu0 0.0
    %3617 = vmatprep.subr.mxu0 0.0
    %3618 = vmatpush1.msra.mxu0 0.0
    %3619 = vmatprep.subr.mxu0 0.0
    %3620 = vmatpush1.msra.mxu0 0.0
    %3621 = vmatprep.subr.mxu0 0.0
    %3622 = vmatpush1.msra.mxu0 0.0
    %3623 = vmatprep.subr.mxu0 0.0
    %3624 = vmatpush1.msra.mxu0 0.0
    %3625 = vmatprep.subr.mxu0 0.0
    %3626 = vmatpush1.msra.mxu0 0.0
    %3627 = vmatprep.subr.mxu0 0.0
    %3628 = vmatpush1.msra.mxu0 0.0
    %3629 = vmatprep.subr.mxu0 0.0
    %3630 = vmatpush1.msra.mxu0 0.0
    %3631 = vmatprep.subr.mxu0 0.0
    %3632 = vmatpush1.msra.mxu0 0.0
    %3633 = vmatprep.subr.mxu0 0.0
    %3634 = vmatpush1.msra.mxu0 0.0
    %3635 = vmatprep.subr.mxu0 0.0
    %3636 = vmatpush1.msra.mxu0 0.0
    %3637 = vmatprep.subr.mxu0 0.0
    %3638 = vmatpush1.msra.mxu0 0.0
    %3639 = vmatprep.subr.mxu0 0.0
    %3640 = vmatpush1.msra.mxu0 0.0
    %3641 = vmatprep.subr.mxu0 0.0
    %3642 = vmatpush1.msra.mxu0 0.0
    %3643 = vmatprep.subr.mxu0 0.0
    %3644 = vmatpush1.msra.mxu0 0.0
    %3645 = vmatprep.subr.mxu0 0.0
    %3646 = vmatpush1.msra.mxu0 0.0
    %3647 = vmatprep.mubr.f32.mxu0 0.0
    %3648 = vmatmul.mubr.f32.gmra.mrb[0].mxu0 %v3432
    %v3649 = vpop.f32.mrb[0].mxu0
    %v3650 = vadd.f32 %v691, %v3649
    %v3651 = vpop.f32.mrb[0].mxu0
    %3652 = vdwg.mxu0
    %v3653 = vadd.f32 %v3434, %v3508
    %v3654 = vadd.f32 %v3435, %v3510
    %v3655 = vmul.f32 %v3654, 0.5
    %v3656 = vmul.f32 %v3655, 1.442695
    %v3657 = vpow.pop %v3656
    %v3658 = vmul.f32 %v3440, %v3657
    %v3659 = vadd.f32 %v3653, %v3658
    %3660 = vmatprep.subr.mxu0 %v186
    %3661 = vmatpush1.msra.mxu0 %v185
    %3662 = vmatprep.subr.mxu0 %v189
    %3663 = vmatpush1.msra.mxu0 %v188
    %3664 = vmatprep.subr.mxu0 %v192
    %3665 = vmatpush1.msra.mxu0 %v191
    %3666 = vmatprep.subr.mxu0 %v195
    %3667 = vmatpush1.msra.mxu0 %v194
    %3668 = vmatprep.subr.mxu0 %v198
    %3669 = vmatpush1.msra.mxu0 %v197
    %3670 = vmatprep.subr.mxu0 %v201
    %3671 = vmatpush1.msra.mxu0 %v200
    %3672 = vmatprep.subr.mxu0 %v204
    %3673 = vmatpush1.msra.mxu0 %v203
    %3674 = vmatprep.subr.mxu0 %v207
    %3675 = vmatpush1.msra.mxu0 %v206
    %3676 = vmatprep.subr.mxu0 %v210
    %3677 = vmatpush1.msra.mxu0 %v209
    %3678 = vmatprep.subr.mxu0 %v213
    %3679 = vmatpush1.msra.mxu0 %v212
    %3680 = vmatprep.subr.mxu0 %v216
    %3681 = vmatpush1.msra.mxu0 %v215
    %3682 = vmatprep.subr.mxu0 %v219
    %3683 = vmatpush1.msra.mxu0 %v218
    %3684 = vmatprep.subr.mxu0 %v222
    %3685 = vmatpush1.msra.mxu0 %v221
    %3686 = vmatprep.subr.mxu0 %v225
    %3687 = vmatpush1.msra.mxu0 %v224
    %3688 = vmatprep.subr.mxu0 %v228
    %3689 = vmatpush1.msra.mxu0 %v227
    %3690 = vmatprep.subr.mxu0 %v231
    %3691 = vmatpush1.msra.mxu0 %v230
    %3692 = vmatprep.subr.mxu0 0.0
    %3693 = vmatpush1.msra.mxu0 0.0
    %3694 = vmatprep.subr.mxu0 0.0
    %3695 = vmatpush1.msra.mxu0 0.0
    %3696 = vmatprep.subr.mxu0 0.0
    %3697 = vmatpush1.msra.mxu0 0.0
    %3698 = vmatprep.subr.mxu0 0.0
    %3699 = vmatpush1.msra.mxu0 0.0
    %3700 = vmatprep.subr.mxu0 0.0
    %3701 = vmatpush1.msra.mxu0 0.0
    %3702 = vmatprep.subr.mxu0 0.0
    %3703 = vmatpush1.msra.mxu0 0.0
    %3704 = vmatprep.subr.mxu0 0.0
    %3705 = vmatpush1.msra.mxu0 0.0
    %3706 = vmatprep.subr.mxu0 0.0
    %3707 = vmatpush1.msra.mxu0 0.0
    %3708 = vmatprep.subr.mxu0 0.0
    %3709 = vmatpush1.msra.mxu0 0.0
    %3710 = vmatprep.subr.mxu0 0.0
    %3711 = vmatpush1.msra.mxu0 0.0
    %3712 = vmatprep.subr.mxu0 0.0
    %3713 = vmatpush1.msra.mxu0 0.0
    %3714 = vmatprep.subr.mxu0 0.0
    %3715 = vmatpush1.msra.mxu0 0.0
    %3716 = vmatprep.subr.mxu0 0.0
    %3717 = vmatpush1.msra.mxu0 0.0
    %3718 = vmatprep.subr.mxu0 0.0
    %3719 = vmatpush1.msra.mxu0 0.0
    %3720 = vmatprep.subr.mxu0 0.0
    %3721 = vmatpush1.msra.mxu0 0.0
    %3722 = vmatprep.subr.mxu0 0.0
    %3723 = vmatpush1.msra.mxu0 0.0
    %3724 = vmatprep.mubr.f32.mxu0 0.0
    %3725 = vmatmul.mubr.f32.gmra.mrb[0].mxu0 %v3659
    %v3726 = vpop.f32.mrb[0].mxu0
    %v3727 = vadd.f32 0.0, %v3726
    %v3728 = vpop.f32.mrb[0].mxu0
    %v3729 = vadd.f32 0.0, %v3728
    %3730 = vdwg.mxu0
    %3731 = vmatprep.subr.mxu0 0.0
    %3732 = vmatpush1.msra.mxu0 %v187
    %3733 = vmatprep.subr.mxu0 0.0
    %3734 = vmatpush1.msra.mxu0 %v190
    %3735 = vmatprep.subr.mxu0 0.0
    %3736 = vmatpush1.msra.mxu0 %v193
    %3737 = vmatprep.subr.mxu0 0.0
    %3738 = vmatpush1.msra.mxu0 %v196
    %3739 = vmatprep.subr.mxu0 0.0
    %3740 = vmatpush1.msra.mxu0 %v199
    %3741 = vmatprep.subr.mxu0 0.0
    %3742 = vmatpush1.msra.mxu0 %v202
    %3743 = vmatprep.subr.mxu0 0.0
    %3744 = vmatpush1.msra.mxu0 %v205
    %3745 = vmatprep.subr.mxu0 0.0
    %3746 = vmatpush1.msra.mxu0 %v208
    %3747 = vmatprep.subr.mxu0 0.0
    %3748 = vmatpush1.msra.mxu0 %v211
    %3749 = vmatprep.subr.mxu0 0.0
    %3750 = vmatpush1.msra.mxu0 %v214
    %3751 = vmatprep.subr.mxu0 0.0
    %3752 = vmatpush1.msra.mxu0 %v217
    %3753 = vmatprep.subr.mxu0 0.0
    %3754 = vmatpush1.msra.mxu0 %v220
    %3755 = vmatprep.subr.mxu0 0.0
    %3756 = vmatpush1.msra.mxu0 %v223
    %3757 = vmatprep.subr.mxu0 0.0
    %3758 = vmatpush1.msra.mxu0 %v226
    %3759 = vmatprep.subr.mxu0 0.0
    %3760 = vmatpush1.msra.mxu0 %v229
    %3761 = vmatprep.subr.mxu0 0.0
    %3762 = vmatpush1.msra.mxu0 %v232
    %3763 = vmatprep.subr.mxu0 0.0
    %3764 = vmatpush1.msra.mxu0 0.0
    %3765 = vmatprep.subr.mxu0 0.0
    %3766 = vmatpush1.msra.mxu0 0.0
    %3767 = vmatprep.subr.mxu0 0.0
    %3768 = vmatpush1.msra.mxu0 0.0
    %3769 = vmatprep.subr.mxu0 0.0
    %3770 = vmatpush1.msra.mxu0 0.0
    %3771 = vmatprep.subr.mxu0 0.0
    %3772 = vmatpush1.msra.mxu0 0.0
    %3773 = vmatprep.subr.mxu0 0.0
    %3774 = vmatpush1.msra.mxu0 0.0
    %3775 = vmatprep.subr.mxu0 0.0
    %3776 = vmatpush1.msra.mxu0 0.0
    %3777 = vmatprep.subr.mxu0 0.0
    %3778 = vmatpush1.msra.mxu0 0.0
    %3779 = vmatprep.subr.mxu0 0.0
    %3780 = vmatpush1.msra.mxu0 0.0
    %3781 = vmatprep.subr.mxu0 0.0
    %3782 = vmatpush1.msra.mxu0 0.0
    %3783 = vmatprep.subr.mxu0 0.0
    %3784 = vmatpush1.msra.mxu0 0.0
    %3785 = vmatprep.subr.mxu0 0.0
    %3786 = vmatpush1.msra.mxu0 0.0
    %3787 = vmatprep.subr.mxu0 0.0
    %3788 = vmatpush1.msra.mxu0 0.0
    %3789 = vmatprep.subr.mxu0 0.0
    %3790 = vmatpush1.msra.mxu0 0.0
    %3791 = vmatprep.subr.mxu0 0.0
    %3792 = vmatpush1.msra.mxu0 0.0
    %3793 = vmatprep.subr.mxu0 0.0
    %3794 = vmatpush1.msra.mxu0 0.0
    %3795 = vmatprep.mubr.f32.mxu0 0.0
    %3796 = vmatmul.mubr.f32.gmra.mrb[0].mxu0 %v3659
    %v3797 = vpop.f32.mrb[0].mxu0
    %v3798 = vadd.f32 0.0, %v3797
    %v3799 = vpop.f32.mrb[0].mxu0
    %3800 = vdwg.mxu0
    %v3801 = vadd.f32 %v3436, %v3579
    %v3802 = vadd.f32 %v3437, %v3581
    %v3803 = vadd.f32 %v3801, %v3727
    %v3804 = vadd.f32 %v3802, %v3729
    %v3805 = vxor.u32 %v3803, 2147483648
    %v3806 = vxor.u32 %v3804, 2147483648
    %v3807 = vmul.f32 %v3805, 1.442695
    %v3808 = vpow.pop %v3807
    %v3809 = vmul.f32 %v3806, 1.442695
    %v3810 = vpow.pop %v3809
    %v3811 = vadd.f32 %v3808, 1.0
    %v3812 = vadd.f32 %v3810, 1.0
    %v3813 = vrcp.pop %v3811
    %v3814 = vmul.f32 1.0, %v3813
    %v3815 = vrcp.pop %v3812
    %v3816 = vmul.f32 1.0, %v3815
    %v3817 = vadd.f32 %v3438, %v3798
    %v3818 = vmul.f32 %v3814, %v3650
    %v3819 = vadd.f32 %v3817, %v3818
    %v3820 = vtanh.pop %v3819
    %v3821 = vsub.f32 1.0, %v3816
    %v3822 = vmul.f32 %v3821, %v3820
    %v3823 = vmul.f32 %v3816, %v3432
    %v3824 = vadd.f32 %v3822, %v3823
    %3825 = vst [vmem:[#allocation12] sm:$0xff] %v3824
    // Predicated region
    $region50: #{tpu_custom_call.1} parent=1 // pred_check
      _
    $region51: #{tpu_custom_call.1} parent=1 // pred_check_branch
      %3827 = sbr.rel (0) target = $region53
    $region52: #{tpu_custom_call.1} parent=1 // pred_region
      %s3829 = ssub.s32 128, 128
      %3830 = vsyncadd [#allocation5], %s3829
      %s3832 = sshll.u32 [#allocation12], 4
      %s3833 = int_to_ptr.vmem [resolvable:$true] %s3832
      %3835 = dma.vmem_to_hbm [thread:$0]  %s3833, 128, %s7, [#allocation5]
    $region53: #{tpu_custom_call.1} parent=1 // pred_fallthru
      _
    // Predicated region
    $region54: #{tpu_custom_call.1} parent=1 // pred_check
      _
    $region55: #{tpu_custom_call.1} parent=1 // pred_check_branch
      %3837 = sbr.rel (0) target = $region57
    $region56: #{tpu_custom_call.1} parent=1 // pred_region
      %3838 = dma.done [#allocation5], 128
    $region57: #{tpu_custom_call.1} parent=1 // pred_fallthru
      _
    %3839 = vsyncpa [#allocation4], 1
    %3840 = vsyncpa [#allocation7], 1
    %3841 = vsyncpa [#allocation10], 1
    %3842 = vsyncpa [#allocation5], 1

</llo_original>
